<compile_context>
chip_gen: v7x
topology: tpu7x:2x2x1
jax: 0.10.0
libtpu: 0.0.40
codegen_flags: <defaults>
</compile_context>

<pallas_src>
from functools import partial

import jax
import jax.numpy as jnp
from jax import lax
from jax.experimental import pallas as pl
from jax.experimental.pallas import tpu as pltpu


def _gelu_exact(x):
    # PyTorch nn.GELU() default = exact erf formulation.
    # (jax.nn.gelu(approximate=True) would move this work to the EUP, but deviates
    #  from the PyTorch module's semantics, so we keep exact erf.)
    return 0.5 * x * (1.0 + lax.erf(x / jnp.sqrt(jnp.float32(2.0))))


def _layernorm(x, gamma, beta, eps=1e-5):
    mu = jnp.mean(x, axis=-1, keepdims=True)
    var = jnp.mean((x - mu) ** 2, axis=-1, keepdims=True)
    return (x - mu) * lax.rsqrt(var + eps) * gamma + beta


def encoder_block_kernel(x_ref, wqkv_ref, bqkv_ref, wo_ref, bo_ref,
                         g1_ref, be1_ref, w1_ref, b1_ref, w2_ref, b2_ref,
                         g2_ref, be2_ref, o_ref, ctx_ref, *, num_heads):
    B, L, E = x_ref.shape
    hd = E // num_heads
    M = B * L

    x = x_ref[...].astype(jnp.float32)                      # (B, L, E)
    xf = x.reshape(M, E)                                    # merge leading dims only
    x_bf = xf.astype(jnp.bfloat16)

    # --- QKV projection: one big MXU matmul over all B_TILE*L rows ---
    # 1/sqrt(head_dim) is already folded into the q slice of wqkv/bqkv.
    qkv = jnp.dot(x_bf, wqkv_ref[...],
                  preferred_element_type=jnp.float32) + bqkv_ref[...]   # (M, 3E)

    q = qkv[:, :E].astype(jnp.bfloat16)
    k = qkv[:, E:2 * E].astype(jnp.bfloat16)
    v = qkv[:, 2 * E:].astype(jnp.bfloat16)

    # --- per-head attention, batched over the B_TILE batch elements ---
    # Each head's context is written into its lane slice of a bf16 VMEM scratch,
    # so the output projection below is a single (M,E)x(E,E) matmul (K=E, not K=hd).
    # TODO(synk): for production seq lengths, block over KV with an online softmax
    # (flash-style m/l/acc scratch) instead of materializing the full (B,L,L) scores;
    # for production head counts drive this loop with lax.fori_loop(unroll=True).
    for h in range(num_heads):
        sl = slice(h * hd, (h + 1) * hd)
        qh = q[:, sl].reshape(B, L, hd)                     # leading-dim reshape only
        kh = k[:, sl].reshape(B, L, hd)
        vh = v[:, sl].reshape(B, L, hd)

        s = jnp.einsum('bqd,bkd->bqk', qh, kh,
                       preferred_element_type=jnp.float32)  # (B, L, L)
        s = s - jnp.max(s, axis=-1, keepdims=True)
        p = jnp.exp(s)
        p = p * pl.reciprocal(jnp.sum(p, axis=-1, keepdims=True), approx=True)

        ctx = jnp.einsum('bqk,bkd->bqd', p.astype(jnp.bfloat16), vh,
                         preferred_element_type=jnp.float32)            # (B, L, hd)
        ctx_ref[:, sl] = ctx.reshape(M, hd).astype(jnp.bfloat16)

    # --- attention output projection: single K=E MXU matmul ---
    attn = jnp.dot(ctx_ref[...], wo_ref[...],
                   preferred_element_type=jnp.float32) + bo_ref[...]    # (M, E)

    # --- residual + LayerNorm1 (f32) ---
    h1 = _layernorm(xf + attn, g1_ref[...], be1_ref[...])               # (M, E)

    # --- MLP: Linear -> GELU -> (Dropout=id) -> Linear -> (Dropout=id) ---
    # TODO(synk): at production E/H, tile over H-blocks accumulating into an (M,E)
    # f32 scratch instead of keeping w1/w2 and the (M,H) GELU temp fully resident.
    z = jnp.dot(h1.astype(jnp.bfloat16), w1_ref[...],
                preferred_element_type=jnp.float32) + b1_ref[...]        # (M, H)
    z = _gelu_exact(z)
    mlp = jnp.dot(z.astype(jnp.bfloat16), w2_ref[...],
                  preferred_element_type=jnp.float32) + b2_ref[...]      # (M, E)

    # --- residual + LayerNorm2 ---
    out = _layernorm(h1 + mlp, g2_ref[...], be2_ref[...])
    # Lane-dense writeback: E is a multiple of 128 in production configs; bf16 output
    # would additionally halve store bytes if the consumer accepts it.
    o_ref[...] = out.reshape(B, L, E).astype(o_ref.dtype)


def _vmem_capacity_bytes():
    try:
        cap = getattr(pltpu.get_tpu_info(), "vmem_capacity_bytes", None)
    except Exception:
        cap = None
    return int(cap) if cap else 128 * 1024 * 1024


def _pick_b_tile(N, L, vmem_cap_bytes):
    """Generation-aware batch tile: fill the MXU M dim while keeping grid >= 2."""
    if N <= 1:
        return 1
    # ~256 rows/step on 128 MiB-VMEM chips (v5e/v6e), ~128 rows on 64 MiB v7x.
    target_rows = 256 if vmem_cap_bytes >= (100 << 20) else 128
    bt = min(N // 2, max(1, target_rows // max(L, 1)))
    bt = max(bt, 1)
    while N % bt:
        bt -= 1
    return bt


def prepare_params(params, num_heads):
    """One-time preprocessing (cache at init): pre-transpose + bf16-cast all matmul
    weights and fold 1/sqrt(head_dim) into the q slice of the in-projection."""
    E = params["wo"].shape[0]
    hd = E // num_heads
    scale = 1.0 / jnp.sqrt(jnp.float32(hd))

    wqkv = params["wqkv"].astype(jnp.float32)               # (3E, E) torch layout
    bqkv = params["bqkv"].astype(jnp.float32)               # (1, 3E)
    wqkv = wqkv.at[:E, :].multiply(scale)                   # scale q output rows
    bqkv = bqkv.at[:, :E].multiply(scale)

    cdt = jnp.bfloat16
    f32 = jnp.float32
    return {
        "wqkv_t": wqkv.T.astype(cdt),                       # (E, 3E)
        "bqkv": bqkv,                                       # (1, 3E) f32 (scaled)
        "wo_t": params["wo"].T.astype(cdt),                 # (E, E)
        "bo": params["bo"].astype(f32),
        "g1": params["g1"].astype(f32),
        "be1": params["be1"].astype(f32),
        "w1_t": params["w1"].T.astype(cdt),                 # (E, H)
        "b1": params["b1"].astype(f32),
        "w2_t": params["w2"].T.astype(cdt),                 # (H, E)
        "b2": params["b2"].astype(f32),
        "g2": params["g2"].astype(f32),
        "be2": params["be2"].astype(f32),
    }


def transformer_encoder_block(x_lne, prep, num_heads, b_tile=None):
    L, N, E = x_lne.shape
    H = prep["w1_t"].shape[1]
    assert E % num_heads == 0
    vmem_cap = _vmem_capacity_bytes()
    if b_tile is None:
        b_tile = _pick_b_tile(N, L, vmem_cap)
    assert N % b_tile == 0

    x = jnp.transpose(x_lne, (1, 0, 2))                     # (N, L, E)
    kernel = partial(encoder_block_kernel, num_heads=num_heads)

    def run(single_buffer_weights):
        def const(shape):
            # Constant-across-grid input: its block never changes, so a single
            # VMEM buffer is enough (halves resident weight footprint).
            zeros = tuple(0 for _ in shape)
            if single_buffer_weights:
                return pl.BlockSpec(shape, lambda b, _z=zeros: _z,
                                    pipeline_mode=pl.Buffered(1))
            return pl.BlockSpec(shape, lambda b, _z=zeros: _z)

        return pl.pallas_call(
            kernel,
            out_shape=jax.ShapeDtypeStruct((N, L, E), x.dtype),
            grid_spec=pltpu.PrefetchScalarGridSpec(
                num_scalar_prefetch=0,
                grid=(N // b_tile,),
                in_specs=[
                    pl.BlockSpec((b_tile, L, E), lambda b: (b, 0, 0)),  # x
                    const((E, 3 * E)),                                  # in_proj W (pre-T, scaled)
                    const((1, 3 * E)),                                  # in_proj b (scaled)
                    const((E, E)),                                      # out_proj W (pre-T)
                    const((1, E)),                                      # out_proj b
                    const((1, E)),                                      # norm1 gamma
                    const((1, E)),                                      # norm1 beta
                    const((E, H)),                                      # mlp W1 (pre-T)
                    const((1, H)),                                      # mlp b1
                    const((H, E)),                                      # mlp W2 (pre-T)
                    const((1, E)),                                      # mlp b2
                    const((1, E)),                                      # norm2 gamma
                    const((1, E)),                                      # norm2 beta
                ],
                out_specs=pl.BlockSpec((b_tile, L, E), lambda b: (b, 0, 0)),
                scratch_shapes=[
                    # per-step attention context assembled across heads (bf16)
                    pltpu.VMEM((b_tile * L, E), jnp.bfloat16),
                ],
            ),
            compiler_params=pltpu.CompilerParams(
                dimension_semantics=("parallel",),
                # ~75% of physical VMEM: ≈48 MiB on v7x, ≈96 MiB on v5e/v6e.
                vmem_limit_bytes=int(vmem_cap * 3) // 4),
        )(x, prep["wqkv_t"], prep["bqkv"], prep["wo_t"], prep["bo"],
          prep["g1"], prep["be1"], prep["w1_t"], prep["b1"],
          prep["w2_t"], prep["b2"], prep["g2"], prep["be2"])

    try:
        out = run(single_buffer_weights=True)
    except Exception:
        # Fallback for JAX versions where the auto-pipeline rejects pl.Buffered(1):
        # identical kernel, default double-buffered weight specs.
        out = run(single_buffer_weights=False)

    return jnp.transpose(out, (1, 0, 2))                    # back to (L, N, E)


def reference_jax(x_lne, params, num_heads):
    """Pure-JAX f32 reference mirroring PyTorch eval-mode semantics."""
    L, N, E = x_lne.shape
    hd = E // num_heads
    x = jnp.transpose(x_lne, (1, 0, 2)).astype(jnp.float32)       # (N, L, E)
    qkv = jnp.einsum("nle,fe->nlf", x, params["wqkv"]) + params["bqkv"][0]
    q, k, v = qkv[..., :E], qkv[..., E:2 * E], qkv[..., 2 * E:]

    def split(t):  # (N, L, E) -> (N, h, L, hd)
        return jnp.transpose(t.reshape(N, L, num_heads, hd), (0, 2, 1, 3))

    q, k, v = split(q), split(k), split(v)
    s = jnp.einsum("nhqd,nhkd->nhqk", q, k) / jnp.sqrt(jnp.float32(hd))
    p = jax.nn.softmax(s, axis=-1)
    ctx = jnp.einsum("nhqk,nhkd->nhqd", p, v)
    ctx = jnp.transpose(ctx, (0, 2, 1, 3)).reshape(N, L, E)
    attn = jnp.einsum("nle,fe->nlf", ctx, params["wo"]) + params["bo"][0]

    def ln(t, g, b):
        mu = jnp.mean(t, -1, keepdims=True)
        var = jnp.mean((t - mu) ** 2, -1, keepdims=True)
        return (t - mu) / jnp.sqrt(var + 1e-5) * g[0] + b[0]

    h1 = ln(x + attn, params["g1"], params["be1"])
    z = jnp.einsum("nle,he->nlh", h1, params["w1"]) + params["b1"][0]
    z = 0.5 * z * (1.0 + lax.erf(z / jnp.sqrt(jnp.float32(2.0))))
    mlp = jnp.einsum("nlh,eh->nle", z, params["w2"]) + params["b2"][0]
    out = ln(h1 + mlp, params["g2"], params["be2"])
    return jnp.transpose(out, (1, 0, 2))


if __name__ == "__main__":
    # Small config: seq=8, batch=4, embed_dim=32, heads=4, hidden_dim=64
    # (production configs should keep head_dim a multiple of 16 and E a multiple
    #  of 128 for lane-dense stores / aligned bf16 tiling).
    L, N, E, HEADS, HID = 8, 4, 32, 4, 64
    key = jax.random.PRNGKey(0)
    ks = jax.random.split(key, 8)

    params = {
        "wqkv": jax.random.normal(ks[0], (3 * E, E), jnp.float32) * 0.05,
        "bqkv": jax.random.normal(ks[1], (1, 3 * E), jnp.float32) * 0.05,
        "wo":   jax.random.normal(ks[2], (E, E), jnp.float32) * 0.05,
        "bo":   jax.random.normal(ks[3], (1, E), jnp.float32) * 0.05,
        "g1":   jnp.ones((1, E), jnp.float32),
        "be1":  jnp.zeros((1, E), jnp.float32),
        "w1":   jax.random.normal(ks[4], (HID, E), jnp.float32) * 0.05,
        "b1":   jax.random.normal(ks[5], (1, HID), jnp.float32) * 0.05,
        "w2":   jax.random.normal(ks[6], (E, HID), jnp.float32) * 0.05,
        "b2":   jax.random.normal(ks[7], (1, E), jnp.float32) * 0.05,
        "g2":   jnp.ones((1, E), jnp.float32),
        "be2":  jnp.zeros((1, E), jnp.float32),
    }

    x = jax.random.normal(jax.random.PRNGKey(42), (L, N, E), jnp.float32)

    prep = prepare_params(params, HEADS)        # one-time weight prep (cache at init)
    out = transformer_encoder_block(x, prep, HEADS)
    out = jax.block_until_ready(out)

    ref = jax.block_until_ready(reference_jax(x, params, HEADS))
    assert out.shape == (L, N, E)
    # bf16 MXU feeds + approx reciprocal softmax -> loose tolerance vs f32 reference
    assert jnp.allclose(out, ref, rtol=5e-2, atol=5e-2), "mismatch vs JAX reference"

    print("KERNEL_OK")
</pallas_src>

<mosaic_0001>
module attributes {stable_mosaic.version = 11 : i64} {
  func.func @encoder_block_kernel(%arg0: i32, %arg1: memref<2x8x32xf32, #tpu.memory_space<vmem>>, %arg2: memref<32x96xbf16, #tpu.memory_space<vmem>>, %arg3: memref<1x96xf32, #tpu.memory_space<vmem>>, %arg4: memref<32x32xbf16, #tpu.memory_space<vmem>>, %arg5: memref<1x32xf32, #tpu.memory_space<vmem>>, %arg6: memref<1x32xf32, #tpu.memory_space<vmem>>, %arg7: memref<1x32xf32, #tpu.memory_space<vmem>>, %arg8: memref<32x64xbf16, #tpu.memory_space<vmem>>, %arg9: memref<1x64xf32, #tpu.memory_space<vmem>>, %arg10: memref<64x32xbf16, #tpu.memory_space<vmem>>, %arg11: memref<1x32xf32, #tpu.memory_space<vmem>>, %arg12: memref<1x32xf32, #tpu.memory_space<vmem>>, %arg13: memref<1x32xf32, #tpu.memory_space<vmem>>, %arg14: memref<2x8x32xf32, #tpu.memory_space<vmem>>, %arg15: memref<16x32xbf16, #tpu.memory_space<vmem>>) attributes {dimension_semantics = [#tpu.dimension_semantics<parallel>], iteration_bounds = array<i64: 2>, scalar_prefetch = 0 : i64, scratch_operands = 1 : i64, tpu.core_type = #tpu.core_type<tc>, window_params = [{transform_indices = @transform_0, window_bounds = array<i64: 2, 8, 32>}, {pipeline_mode = #tpu.pipeline_mode<synchronous>, transform_indices = @transform_1, window_bounds = array<i64: 32, 96>}, {pipeline_mode = #tpu.pipeline_mode<synchronous>, transform_indices = @transform_2, window_bounds = array<i64: 1, 96>}, {pipeline_mode = #tpu.pipeline_mode<synchronous>, transform_indices = @transform_3, window_bounds = array<i64: 32, 32>}, {pipeline_mode = #tpu.pipeline_mode<synchronous>, transform_indices = @transform_4, window_bounds = array<i64: 1, 32>}, {pipeline_mode = #tpu.pipeline_mode<synchronous>, transform_indices = @transform_5, window_bounds = array<i64: 1, 32>}, {pipeline_mode = #tpu.pipeline_mode<synchronous>, transform_indices = @transform_6, window_bounds = array<i64: 1, 32>}, {pipeline_mode = #tpu.pipeline_mode<synchronous>, transform_indices = @transform_7, window_bounds = array<i64: 32, 64>}, {pipeline_mode = #tpu.pipeline_mode<synchronous>, transform_indices = @transform_8, window_bounds = array<i64: 1, 64>}, {pipeline_mode = #tpu.pipeline_mode<synchronous>, transform_indices = @transform_9, window_bounds = array<i64: 64, 32>}, {pipeline_mode = #tpu.pipeline_mode<synchronous>, transform_indices = @transform_10, window_bounds = array<i64: 1, 32>}, {pipeline_mode = #tpu.pipeline_mode<synchronous>, transform_indices = @transform_11, window_bounds = array<i64: 1, 32>}, {pipeline_mode = #tpu.pipeline_mode<synchronous>, transform_indices = @transform_12, window_bounds = array<i64: 1, 32>}, {transform_indices = @transform_13, window_bounds = array<i64: 2, 8, 32>}]} {
    %c0 = arith.constant 0 : index
    %c0_0 = arith.constant 0 : index
    %c0_1 = arith.constant 0 : index
    %0 = vector.load %arg1[%c0, %c0_0, %c0_1] : memref<2x8x32xf32, #tpu.memory_space<vmem>>, vector<2x8x32xf32>
    %1 = vector.shape_cast %0 : vector<2x8x32xf32> to vector<16x32xf32>
    %2 = arith.truncf %1 : vector<16x32xf32> to vector<16x32xbf16>
    %c0_2 = arith.constant 0 : index
    %c0_3 = arith.constant 0 : index
    %3 = vector.load %arg2[%c0_2, %c0_3] : memref<32x96xbf16, #tpu.memory_space<vmem>>, vector<32x96xbf16>
    %cst = arith.constant dense<0.000000e+00> : vector<16x96xf32>
    %4 = tpu.matmul %2, %3, %cst {dimension_numbers = #tpu.dot_dimension_numbers<[1], [0], [0], [1], [0, 0, 1, 1], [], []>} : vector<16x32xbf16>, vector<32x96xbf16>, vector<16x96xf32> -> vector<16x96xf32>
    %c0_4 = arith.constant 0 : index
    %c0_5 = arith.constant 0 : index
    %5 = vector.load %arg3[%c0_4, %c0_5] : memref<1x96xf32, #tpu.memory_space<vmem>>, vector<1x96xf32>
    %6 = vector.broadcast %5 : vector<1x96xf32> to vector<16x96xf32>
    %7 = arith.addf %4, %6 : vector<16x96xf32>
    %8 = vector.extract_strided_slice %7 {offsets = [0, 0], sizes = [16, 32], strides = [1, 1]} : vector<16x96xf32> to vector<16x32xf32>
    %9 = arith.truncf %8 : vector<16x32xf32> to vector<16x32xbf16>
    %10 = vector.extract_strided_slice %7 {offsets = [0, 32], sizes = [16, 32], strides = [1, 1]} : vector<16x96xf32> to vector<16x32xf32>
    %11 = arith.truncf %10 : vector<16x32xf32> to vector<16x32xbf16>
    %12 = vector.extract_strided_slice %7 {offsets = [0, 64], sizes = [16, 32], strides = [1, 1]} : vector<16x96xf32> to vector<16x32xf32>
    %13 = arith.truncf %12 : vector<16x32xf32> to vector<16x32xbf16>
    %14 = vector.extract_strided_slice %9 {offsets = [0, 0], sizes = [16, 8], strides = [1, 1]} : vector<16x32xbf16> to vector<16x8xbf16>
    %15 = vector.shape_cast %14 : vector<16x8xbf16> to vector<2x8x8xbf16>
    %16 = vector.extract_strided_slice %11 {offsets = [0, 0], sizes = [16, 8], strides = [1, 1]} : vector<16x32xbf16> to vector<16x8xbf16>
    %17 = vector.shape_cast %16 : vector<16x8xbf16> to vector<2x8x8xbf16>
    %18 = vector.extract_strided_slice %13 {offsets = [0, 0], sizes = [16, 8], strides = [1, 1]} : vector<16x32xbf16> to vector<16x8xbf16>
    %19 = vector.shape_cast %18 : vector<16x8xbf16> to vector<2x8x8xbf16>
    "tpu.trace_start"() <{level = 10 : i32, message = "bqd,bkd->bqk"}> : () -> ()
    %cst_6 = arith.constant dense<0.000000e+00> : vector<2x8x8xf32>
    %20 = tpu.matmul %15, %17, %cst_6 {dimension_numbers = #tpu.dot_dimension_numbers<[2], [2], [1], [1], [0, 0, 0, 1, 1, 1], [0], [0]>} : vector<2x8x8xbf16>, vector<2x8x8xbf16>, vector<2x8x8xf32> -> vector<2x8x8xf32>
    "tpu.trace_stop"() : () -> ()
    %cst_7 = arith.constant dense<0xFF800000> : vector<2x8xf32>
    %21 = vector.multi_reduction <maximumf>, %20, %cst_7 [2] : vector<2x8x8xf32> to vector<2x8xf32>
    %22 = vector.shape_cast %21 : vector<2x8xf32> to vector<2x8x1xf32>
    %23 = vector.broadcast %22 : vector<2x8x1xf32> to vector<2x8x8xf32>
    %24 = arith.subf %20, %23 : vector<2x8x8xf32>
    %25 = math.exp %24 : vector<2x8x8xf32>
    %cst_8 = arith.constant dense<0.000000e+00> : vector<2x8xf32>
    %26 = vector.multi_reduction <add>, %25, %cst_8 [2] : vector<2x8x8xf32> to vector<2x8xf32>
    %27 = vector.shape_cast %26 : vector<2x8xf32> to vector<2x8x1xf32>
    %28 = tpu.reciprocal %27 {approx = true} : vector<2x8x1xf32> -> vector<2x8x1xf32>
    %29 = vector.broadcast %28 : vector<2x8x1xf32> to vector<2x8x8xf32>
    %30 = arith.mulf %25, %29 : vector<2x8x8xf32>
    %31 = arith.truncf %30 : vector<2x8x8xf32> to vector<2x8x8xbf16>
    "tpu.trace_start"() <{level = 10 : i32, message = "bqk,bkd->bqd"}> : () -> ()
    %cst_9 = arith.constant dense<0.000000e+00> : vector<2x8x8xf32>
    %32 = tpu.matmul %31, %19, %cst_9 {dimension_numbers = #tpu.dot_dimension_numbers<[2], [1], [1], [2], [0, 0, 0, 1, 1, 2], [0], [0]>} : vector<2x8x8xbf16>, vector<2x8x8xbf16>, vector<2x8x8xf32> -> vector<2x8x8xf32>
    "tpu.trace_stop"() : () -> ()
    %33 = vector.shape_cast %32 : vector<2x8x8xf32> to vector<16x8xf32>
    %34 = arith.truncf %33 : vector<16x8xf32> to vector<16x8xbf16>
    %c0_10 = arith.constant 0 : index
    %c0_11 = arith.constant 0 : index
    %35 = vector.load %arg15[%c0_10, %c0_11] : memref<16x32xbf16, #tpu.memory_space<vmem>>, vector<16x8xbf16>
    tpu.vector_store %arg15[%c0_10, %c0_11], %34 {strides = array<i32>} : memref<16x32xbf16, #tpu.memory_space<vmem>>, vector<16x8xbf16>,
    %36 = vector.extract_strided_slice %9 {offsets = [0, 8], sizes = [16, 8], strides = [1, 1]} : vector<16x32xbf16> to vector<16x8xbf16>
    %37 = vector.shape_cast %36 : vector<16x8xbf16> to vector<2x8x8xbf16>
    %38 = vector.extract_strided_slice %11 {offsets = [0, 8], sizes = [16, 8], strides = [1, 1]} : vector<16x32xbf16> to vector<16x8xbf16>
    %39 = vector.shape_cast %38 : vector<16x8xbf16> to vector<2x8x8xbf16>
    %40 = vector.extract_strided_slice %13 {offsets = [0, 8], sizes = [16, 8], strides = [1, 1]} : vector<16x32xbf16> to vector<16x8xbf16>
    %41 = vector.shape_cast %40 : vector<16x8xbf16> to vector<2x8x8xbf16>
    "tpu.trace_start"() <{level = 10 : i32, message = "bqd,bkd->bqk"}> : () -> ()
    %cst_12 = arith.constant dense<0.000000e+00> : vector<2x8x8xf32>
    %42 = tpu.matmul %37, %39, %cst_12 {dimension_numbers = #tpu.dot_dimension_numbers<[2], [2], [1], [1], [0, 0, 0, 1, 1, 1], [0], [0]>} : vector<2x8x8xbf16>, vector<2x8x8xbf16>, vector<2x8x8xf32> -> vector<2x8x8xf32>
    "tpu.trace_stop"() : () -> ()
    %cst_13 = arith.constant dense<0xFF800000> : vector<2x8xf32>
    %43 = vector.multi_reduction <maximumf>, %42, %cst_13 [2] : vector<2x8x8xf32> to vector<2x8xf32>
    %44 = vector.shape_cast %43 : vector<2x8xf32> to vector<2x8x1xf32>
    %45 = vector.broadcast %44 : vector<2x8x1xf32> to vector<2x8x8xf32>
    %46 = arith.subf %42, %45 : vector<2x8x8xf32>
    %47 = math.exp %46 : vector<2x8x8xf32>
    %cst_14 = arith.constant dense<0.000000e+00> : vector<2x8xf32>
    %48 = vector.multi_reduction <add>, %47, %cst_14 [2] : vector<2x8x8xf32> to vector<2x8xf32>
    %49 = vector.shape_cast %48 : vector<2x8xf32> to vector<2x8x1xf32>
    %50 = tpu.reciprocal %49 {approx = true} : vector<2x8x1xf32> -> vector<2x8x1xf32>
    %51 = vector.broadcast %50 : vector<2x8x1xf32> to vector<2x8x8xf32>
    %52 = arith.mulf %47, %51 : vector<2x8x8xf32>
    %53 = arith.truncf %52 : vector<2x8x8xf32> to vector<2x8x8xbf16>
    "tpu.trace_start"() <{level = 10 : i32, message = "bqk,bkd->bqd"}> : () -> ()
    %cst_15 = arith.constant dense<0.000000e+00> : vector<2x8x8xf32>
    %54 = tpu.matmul %53, %41, %cst_15 {dimension_numbers = #tpu.dot_dimension_numbers<[2], [1], [1], [2], [0, 0, 0, 1, 1, 2], [0], [0]>} : vector<2x8x8xbf16>, vector<2x8x8xbf16>, vector<2x8x8xf32> -> vector<2x8x8xf32>
    "tpu.trace_stop"() : () -> ()
    %55 = vector.shape_cast %54 : vector<2x8x8xf32> to vector<16x8xf32>
    %56 = arith.truncf %55 : vector<16x8xf32> to vector<16x8xbf16>
    %c0_16 = arith.constant 0 : index
    %c8 = arith.constant 8 : index
    %57 = vector.load %arg15[%c0_16, %c8] : memref<16x32xbf16, #tpu.memory_space<vmem>>, vector<16x8xbf16>
    tpu.vector_store %arg15[%c0_16, %c8], %56 {strides = array<i32>} : memref<16x32xbf16, #tpu.memory_space<vmem>>, vector<16x8xbf16>,
    %58 = vector.extract_strided_slice %9 {offsets = [0, 16], sizes = [16, 8], strides = [1, 1]} : vector<16x32xbf16> to vector<16x8xbf16>
    %59 = vector.shape_cast %58 : vector<16x8xbf16> to vector<2x8x8xbf16>
    %60 = vector.extract_strided_slice %11 {offsets = [0, 16], sizes = [16, 8], strides = [1, 1]} : vector<16x32xbf16> to vector<16x8xbf16>
    %61 = vector.shape_cast %60 : vector<16x8xbf16> to vector<2x8x8xbf16>
    %62 = vector.extract_strided_slice %13 {offsets = [0, 16], sizes = [16, 8], strides = [1, 1]} : vector<16x32xbf16> to vector<16x8xbf16>
    %63 = vector.shape_cast %62 : vector<16x8xbf16> to vector<2x8x8xbf16>
    "tpu.trace_start"() <{level = 10 : i32, message = "bqd,bkd->bqk"}> : () -> ()
    %cst_17 = arith.constant dense<0.000000e+00> : vector<2x8x8xf32>
    %64 = tpu.matmul %59, %61, %cst_17 {dimension_numbers = #tpu.dot_dimension_numbers<[2], [2], [1], [1], [0, 0, 0, 1, 1, 1], [0], [0]>} : vector<2x8x8xbf16>, vector<2x8x8xbf16>, vector<2x8x8xf32> -> vector<2x8x8xf32>
    "tpu.trace_stop"() : () -> ()
    %cst_18 = arith.constant dense<0xFF800000> : vector<2x8xf32>
    %65 = vector.multi_reduction <maximumf>, %64, %cst_18 [2] : vector<2x8x8xf32> to vector<2x8xf32>
    %66 = vector.shape_cast %65 : vector<2x8xf32> to vector<2x8x1xf32>
    %67 = vector.broadcast %66 : vector<2x8x1xf32> to vector<2x8x8xf32>
    %68 = arith.subf %64, %67 : vector<2x8x8xf32>
    %69 = math.exp %68 : vector<2x8x8xf32>
    %cst_19 = arith.constant dense<0.000000e+00> : vector<2x8xf32>
    %70 = vector.multi_reduction <add>, %69, %cst_19 [2] : vector<2x8x8xf32> to vector<2x8xf32>
    %71 = vector.shape_cast %70 : vector<2x8xf32> to vector<2x8x1xf32>
    %72 = tpu.reciprocal %71 {approx = true} : vector<2x8x1xf32> -> vector<2x8x1xf32>
    %73 = vector.broadcast %72 : vector<2x8x1xf32> to vector<2x8x8xf32>
    %74 = arith.mulf %69, %73 : vector<2x8x8xf32>
    %75 = arith.truncf %74 : vector<2x8x8xf32> to vector<2x8x8xbf16>
    "tpu.trace_start"() <{level = 10 : i32, message = "bqk,bkd->bqd"}> : () -> ()
    %cst_20 = arith.constant dense<0.000000e+00> : vector<2x8x8xf32>
    %76 = tpu.matmul %75, %63, %cst_20 {dimension_numbers = #tpu.dot_dimension_numbers<[2], [1], [1], [2], [0, 0, 0, 1, 1, 2], [0], [0]>} : vector<2x8x8xbf16>, vector<2x8x8xbf16>, vector<2x8x8xf32> -> vector<2x8x8xf32>
    "tpu.trace_stop"() : () -> ()
    %77 = vector.shape_cast %76 : vector<2x8x8xf32> to vector<16x8xf32>
    %78 = arith.truncf %77 : vector<16x8xf32> to vector<16x8xbf16>
    %c0_21 = arith.constant 0 : index
    %c16 = arith.constant 16 : index
    %79 = vector.load %arg15[%c0_21, %c16] : memref<16x32xbf16, #tpu.memory_space<vmem>>, vector<16x8xbf16>
    tpu.vector_store %arg15[%c0_21, %c16], %78 {strides = array<i32>} : memref<16x32xbf16, #tpu.memory_space<vmem>>, vector<16x8xbf16>,
    %80 = vector.extract_strided_slice %9 {offsets = [0, 24], sizes = [16, 8], strides = [1, 1]} : vector<16x32xbf16> to vector<16x8xbf16>
    %81 = vector.shape_cast %80 : vector<16x8xbf16> to vector<2x8x8xbf16>
    %82 = vector.extract_strided_slice %11 {offsets = [0, 24], sizes = [16, 8], strides = [1, 1]} : vector<16x32xbf16> to vector<16x8xbf16>
    %83 = vector.shape_cast %82 : vector<16x8xbf16> to vector<2x8x8xbf16>
    %84 = vector.extract_strided_slice %13 {offsets = [0, 24], sizes = [16, 8], strides = [1, 1]} : vector<16x32xbf16> to vector<16x8xbf16>
    %85 = vector.shape_cast %84 : vector<16x8xbf16> to vector<2x8x8xbf16>
    "tpu.trace_start"() <{level = 10 : i32, message = "bqd,bkd->bqk"}> : () -> ()
    %cst_22 = arith.constant dense<0.000000e+00> : vector<2x8x8xf32>
    %86 = tpu.matmul %81, %83, %cst_22 {dimension_numbers = #tpu.dot_dimension_numbers<[2], [2], [1], [1], [0, 0, 0, 1, 1, 1], [0], [0]>} : vector<2x8x8xbf16>, vector<2x8x8xbf16>, vector<2x8x8xf32> -> vector<2x8x8xf32>
    "tpu.trace_stop"() : () -> ()
    %cst_23 = arith.constant dense<0xFF800000> : vector<2x8xf32>
    %87 = vector.multi_reduction <maximumf>, %86, %cst_23 [2] : vector<2x8x8xf32> to vector<2x8xf32>
    %88 = vector.shape_cast %87 : vector<2x8xf32> to vector<2x8x1xf32>
    %89 = vector.broadcast %88 : vector<2x8x1xf32> to vector<2x8x8xf32>
    %90 = arith.subf %86, %89 : vector<2x8x8xf32>
    %91 = math.exp %90 : vector<2x8x8xf32>
    %cst_24 = arith.constant dense<0.000000e+00> : vector<2x8xf32>
    %92 = vector.multi_reduction <add>, %91, %cst_24 [2] : vector<2x8x8xf32> to vector<2x8xf32>
    %93 = vector.shape_cast %92 : vector<2x8xf32> to vector<2x8x1xf32>
    %94 = tpu.reciprocal %93 {approx = true} : vector<2x8x1xf32> -> vector<2x8x1xf32>
    %95 = vector.broadcast %94 : vector<2x8x1xf32> to vector<2x8x8xf32>
    %96 = arith.mulf %91, %95 : vector<2x8x8xf32>
    %97 = arith.truncf %96 : vector<2x8x8xf32> to vector<2x8x8xbf16>
    "tpu.trace_start"() <{level = 10 : i32, message = "bqk,bkd->bqd"}> : () -> ()
    %cst_25 = arith.constant dense<0.000000e+00> : vector<2x8x8xf32>
    %98 = tpu.matmul %97, %85, %cst_25 {dimension_numbers = #tpu.dot_dimension_numbers<[2], [1], [1], [2], [0, 0, 0, 1, 1, 2], [0], [0]>} : vector<2x8x8xbf16>, vector<2x8x8xbf16>, vector<2x8x8xf32> -> vector<2x8x8xf32>
    "tpu.trace_stop"() : () -> ()
    %99 = vector.shape_cast %98 : vector<2x8x8xf32> to vector<16x8xf32>
    %100 = arith.truncf %99 : vector<16x8xf32> to vector<16x8xbf16>
    %c0_26 = arith.constant 0 : index
    %c24 = arith.constant 24 : index
    %101 = vector.load %arg15[%c0_26, %c24] : memref<16x32xbf16, #tpu.memory_space<vmem>>, vector<16x8xbf16>
    tpu.vector_store %arg15[%c0_26, %c24], %100 {strides = array<i32>} : memref<16x32xbf16, #tpu.memory_space<vmem>>, vector<16x8xbf16>,
    %c0_27 = arith.constant 0 : index
    %c0_28 = arith.constant 0 : index
    %102 = vector.load %arg15[%c0_27, %c0_28] : memref<16x32xbf16, #tpu.memory_space<vmem>>, vector<16x32xbf16>
    %c0_29 = arith.constant 0 : index
    %c0_30 = arith.constant 0 : index
    %103 = vector.load %arg4[%c0_29, %c0_30] : memref<32x32xbf16, #tpu.memory_space<vmem>>, vector<32x32xbf16>
    %cst_31 = arith.constant dense<0.000000e+00> : vector<16x32xf32>
    %104 = tpu.matmul %102, %103, %cst_31 {dimension_numbers = #tpu.dot_dimension_numbers<[1], [0], [0], [1], [0, 0, 1, 1], [], []>} : vector<16x32xbf16>, vector<32x32xbf16>, vector<16x32xf32> -> vector<16x32xf32>
    %c0_32 = arith.constant 0 : index
    %c0_33 = arith.constant 0 : index
    %105 = vector.load %arg5[%c0_32, %c0_33] : memref<1x32xf32, #tpu.memory_space<vmem>>, vector<1x32xf32>
    %106 = vector.broadcast %105 : vector<1x32xf32> to vector<16x32xf32>
    %107 = arith.addf %104, %106 : vector<16x32xf32>
    %108 = arith.addf %1, %107 : vector<16x32xf32>
    %c0_34 = arith.constant 0 : index
    %c0_35 = arith.constant 0 : index
    %109 = vector.load %arg6[%c0_34, %c0_35] : memref<1x32xf32, #tpu.memory_space<vmem>>, vector<1x32xf32>
    %c0_36 = arith.constant 0 : index
    %c0_37 = arith.constant 0 : index
    %110 = vector.load %arg7[%c0_36, %c0_37] : memref<1x32xf32, #tpu.memory_space<vmem>>, vector<1x32xf32>
    %cst_38 = arith.constant dense<0.000000e+00> : vector<16xf32>
    %111 = vector.multi_reduction <add>, %108, %cst_38 [1] : vector<16x32xf32> to vector<16xf32>
    %112 = vector.shape_cast %111 : vector<16xf32> to vector<16x1xf32>
    %cst_39 = arith.constant 3.200000e+01 : f32
    %113 = vector.broadcast %cst_39 : f32 to vector<16x1xf32>
    %114 = arith.divf %112, %113 : vector<16x1xf32>
    %115 = vector.broadcast %114 : vector<16x1xf32> to vector<16x32xf32>
    %116 = arith.subf %108, %115 : vector<16x32xf32>
    %117 = arith.mulf %116, %116 : vector<16x32xf32>
    %cst_40 = arith.constant dense<0.000000e+00> : vector<16xf32>
    %118 = vector.multi_reduction <add>, %117, %cst_40 [1] : vector<16x32xf32> to vector<16xf32>
    %119 = vector.shape_cast %118 : vector<16xf32> to vector<16x1xf32>
    %cst_41 = arith.constant 3.200000e+01 : f32
    %120 = vector.broadcast %cst_41 : f32 to vector<16x1xf32>
    %121 = arith.divf %119, %120 : vector<16x1xf32>
    %122 = vector.broadcast %114 : vector<16x1xf32> to vector<16x32xf32>
    %123 = arith.subf %108, %122 : vector<16x32xf32>
    %cst_42 = arith.constant 9.99999974E-6 : f32
    %124 = vector.broadcast %cst_42 : f32 to vector<16x1xf32>
    %125 = arith.addf %121, %124 : vector<16x1xf32>
    %126 = math.rsqrt %125 : vector<16x1xf32>
    %127 = vector.broadcast %126 : vector<16x1xf32> to vector<16x32xf32>
    %128 = arith.mulf %123, %127 : vector<16x32xf32>
    %129 = vector.broadcast %109 : vector<1x32xf32> to vector<16x32xf32>
    %130 = arith.mulf %128, %129 : vector<16x32xf32>
    %131 = vector.broadcast %110 : vector<1x32xf32> to vector<16x32xf32>
    %132 = arith.addf %130, %131 : vector<16x32xf32>
    %133 = arith.truncf %132 : vector<16x32xf32> to vector<16x32xbf16>
    %c0_43 = arith.constant 0 : index
    %c0_44 = arith.constant 0 : index
    %134 = vector.load %arg8[%c0_43, %c0_44] : memref<32x64xbf16, #tpu.memory_space<vmem>>, vector<32x64xbf16>
    %cst_45 = arith.constant dense<0.000000e+00> : vector<16x64xf32>
    %135 = tpu.matmul %133, %134, %cst_45 {dimension_numbers = #tpu.dot_dimension_numbers<[1], [0], [0], [1], [0, 0, 1, 1], [], []>} : vector<16x32xbf16>, vector<32x64xbf16>, vector<16x64xf32> -> vector<16x64xf32>
    %c0_46 = arith.constant 0 : index
    %c0_47 = arith.constant 0 : index
    %136 = vector.load %arg9[%c0_46, %c0_47] : memref<1x64xf32, #tpu.memory_space<vmem>>, vector<1x64xf32>
    %137 = vector.broadcast %136 : vector<1x64xf32> to vector<16x64xf32>
    %138 = arith.addf %135, %137 : vector<16x64xf32>
    %cst_48 = arith.constant 5.000000e-01 : f32
    %139 = vector.broadcast %cst_48 : f32 to vector<16x64xf32>
    %140 = arith.mulf %139, %138 : vector<16x64xf32>
    %cst_49 = arith.constant 2.000000e+00 : f32
    %141 = math.sqrt %cst_49 : f32
    %142 = vector.broadcast %141 : f32 to vector<16x64xf32>
    %143 = arith.divf %138, %142 : vector<16x64xf32>
    %144 = math.erf %143 : vector<16x64xf32>
    %cst_50 = arith.constant 1.000000e+00 : f32
    %145 = vector.broadcast %cst_50 : f32 to vector<16x64xf32>
    %146 = arith.addf %145, %144 : vector<16x64xf32>
    %147 = arith.mulf %140, %146 : vector<16x64xf32>
    %148 = arith.truncf %147 : vector<16x64xf32> to vector<16x64xbf16>
    %c0_51 = arith.constant 0 : index
    %c0_52 = arith.constant 0 : index
    %149 = vector.load %arg10[%c0_51, %c0_52] : memref<64x32xbf16, #tpu.memory_space<vmem>>, vector<64x32xbf16>
    %cst_53 = arith.constant dense<0.000000e+00> : vector<16x32xf32>
    %150 = tpu.matmul %148, %149, %cst_53 {dimension_numbers = #tpu.dot_dimension_numbers<[1], [0], [0], [1], [0, 0, 1, 1], [], []>} : vector<16x64xbf16>, vector<64x32xbf16>, vector<16x32xf32> -> vector<16x32xf32>
    %c0_54 = arith.constant 0 : index
    %c0_55 = arith.constant 0 : index
    %151 = vector.load %arg11[%c0_54, %c0_55] : memref<1x32xf32, #tpu.memory_space<vmem>>, vector<1x32xf32>
    %152 = vector.broadcast %151 : vector<1x32xf32> to vector<16x32xf32>
    %153 = arith.addf %150, %152 : vector<16x32xf32>
    %154 = arith.addf %132, %153 : vector<16x32xf32>
    %c0_56 = arith.constant 0 : index
    %c0_57 = arith.constant 0 : index
    %155 = vector.load %arg12[%c0_56, %c0_57] : memref<1x32xf32, #tpu.memory_space<vmem>>, vector<1x32xf32>
    %c0_58 = arith.constant 0 : index
    %c0_59 = arith.constant 0 : index
    %156 = vector.load %arg13[%c0_58, %c0_59] : memref<1x32xf32, #tpu.memory_space<vmem>>, vector<1x32xf32>
    %cst_60 = arith.constant dense<0.000000e+00> : vector<16xf32>
    %157 = vector.multi_reduction <add>, %154, %cst_60 [1] : vector<16x32xf32> to vector<16xf32>
    %158 = vector.shape_cast %157 : vector<16xf32> to vector<16x1xf32>
    %cst_61 = arith.constant 3.200000e+01 : f32
    %159 = vector.broadcast %cst_61 : f32 to vector<16x1xf32>
    %160 = arith.divf %158, %159 : vector<16x1xf32>
    %161 = vector.broadcast %160 : vector<16x1xf32> to vector<16x32xf32>
    %162 = arith.subf %154, %161 : vector<16x32xf32>
    %163 = arith.mulf %162, %162 : vector<16x32xf32>
    %cst_62 = arith.constant dense<0.000000e+00> : vector<16xf32>
    %164 = vector.multi_reduction <add>, %163, %cst_62 [1] : vector<16x32xf32> to vector<16xf32>
    %165 = vector.shape_cast %164 : vector<16xf32> to vector<16x1xf32>
    %cst_63 = arith.constant 3.200000e+01 : f32
    %166 = vector.broadcast %cst_63 : f32 to vector<16x1xf32>
    %167 = arith.divf %165, %166 : vector<16x1xf32>
    %168 = vector.broadcast %160 : vector<16x1xf32> to vector<16x32xf32>
    %169 = arith.subf %154, %168 : vector<16x32xf32>
    %cst_64 = arith.constant 9.99999974E-6 : f32
    %170 = vector.broadcast %cst_64 : f32 to vector<16x1xf32>
    %171 = arith.addf %167, %170 : vector<16x1xf32>
    %172 = math.rsqrt %171 : vector<16x1xf32>
    %173 = vector.broadcast %172 : vector<16x1xf32> to vector<16x32xf32>
    %174 = arith.mulf %169, %173 : vector<16x32xf32>
    %175 = vector.broadcast %155 : vector<1x32xf32> to vector<16x32xf32>
    %176 = arith.mulf %174, %175 : vector<16x32xf32>
    %177 = vector.broadcast %156 : vector<1x32xf32> to vector<16x32xf32>
    %178 = arith.addf %176, %177 : vector<16x32xf32>
    %179 = vector.shape_cast %178 : vector<16x32xf32> to vector<2x8x32xf32>
    %c0_65 = arith.constant 0 : index
    %c0_66 = arith.constant 0 : index
    %c0_67 = arith.constant 0 : index
    %180 = vector.load %arg14[%c0_65, %c0_66, %c0_67] : memref<2x8x32xf32, #tpu.memory_space<vmem>>, vector<2x8x32xf32>
    tpu.vector_store %arg14[%c0_65, %c0_66, %c0_67], %179 {strides = array<i32>} : memref<2x8x32xf32, #tpu.memory_space<vmem>>, vector<2x8x32xf32>,
    return
  }
  func.func @transform_0(%arg0: i32) -> (i32, i32, i32) {
    %c0_i32 = arith.constant 0 : i32
    %c0_i32_0 = arith.constant 0 : i32
    %c0_i32_1 = arith.constant 0 : i32
    return %arg0, %c0_i32, %c0_i32_0 : i32, i32, i32
  }
  func.func @transform_1(%arg0: i32) -> (i32, i32) {
    %c0_i32 = arith.constant 0 : i32
    %c0_i32_0 = arith.constant 0 : i32
    %c0_i32_1 = arith.constant 0 : i32
    return %c0_i32, %c0_i32_0 : i32, i32
  }
  func.func @transform_2(%arg0: i32) -> (i32, i32) {
    %c0_i32 = arith.constant 0 : i32
    %c0_i32_0 = arith.constant 0 : i32
    %c0_i32_1 = arith.constant 0 : i32
    return %c0_i32, %c0_i32_0 : i32, i32
  }
  func.func @transform_3(%arg0: i32) -> (i32, i32) {
    %c0_i32 = arith.constant 0 : i32
    %c0_i32_0 = arith.constant 0 : i32
    %c0_i32_1 = arith.constant 0 : i32
    return %c0_i32, %c0_i32_0 : i32, i32
  }
  func.func @transform_4(%arg0: i32) -> (i32, i32) {
    %c0_i32 = arith.constant 0 : i32
    %c0_i32_0 = arith.constant 0 : i32
    %c0_i32_1 = arith.constant 0 : i32
    return %c0_i32, %c0_i32_0 : i32, i32
  }
  func.func @transform_5(%arg0: i32) -> (i32, i32) {
    %c0_i32 = arith.constant 0 : i32
    %c0_i32_0 = arith.constant 0 : i32
    %c0_i32_1 = arith.constant 0 : i32
    return %c0_i32, %c0_i32_0 : i32, i32
  }
  func.func @transform_6(%arg0: i32) -> (i32, i32) {
    %c0_i32 = arith.constant 0 : i32
    %c0_i32_0 = arith.constant 0 : i32
    %c0_i32_1 = arith.constant 0 : i32
    return %c0_i32, %c0_i32_0 : i32, i32
  }
  func.func @transform_7(%arg0: i32) -> (i32, i32) {
    %c0_i32 = arith.constant 0 : i32
    %c0_i32_0 = arith.constant 0 : i32
    %c0_i32_1 = arith.constant 0 : i32
    return %c0_i32, %c0_i32_0 : i32, i32
  }
  func.func @transform_8(%arg0: i32) -> (i32, i32) {
    %c0_i32 = arith.constant 0 : i32
    %c0_i32_0 = arith.constant 0 : i32
    %c0_i32_1 = arith.constant 0 : i32
    return %c0_i32, %c0_i32_0 : i32, i32
  }
  func.func @transform_9(%arg0: i32) -> (i32, i32) {
    %c0_i32 = arith.constant 0 : i32
    %c0_i32_0 = arith.constant 0 : i32
    %c0_i32_1 = arith.constant 0 : i32
    return %c0_i32, %c0_i32_0 : i32, i32
  }
  func.func @transform_10(%arg0: i32) -> (i32, i32) {
    %c0_i32 = arith.constant 0 : i32
    %c0_i32_0 = arith.constant 0 : i32
    %c0_i32_1 = arith.constant 0 : i32
    return %c0_i32, %c0_i32_0 : i32, i32
  }
  func.func @transform_11(%arg0: i32) -> (i32, i32) {
    %c0_i32 = arith.constant 0 : i32
    %c0_i32_0 = arith.constant 0 : i32
    %c0_i32_1 = arith.constant 0 : i32
    return %c0_i32, %c0_i32_0 : i32, i32
  }
  func.func @transform_12(%arg0: i32) -> (i32, i32) {
    %c0_i32 = arith.constant 0 : i32
    %c0_i32_0 = arith.constant 0 : i32
    %c0_i32_1 = arith.constant 0 : i32
    return %c0_i32, %c0_i32_0 : i32, i32
  }
  func.func @transform_13(%arg0: i32) -> (i32, i32, i32) {
    %c0_i32 = arith.constant 0 : i32
    %c0_i32_0 = arith.constant 0 : i32
    %c0_i32_1 = arith.constant 0 : i32
    return %arg0, %c0_i32, %c0_i32_0 : i32, i32, i32
  }
}

module attributes {stable_mosaic.version = 11 : i64} {
  func.func @encoder_block_kernel(%arg0: i32, %arg1: memref<2x8x32xf32, #tpu.memory_space<vmem>>, %arg2: memref<32x96xbf16, #tpu.memory_space<vmem>>, %arg3: memref<1x96xf32, #tpu.memory_space<vmem>>, %arg4: memref<32x32xbf16, #tpu.memory_space<vmem>>, %arg5: memref<1x32xf32, #tpu.memory_space<vmem>>, %arg6: memref<1x32xf32, #tpu.memory_space<vmem>>, %arg7: memref<1x32xf32, #tpu.memory_space<vmem>>, %arg8: memref<32x64xbf16, #tpu.memory_space<vmem>>, %arg9: memref<1x64xf32, #tpu.memory_space<vmem>>, %arg10: memref<64x32xbf16, #tpu.memory_space<vmem>>, %arg11: memref<1x32xf32, #tpu.memory_space<vmem>>, %arg12: memref<1x32xf32, #tpu.memory_space<vmem>>, %arg13: memref<1x32xf32, #tpu.memory_space<vmem>>, %arg14: memref<2x8x32xf32, #tpu.memory_space<vmem>>, %arg15: memref<16x32xbf16, #tpu.memory_space<vmem>>) attributes {dimension_semantics = [#tpu.dimension_semantics<parallel>], iteration_bounds = array<i64: 2>, scalar_prefetch = 0 : i64, scratch_operands = 1 : i64, tpu.core_type = #tpu.core_type<tc>, window_params = [{transform_indices = @transform_0, window_bounds = array<i64: 2, 8, 32>}, {pipeline_mode = #tpu.pipeline_mode<synchronous>, transform_indices = @transform_1, window_bounds = array<i64: 32, 96>}, {pipeline_mode = #tpu.pipeline_mode<synchronous>, transform_indices = @transform_2, window_bounds = array<i64: 1, 96>}, {pipeline_mode = #tpu.pipeline_mode<synchronous>, transform_indices = @transform_3, window_bounds = array<i64: 32, 32>}, {pipeline_mode = #tpu.pipeline_mode<synchronous>, transform_indices = @transform_4, window_bounds = array<i64: 1, 32>}, {pipeline_mode = #tpu.pipeline_mode<synchronous>, transform_indices = @transform_5, window_bounds = array<i64: 1, 32>}, {pipeline_mode = #tpu.pipeline_mode<synchronous>, transform_indices = @transform_6, window_bounds = array<i64: 1, 32>}, {pipeline_mode = #tpu.pipeline_mode<synchronous>, transform_indices = @transform_7, window_bounds = array<i64: 32, 64>}, {pipeline_mode = #tpu.pipeline_mode<synchronous>, transform_indices = @transform_8, window_bounds = array<i64: 1, 64>}, {pipeline_mode = #tpu.pipeline_mode<synchronous>, transform_indices = @transform_9, window_bounds = array<i64: 64, 32>}, {pipeline_mode = #tpu.pipeline_mode<synchronous>, transform_indices = @transform_10, window_bounds = array<i64: 1, 32>}, {pipeline_mode = #tpu.pipeline_mode<synchronous>, transform_indices = @transform_11, window_bounds = array<i64: 1, 32>}, {pipeline_mode = #tpu.pipeline_mode<synchronous>, transform_indices = @transform_12, window_bounds = array<i64: 1, 32>}, {transform_indices = @transform_13, window_bounds = array<i64: 2, 8, 32>}]} {
    %c0 = arith.constant 0 : index
    %c0_0 = arith.constant 0 : index
    %c0_1 = arith.constant 0 : index
    %0 = vector.load %arg1[%c0, %c0_0, %c0_1] : memref<2x8x32xf32, #tpu.memory_space<vmem>>, vector<2x8x32xf32>
    %1 = vector.shape_cast %0 : vector<2x8x32xf32> to vector<16x32xf32>
    %2 = arith.truncf %1 : vector<16x32xf32> to vector<16x32xbf16>
    %c0_2 = arith.constant 0 : index
    %c0_3 = arith.constant 0 : index
    %3 = vector.load %arg2[%c0_2, %c0_3] : memref<32x96xbf16, #tpu.memory_space<vmem>>, vector<32x96xbf16>
    %cst = arith.constant dense<0.000000e+00> : vector<16x96xf32>
    %4 = tpu.matmul %2, %3, %cst {dimension_numbers = #tpu.dot_dimension_numbers<[1], [0], [0], [1], [0, 0, 1, 1], [], []>} : vector<16x32xbf16>, vector<32x96xbf16>, vector<16x96xf32> -> vector<16x96xf32>
    %c0_4 = arith.constant 0 : index
    %c0_5 = arith.constant 0 : index
    %5 = vector.load %arg3[%c0_4, %c0_5] : memref<1x96xf32, #tpu.memory_space<vmem>>, vector<1x96xf32>
    %6 = vector.broadcast %5 : vector<1x96xf32> to vector<16x96xf32>
    %7 = arith.addf %4, %6 : vector<16x96xf32>
    %8 = vector.extract_strided_slice %7 {offsets = [0, 0], sizes = [16, 32], strides = [1, 1]} : vector<16x96xf32> to vector<16x32xf32>
    %9 = arith.truncf %8 : vector<16x32xf32> to vector<16x32xbf16>
    %10 = vector.extract_strided_slice %7 {offsets = [0, 32], sizes = [16, 32], strides = [1, 1]} : vector<16x96xf32> to vector<16x32xf32>
    %11 = arith.truncf %10 : vector<16x32xf32> to vector<16x32xbf16>
    %12 = vector.extract_strided_slice %7 {offsets = [0, 64], sizes = [16, 32], strides = [1, 1]} : vector<16x96xf32> to vector<16x32xf32>
    %13 = arith.truncf %12 : vector<16x32xf32> to vector<16x32xbf16>
    %14 = vector.extract_strided_slice %9 {offsets = [0, 0], sizes = [16, 8], strides = [1, 1]} : vector<16x32xbf16> to vector<16x8xbf16>
    %15 = vector.shape_cast %14 : vector<16x8xbf16> to vector<2x8x8xbf16>
    %16 = vector.extract_strided_slice %11 {offsets = [0, 0], sizes = [16, 8], strides = [1, 1]} : vector<16x32xbf16> to vector<16x8xbf16>
    %17 = vector.shape_cast %16 : vector<16x8xbf16> to vector<2x8x8xbf16>
    %18 = vector.extract_strided_slice %13 {offsets = [0, 0], sizes = [16, 8], strides = [1, 1]} : vector<16x32xbf16> to vector<16x8xbf16>
    %19 = vector.shape_cast %18 : vector<16x8xbf16> to vector<2x8x8xbf16>
    "tpu.trace_start"() <{level = 10 : i32, message = "bqd,bkd->bqk"}> : () -> ()
    %cst_6 = arith.constant dense<0.000000e+00> : vector<2x8x8xf32>
    %20 = tpu.matmul %15, %17, %cst_6 {dimension_numbers = #tpu.dot_dimension_numbers<[2], [2], [1], [1], [0, 0, 0, 1, 1, 1], [0], [0]>} : vector<2x8x8xbf16>, vector<2x8x8xbf16>, vector<2x8x8xf32> -> vector<2x8x8xf32>
    "tpu.trace_stop"() : () -> ()
    %cst_7 = arith.constant dense<0xFF800000> : vector<2x8xf32>
    %21 = vector.multi_reduction <maximumf>, %20, %cst_7 [2] : vector<2x8x8xf32> to vector<2x8xf32>
    %22 = vector.shape_cast %21 : vector<2x8xf32> to vector<2x8x1xf32>
    %23 = vector.broadcast %22 : vector<2x8x1xf32> to vector<2x8x8xf32>
    %24 = arith.subf %20, %23 : vector<2x8x8xf32>
    %25 = math.exp %24 : vector<2x8x8xf32>
    %cst_8 = arith.constant dense<0.000000e+00> : vector<2x8xf32>
    %26 = vector.multi_reduction <add>, %25, %cst_8 [2] : vector<2x8x8xf32> to vector<2x8xf32>
    %27 = vector.shape_cast %26 : vector<2x8xf32> to vector<2x8x1xf32>
    %28 = tpu.reciprocal %27 {approx = true} : vector<2x8x1xf32> -> vector<2x8x1xf32>
    %29 = vector.broadcast %28 : vector<2x8x1xf32> to vector<2x8x8xf32>
    %30 = arith.mulf %25, %29 : vector<2x8x8xf32>
    %31 = arith.truncf %30 : vector<2x8x8xf32> to vector<2x8x8xbf16>
    "tpu.trace_start"() <{level = 10 : i32, message = "bqk,bkd->bqd"}> : () -> ()
    %cst_9 = arith.constant dense<0.000000e+00> : vector<2x8x8xf32>
    %32 = tpu.matmul %31, %19, %cst_9 {dimension_numbers = #tpu.dot_dimension_numbers<[2], [1], [1], [2], [0, 0, 0, 1, 1, 2], [0], [0]>} : vector<2x8x8xbf16>, vector<2x8x8xbf16>, vector<2x8x8xf32> -> vector<2x8x8xf32>
    "tpu.trace_stop"() : () -> ()
    %33 = vector.shape_cast %32 : vector<2x8x8xf32> to vector<16x8xf32>
    %34 = arith.truncf %33 : vector<16x8xf32> to vector<16x8xbf16>
    %c0_10 = arith.constant 0 : index
    %c0_11 = arith.constant 0 : index
    %35 = vector.load %arg15[%c0_10, %c0_11] : memref<16x32xbf16, #tpu.memory_space<vmem>>, vector<16x8xbf16>
    tpu.vector_store %arg15[%c0_10, %c0_11], %34 {strides = array<i32>} : memref<16x32xbf16, #tpu.memory_space<vmem>>, vector<16x8xbf16>,
    %36 = vector.extract_strided_slice %9 {offsets = [0, 8], sizes = [16, 8], strides = [1, 1]} : vector<16x32xbf16> to vector<16x8xbf16>
    %37 = vector.shape_cast %36 : vector<16x8xbf16> to vector<2x8x8xbf16>
    %38 = vector.extract_strided_slice %11 {offsets = [0, 8], sizes = [16, 8], strides = [1, 1]} : vector<16x32xbf16> to vector<16x8xbf16>
    %39 = vector.shape_cast %38 : vector<16x8xbf16> to vector<2x8x8xbf16>
    %40 = vector.extract_strided_slice %13 {offsets = [0, 8], sizes = [16, 8], strides = [1, 1]} : vector<16x32xbf16> to vector<16x8xbf16>
    %41 = vector.shape_cast %40 : vector<16x8xbf16> to vector<2x8x8xbf16>
    "tpu.trace_start"() <{level = 10 : i32, message = "bqd,bkd->bqk"}> : () -> ()
    %cst_12 = arith.constant dense<0.000000e+00> : vector<2x8x8xf32>
    %42 = tpu.matmul %37, %39, %cst_12 {dimension_numbers = #tpu.dot_dimension_numbers<[2], [2], [1], [1], [0, 0, 0, 1, 1, 1], [0], [0]>} : vector<2x8x8xbf16>, vector<2x8x8xbf16>, vector<2x8x8xf32> -> vector<2x8x8xf32>
    "tpu.trace_stop"() : () -> ()
    %cst_13 = arith.constant dense<0xFF800000> : vector<2x8xf32>
    %43 = vector.multi_reduction <maximumf>, %42, %cst_13 [2] : vector<2x8x8xf32> to vector<2x8xf32>
    %44 = vector.shape_cast %43 : vector<2x8xf32> to vector<2x8x1xf32>
    %45 = vector.broadcast %44 : vector<2x8x1xf32> to vector<2x8x8xf32>
    %46 = arith.subf %42, %45 : vector<2x8x8xf32>
    %47 = math.exp %46 : vector<2x8x8xf32>
    %cst_14 = arith.constant dense<0.000000e+00> : vector<2x8xf32>
    %48 = vector.multi_reduction <add>, %47, %cst_14 [2] : vector<2x8x8xf32> to vector<2x8xf32>
    %49 = vector.shape_cast %48 : vector<2x8xf32> to vector<2x8x1xf32>
    %50 = tpu.reciprocal %49 {approx = true} : vector<2x8x1xf32> -> vector<2x8x1xf32>
    %51 = vector.broadcast %50 : vector<2x8x1xf32> to vector<2x8x8xf32>
    %52 = arith.mulf %47, %51 : vector<2x8x8xf32>
    %53 = arith.truncf %52 : vector<2x8x8xf32> to vector<2x8x8xbf16>
    "tpu.trace_start"() <{level = 10 : i32, message = "bqk,bkd->bqd"}> : () -> ()
    %cst_15 = arith.constant dense<0.000000e+00> : vector<2x8x8xf32>
    %54 = tpu.matmul %53, %41, %cst_15 {dimension_numbers = #tpu.dot_dimension_numbers<[2], [1], [1], [2], [0, 0, 0, 1, 1, 2], [0], [0]>} : vector<2x8x8xbf16>, vector<2x8x8xbf16>, vector<2x8x8xf32> -> vector<2x8x8xf32>
    "tpu.trace_stop"() : () -> ()
    %55 = vector.shape_cast %54 : vector<2x8x8xf32> to vector<16x8xf32>
    %56 = arith.truncf %55 : vector<16x8xf32> to vector<16x8xbf16>
    %c0_16 = arith.constant 0 : index
    %c8 = arith.constant 8 : index
    %57 = vector.load %arg15[%c0_16, %c8] : memref<16x32xbf16, #tpu.memory_space<vmem>>, vector<16x8xbf16>
    tpu.vector_store %arg15[%c0_16, %c8], %56 {strides = array<i32>} : memref<16x32xbf16, #tpu.memory_space<vmem>>, vector<16x8xbf16>,
    %58 = vector.extract_strided_slice %9 {offsets = [0, 16], sizes = [16, 8], strides = [1, 1]} : vector<16x32xbf16> to vector<16x8xbf16>
    %59 = vector.shape_cast %58 : vector<16x8xbf16> to vector<2x8x8xbf16>
    %60 = vector.extract_strided_slice %11 {offsets = [0, 16], sizes = [16, 8], strides = [1, 1]} : vector<16x32xbf16> to vector<16x8xbf16>
    %61 = vector.shape_cast %60 : vector<16x8xbf16> to vector<2x8x8xbf16>
    %62 = vector.extract_strided_slice %13 {offsets = [0, 16], sizes = [16, 8], strides = [1, 1]} : vector<16x32xbf16> to vector<16x8xbf16>
    %63 = vector.shape_cast %62 : vector<16x8xbf16> to vector<2x8x8xbf16>
    "tpu.trace_start"() <{level = 10 : i32, message = "bqd,bkd->bqk"}> : () -> ()
    %cst_17 = arith.constant dense<0.000000e+00> : vector<2x8x8xf32>
    %64 = tpu.matmul %59, %61, %cst_17 {dimension_numbers = #tpu.dot_dimension_numbers<[2], [2], [1], [1], [0, 0, 0, 1, 1, 1], [0], [0]>} : vector<2x8x8xbf16>, vector<2x8x8xbf16>, vector<2x8x8xf32> -> vector<2x8x8xf32>
    "tpu.trace_stop"() : () -> ()
    %cst_18 = arith.constant dense<0xFF800000> : vector<2x8xf32>
    %65 = vector.multi_reduction <maximumf>, %64, %cst_18 [2] : vector<2x8x8xf32> to vector<2x8xf32>
    %66 = vector.shape_cast %65 : vector<2x8xf32> to vector<2x8x1xf32>
    %67 = vector.broadcast %66 : vector<2x8x1xf32> to vector<2x8x8xf32>
    %68 = arith.subf %64, %67 : vector<2x8x8xf32>
    %69 = math.exp %68 : vector<2x8x8xf32>
    %cst_19 = arith.constant dense<0.000000e+00> : vector<2x8xf32>
    %70 = vector.multi_reduction <add>, %69, %cst_19 [2] : vector<2x8x8xf32> to vector<2x8xf32>
    %71 = vector.shape_cast %70 : vector<2x8xf32> to vector<2x8x1xf32>
    %72 = tpu.reciprocal %71 {approx = true} : vector<2x8x1xf32> -> vector<2x8x1xf32>
    %73 = vector.broadcast %72 : vector<2x8x1xf32> to vector<2x8x8xf32>
    %74 = arith.mulf %69, %73 : vector<2x8x8xf32>
    %75 = arith.truncf %74 : vector<2x8x8xf32> to vector<2x8x8xbf16>
    "tpu.trace_start"() <{level = 10 : i32, message = "bqk,bkd->bqd"}> : () -> ()
    %cst_20 = arith.constant dense<0.000000e+00> : vector<2x8x8xf32>
    %76 = tpu.matmul %75, %63, %cst_20 {dimension_numbers = #tpu.dot_dimension_numbers<[2], [1], [1], [2], [0, 0, 0, 1, 1, 2], [0], [0]>} : vector<2x8x8xbf16>, vector<2x8x8xbf16>, vector<2x8x8xf32> -> vector<2x8x8xf32>
    "tpu.trace_stop"() : () -> ()
    %77 = vector.shape_cast %76 : vector<2x8x8xf32> to vector<16x8xf32>
    %78 = arith.truncf %77 : vector<16x8xf32> to vector<16x8xbf16>
    %c0_21 = arith.constant 0 : index
    %c16 = arith.constant 16 : index
    %79 = vector.load %arg15[%c0_21, %c16] : memref<16x32xbf16, #tpu.memory_space<vmem>>, vector<16x8xbf16>
    tpu.vector_store %arg15[%c0_21, %c16], %78 {strides = array<i32>} : memref<16x32xbf16, #tpu.memory_space<vmem>>, vector<16x8xbf16>,
    %80 = vector.extract_strided_slice %9 {offsets = [0, 24], sizes = [16, 8], strides = [1, 1]} : vector<16x32xbf16> to vector<16x8xbf16>
    %81 = vector.shape_cast %80 : vector<16x8xbf16> to vector<2x8x8xbf16>
    %82 = vector.extract_strided_slice %11 {offsets = [0, 24], sizes = [16, 8], strides = [1, 1]} : vector<16x32xbf16> to vector<16x8xbf16>
    %83 = vector.shape_cast %82 : vector<16x8xbf16> to vector<2x8x8xbf16>
    %84 = vector.extract_strided_slice %13 {offsets = [0, 24], sizes = [16, 8], strides = [1, 1]} : vector<16x32xbf16> to vector<16x8xbf16>
    %85 = vector.shape_cast %84 : vector<16x8xbf16> to vector<2x8x8xbf16>
    "tpu.trace_start"() <{level = 10 : i32, message = "bqd,bkd->bqk"}> : () -> ()
    %cst_22 = arith.constant dense<0.000000e+00> : vector<2x8x8xf32>
    %86 = tpu.matmul %81, %83, %cst_22 {dimension_numbers = #tpu.dot_dimension_numbers<[2], [2], [1], [1], [0, 0, 0, 1, 1, 1], [0], [0]>} : vector<2x8x8xbf16>, vector<2x8x8xbf16>, vector<2x8x8xf32> -> vector<2x8x8xf32>
    "tpu.trace_stop"() : () -> ()
    %cst_23 = arith.constant dense<0xFF800000> : vector<2x8xf32>
    %87 = vector.multi_reduction <maximumf>, %86, %cst_23 [2] : vector<2x8x8xf32> to vector<2x8xf32>
    %88 = vector.shape_cast %87 : vector<2x8xf32> to vector<2x8x1xf32>
    %89 = vector.broadcast %88 : vector<2x8x1xf32> to vector<2x8x8xf32>
    %90 = arith.subf %86, %89 : vector<2x8x8xf32>
    %91 = math.exp %90 : vector<2x8x8xf32>
    %cst_24 = arith.constant dense<0.000000e+00> : vector<2x8xf32>
    %92 = vector.multi_reduction <add>, %91, %cst_24 [2] : vector<2x8x8xf32> to vector<2x8xf32>
    %93 = vector.shape_cast %92 : vector<2x8xf32> to vector<2x8x1xf32>
    %94 = tpu.reciprocal %93 {approx = true} : vector<2x8x1xf32> -> vector<2x8x1xf32>
    %95 = vector.broadcast %94 : vector<2x8x1xf32> to vector<2x8x8xf32>
    %96 = arith.mulf %91, %95 : vector<2x8x8xf32>
    %97 = arith.truncf %96 : vector<2x8x8xf32> to vector<2x8x8xbf16>
    "tpu.trace_start"() <{level = 10 : i32, message = "bqk,bkd->bqd"}> : () -> ()
    %cst_25 = arith.constant dense<0.000000e+00> : vector<2x8x8xf32>
    %98 = tpu.matmul %97, %85, %cst_25 {dimension_numbers = #tpu.dot_dimension_numbers<[2], [1], [1], [2], [0, 0, 0, 1, 1, 2], [0], [0]>} : vector<2x8x8xbf16>, vector<2x8x8xbf16>, vector<2x8x8xf32> -> vector<2x8x8xf32>
    "tpu.trace_stop"() : () -> ()
    %99 = vector.shape_cast %98 : vector<2x8x8xf32> to vector<16x8xf32>
    %100 = arith.truncf %99 : vector<16x8xf32> to vector<16x8xbf16>
    %c0_26 = arith.constant 0 : index
    %c24 = arith.constant 24 : index
    %101 = vector.load %arg15[%c0_26, %c24] : memref<16x32xbf16, #tpu.memory_space<vmem>>, vector<16x8xbf16>
    tpu.vector_store %arg15[%c0_26, %c24], %100 {strides = array<i32>} : memref<16x32xbf16, #tpu.memory_space<vmem>>, vector<16x8xbf16>,
    %c0_27 = arith.constant 0 : index
    %c0_28 = arith.constant 0 : index
    %102 = vector.load %arg15[%c0_27, %c0_28] : memref<16x32xbf16, #tpu.memory_space<vmem>>, vector<16x32xbf16>
    %c0_29 = arith.constant 0 : index
    %c0_30 = arith.constant 0 : index
    %103 = vector.load %arg4[%c0_29, %c0_30] : memref<32x32xbf16, #tpu.memory_space<vmem>>, vector<32x32xbf16>
    %cst_31 = arith.constant dense<0.000000e+00> : vector<16x32xf32>
    %104 = tpu.matmul %102, %103, %cst_31 {dimension_numbers = #tpu.dot_dimension_numbers<[1], [0], [0], [1], [0, 0, 1, 1], [], []>} : vector<16x32xbf16>, vector<32x32xbf16>, vector<16x32xf32> -> vector<16x32xf32>
    %c0_32 = arith.constant 0 : index
    %c0_33 = arith.constant 0 : index
    %105 = vector.load %arg5[%c0_32, %c0_33] : memref<1x32xf32, #tpu.memory_space<vmem>>, vector<1x32xf32>
    %106 = vector.broadcast %105 : vector<1x32xf32> to vector<16x32xf32>
    %107 = arith.addf %104, %106 : vector<16x32xf32>
    %108 = arith.addf %1, %107 : vector<16x32xf32>
    %c0_34 = arith.constant 0 : index
    %c0_35 = arith.constant 0 : index
    %109 = vector.load %arg6[%c0_34, %c0_35] : memref<1x32xf32, #tpu.memory_space<vmem>>, vector<1x32xf32>
    %c0_36 = arith.constant 0 : index
    %c0_37 = arith.constant 0 : index
    %110 = vector.load %arg7[%c0_36, %c0_37] : memref<1x32xf32, #tpu.memory_space<vmem>>, vector<1x32xf32>
    %cst_38 = arith.constant dense<0.000000e+00> : vector<16xf32>
    %111 = vector.multi_reduction <add>, %108, %cst_38 [1] : vector<16x32xf32> to vector<16xf32>
    %112 = vector.shape_cast %111 : vector<16xf32> to vector<16x1xf32>
    %cst_39 = arith.constant 3.200000e+01 : f32
    %113 = vector.broadcast %cst_39 : f32 to vector<16x1xf32>
    %114 = arith.divf %112, %113 : vector<16x1xf32>
    %115 = vector.broadcast %114 : vector<16x1xf32> to vector<16x32xf32>
    %116 = arith.subf %108, %115 : vector<16x32xf32>
    %117 = arith.mulf %116, %116 : vector<16x32xf32>
    %cst_40 = arith.constant dense<0.000000e+00> : vector<16xf32>
    %118 = vector.multi_reduction <add>, %117, %cst_40 [1] : vector<16x32xf32> to vector<16xf32>
    %119 = vector.shape_cast %118 : vector<16xf32> to vector<16x1xf32>
    %cst_41 = arith.constant 3.200000e+01 : f32
    %120 = vector.broadcast %cst_41 : f32 to vector<16x1xf32>
    %121 = arith.divf %119, %120 : vector<16x1xf32>
    %122 = vector.broadcast %114 : vector<16x1xf32> to vector<16x32xf32>
    %123 = arith.subf %108, %122 : vector<16x32xf32>
    %cst_42 = arith.constant 9.99999974E-6 : f32
    %124 = vector.broadcast %cst_42 : f32 to vector<16x1xf32>
    %125 = arith.addf %121, %124 : vector<16x1xf32>
    %126 = math.rsqrt %125 : vector<16x1xf32>
    %127 = vector.broadcast %126 : vector<16x1xf32> to vector<16x32xf32>
    %128 = arith.mulf %123, %127 : vector<16x32xf32>
    %129 = vector.broadcast %109 : vector<1x32xf32> to vector<16x32xf32>
    %130 = arith.mulf %128, %129 : vector<16x32xf32>
    %131 = vector.broadcast %110 : vector<1x32xf32> to vector<16x32xf32>
    %132 = arith.addf %130, %131 : vector<16x32xf32>
    %133 = arith.truncf %132 : vector<16x32xf32> to vector<16x32xbf16>
    %c0_43 = arith.constant 0 : index
    %c0_44 = arith.constant 0 : index
    %134 = vector.load %arg8[%c0_43, %c0_44] : memref<32x64xbf16, #tpu.memory_space<vmem>>, vector<32x64xbf16>
    %cst_45 = arith.constant dense<0.000000e+00> : vector<16x64xf32>
    %135 = tpu.matmul %133, %134, %cst_45 {dimension_numbers = #tpu.dot_dimension_numbers<[1], [0], [0], [1], [0, 0, 1, 1], [], []>} : vector<16x32xbf16>, vector<32x64xbf16>, vector<16x64xf32> -> vector<16x64xf32>
    %c0_46 = arith.constant 0 : index
    %c0_47 = arith.constant 0 : index
    %136 = vector.load %arg9[%c0_46, %c0_47] : memref<1x64xf32, #tpu.memory_space<vmem>>, vector<1x64xf32>
    %137 = vector.broadcast %136 : vector<1x64xf32> to vector<16x64xf32>
    %138 = arith.addf %135, %137 : vector<16x64xf32>
    %cst_48 = arith.constant 5.000000e-01 : f32
    %139 = vector.broadcast %cst_48 : f32 to vector<16x64xf32>
    %140 = arith.mulf %139, %138 : vector<16x64xf32>
    %cst_49 = arith.constant 2.000000e+00 : f32
    %141 = math.sqrt %cst_49 : f32
    %142 = vector.broadcast %141 : f32 to vector<16x64xf32>
    %143 = arith.divf %138, %142 : vector<16x64xf32>
    %144 = math.erf %143 : vector<16x64xf32>
    %cst_50 = arith.constant 1.000000e+00 : f32
    %145 = vector.broadcast %cst_50 : f32 to vector<16x64xf32>
    %146 = arith.addf %145, %144 : vector<16x64xf32>
    %147 = arith.mulf %140, %146 : vector<16x64xf32>
    %148 = arith.truncf %147 : vector<16x64xf32> to vector<16x64xbf16>
    %c0_51 = arith.constant 0 : index
    %c0_52 = arith.constant 0 : index
    %149 = vector.load %arg10[%c0_51, %c0_52] : memref<64x32xbf16, #tpu.memory_space<vmem>>, vector<64x32xbf16>
    %cst_53 = arith.constant dense<0.000000e+00> : vector<16x32xf32>
    %150 = tpu.matmul %148, %149, %cst_53 {dimension_numbers = #tpu.dot_dimension_numbers<[1], [0], [0], [1], [0, 0, 1, 1], [], []>} : vector<16x64xbf16>, vector<64x32xbf16>, vector<16x32xf32> -> vector<16x32xf32>
    %c0_54 = arith.constant 0 : index
    %c0_55 = arith.constant 0 : index
    %151 = vector.load %arg11[%c0_54, %c0_55] : memref<1x32xf32, #tpu.memory_space<vmem>>, vector<1x32xf32>
    %152 = vector.broadcast %151 : vector<1x32xf32> to vector<16x32xf32>
    %153 = arith.addf %150, %152 : vector<16x32xf32>
    %154 = arith.addf %132, %153 : vector<16x32xf32>
    %c0_56 = arith.constant 0 : index
    %c0_57 = arith.constant 0 : index
    %155 = vector.load %arg12[%c0_56, %c0_57] : memref<1x32xf32, #tpu.memory_space<vmem>>, vector<1x32xf32>
    %c0_58 = arith.constant 0 : index
    %c0_59 = arith.constant 0 : index
    %156 = vector.load %arg13[%c0_58, %c0_59] : memref<1x32xf32, #tpu.memory_space<vmem>>, vector<1x32xf32>
    %cst_60 = arith.constant dense<0.000000e+00> : vector<16xf32>
    %157 = vector.multi_reduction <add>, %154, %cst_60 [1] : vector<16x32xf32> to vector<16xf32>
    %158 = vector.shape_cast %157 : vector<16xf32> to vector<16x1xf32>
    %cst_61 = arith.constant 3.200000e+01 : f32
    %159 = vector.broadcast %cst_61 : f32 to vector<16x1xf32>
    %160 = arith.divf %158, %159 : vector<16x1xf32>
    %161 = vector.broadcast %160 : vector<16x1xf32> to vector<16x32xf32>
    %162 = arith.subf %154, %161 : vector<16x32xf32>
    %163 = arith.mulf %162, %162 : vector<16x32xf32>
    %cst_62 = arith.constant dense<0.000000e+00> : vector<16xf32>
    %164 = vector.multi_reduction <add>, %163, %cst_62 [1] : vector<16x32xf32> to vector<16xf32>
    %165 = vector.shape_cast %164 : vector<16xf32> to vector<16x1xf32>
    %cst_63 = arith.constant 3.200000e+01 : f32
    %166 = vector.broadcast %cst_63 : f32 to vector<16x1xf32>
    %167 = arith.divf %165, %166 : vector<16x1xf32>
    %168 = vector.broadcast %160 : vector<16x1xf32> to vector<16x32xf32>
    %169 = arith.subf %154, %168 : vector<16x32xf32>
    %cst_64 = arith.constant 9.99999974E-6 : f32
    %170 = vector.broadcast %cst_64 : f32 to vector<16x1xf32>
    %171 = arith.addf %167, %170 : vector<16x1xf32>
    %172 = math.rsqrt %171 : vector<16x1xf32>
    %173 = vector.broadcast %172 : vector<16x1xf32> to vector<16x32xf32>
    %174 = arith.mulf %169, %173 : vector<16x32xf32>
    %175 = vector.broadcast %155 : vector<1x32xf32> to vector<16x32xf32>
    %176 = arith.mulf %174, %175 : vector<16x32xf32>
    %177 = vector.broadcast %156 : vector<1x32xf32> to vector<16x32xf32>
    %178 = arith.addf %176, %177 : vector<16x32xf32>
    %179 = vector.shape_cast %178 : vector<16x32xf32> to vector<2x8x32xf32>
    %c0_65 = arith.constant 0 : index
    %c0_66 = arith.constant 0 : index
    %c0_67 = arith.constant 0 : index
    %180 = vector.load %arg14[%c0_65, %c0_66, %c0_67] : memref<2x8x32xf32, #tpu.memory_space<vmem>>, vector<2x8x32xf32>
    tpu.vector_store %arg14[%c0_65, %c0_66, %c0_67], %179 {strides = array<i32>} : memref<2x8x32xf32, #tpu.memory_space<vmem>>, vector<2x8x32xf32>,
    return
  }
  func.func @transform_0(%arg0: i32) -> (i32, i32, i32) {
    %c0_i32 = arith.constant 0 : i32
    %c0_i32_0 = arith.constant 0 : i32
    %c0_i32_1 = arith.constant 0 : i32
    return %arg0, %c0_i32, %c0_i32_0 : i32, i32, i32
  }
  func.func @transform_1(%arg0: i32) -> (i32, i32) {
    %c0_i32 = arith.constant 0 : i32
    %c0_i32_0 = arith.constant 0 : i32
    %c0_i32_1 = arith.constant 0 : i32
    return %c0_i32, %c0_i32_0 : i32, i32
  }
  func.func @transform_2(%arg0: i32) -> (i32, i32) {
    %c0_i32 = arith.constant 0 : i32
    %c0_i32_0 = arith.constant 0 : i32
    %c0_i32_1 = arith.constant 0 : i32
    return %c0_i32, %c0_i32_0 : i32, i32
  }
  func.func @transform_3(%arg0: i32) -> (i32, i32) {
    %c0_i32 = arith.constant 0 : i32
    %c0_i32_0 = arith.constant 0 : i32
    %c0_i32_1 = arith.constant 0 : i32
    return %c0_i32, %c0_i32_0 : i32, i32
  }
  func.func @transform_4(%arg0: i32) -> (i32, i32) {
    %c0_i32 = arith.constant 0 : i32
    %c0_i32_0 = arith.constant 0 : i32
    %c0_i32_1 = arith.constant 0 : i32
    return %c0_i32, %c0_i32_0 : i32, i32
  }
  func.func @transform_5(%arg0: i32) -> (i32, i32) {
    %c0_i32 = arith.constant 0 : i32
    %c0_i32_0 = arith.constant 0 : i32
    %c0_i32_1 = arith.constant 0 : i32
    return %c0_i32, %c0_i32_0 : i32, i32
  }
  func.func @transform_6(%arg0: i32) -> (i32, i32) {
    %c0_i32 = arith.constant 0 : i32
    %c0_i32_0 = arith.constant 0 : i32
    %c0_i32_1 = arith.constant 0 : i32
    return %c0_i32, %c0_i32_0 : i32, i32
  }
  func.func @transform_7(%arg0: i32) -> (i32, i32) {
    %c0_i32 = arith.constant 0 : i32
    %c0_i32_0 = arith.constant 0 : i32
    %c0_i32_1 = arith.constant 0 : i32
    return %c0_i32, %c0_i32_0 : i32, i32
  }
  func.func @transform_8(%arg0: i32) -> (i32, i32) {
    %c0_i32 = arith.constant 0 : i32
    %c0_i32_0 = arith.constant 0 : i32
    %c0_i32_1 = arith.constant 0 : i32
    return %c0_i32, %c0_i32_0 : i32, i32
  }
  func.func @transform_9(%arg0: i32) -> (i32, i32) {
    %c0_i32 = arith.constant 0 : i32
    %c0_i32_0 = arith.constant 0 : i32
    %c0_i32_1 = arith.constant 0 : i32
    return %c0_i32, %c0_i32_0 : i32, i32
  }
  func.func @transform_10(%arg0: i32) -> (i32, i32) {
    %c0_i32 = arith.constant 0 : i32
    %c0_i32_0 = arith.constant 0 : i32
    %c0_i32_1 = arith.constant 0 : i32
    return %c0_i32, %c0_i32_0 : i32, i32
  }
  func.func @transform_11(%arg0: i32) -> (i32, i32) {
    %c0_i32 = arith.constant 0 : i32
    %c0_i32_0 = arith.constant 0 : i32
    %c0_i32_1 = arith.constant 0 : i32
    return %c0_i32, %c0_i32_0 : i32, i32
  }
  func.func @transform_12(%arg0: i32) -> (i32, i32) {
    %c0_i32 = arith.constant 0 : i32
    %c0_i32_0 = arith.constant 0 : i32
    %c0_i32_1 = arith.constant 0 : i32
    return %c0_i32, %c0_i32_0 : i32, i32
  }
  func.func @transform_13(%arg0: i32) -> (i32, i32, i32) {
    %c0_i32 = arith.constant 0 : i32
    %c0_i32_0 = arith.constant 0 : i32
    %c0_i32_1 = arith.constant 0 : i32
    return %arg0, %c0_i32, %c0_i32_0 : i32, i32, i32
  }
}

</mosaic_0001>

<llo_original>
// kernel: tpu_custom_call.1
$region0: #{tpu_custom_call.1}
  #allocation0 [shape = 'u32[]', space=smem, size = 0x4, offset = 0x4, fixed_abs, tag = 'smem constant byte address 0x4 - core index']
  #allocation1 [shape = 'u32[144,128]{1,0:T(1,128)}', space=vmem, size = 0x12000, scoped, tag = 'internal scratch']
  #allocation2 [shape = 'bf16[16,32]{1,0:T(16,128)(2,1)}', space=vmem, size = 0x1000, scoped, tag = 'scratch operand']
  %s0 = inlined_call_operand.hbm [shape: f32[4,8,32], index: 0, kind: input, shape index: {}]
  %s1 = inlined_call_operand.hbm [shape: bf16[32,96], index: 1, kind: input, shape index: {}]
  %s2 = inlined_call_operand.hbm [shape: f32[1,96], index: 2, kind: input, shape index: {}]
  %s3 = inlined_call_operand.hbm [shape: bf16[32,32], index: 3, kind: input, shape index: {}]
  %s4 = inlined_call_operand.hbm [shape: f32[1,32], index: 4, kind: input, shape index: {}]
  %s5 = inlined_call_operand.hbm [shape: f32[1,32], index: 5, kind: input, shape index: {}]
  %s6 = inlined_call_operand.hbm [shape: f32[1,32], index: 6, kind: input, shape index: {}]
  %s7 = inlined_call_operand.hbm [shape: bf16[32,64], index: 7, kind: input, shape index: {}]
  %s8 = inlined_call_operand.hbm [shape: f32[1,64], index: 8, kind: input, shape index: {}]
  %s9 = inlined_call_operand.hbm [shape: bf16[64,32], index: 9, kind: input, shape index: {}]
  %s10 = inlined_call_operand.hbm [shape: f32[1,32], index: 10, kind: input, shape index: {}]
  %s11 = inlined_call_operand.hbm [shape: f32[1,32], index: 11, kind: input, shape index: {}]
  %s12 = inlined_call_operand.hbm [shape: f32[1,32], index: 12, kind: input, shape index: {}]
  %s13 = inlined_call_operand.hbm [shape: f32[4,8,32], index: 13, kind: output, shape index: {}]
  %s14 = sld [smem:[#allocation0]]
  $region137: #{tpu_custom_call.1} parent=0
    _
  %s16 = ssub.s32 1, %s14
  %s17 = scalar_select 0, %s16, %s14
  $region1: #{tpu_custom_call.1} parent=0
    #allocation3 [shape = 'u8[16384]{0}', space=vmem, size = 0x4000, scoped, tag = 'input window, operand 0']
    #allocation4 [shape = 's32[2]{0}', space=sflag, size = 0x8, scoped, tag = 'scoped memory for tpu_custom_call.1']
    #allocation5 [shape = 's32[2]{0}', space=sflag, size = 0x8, scoped, tag = 'scoped memory for tpu_custom_call.1']
    #allocation6 [shape = 'u8[8192]{0}', space=vmem, size = 0x2000, scoped, tag = 'input window, operand 1, single buffered']
    #allocation7 [shape = 's32[1]{0}', space=sflag, size = 0x4, scoped, tag = 'scoped memory for tpu_custom_call.1']
    #allocation8 [shape = 'u8[512]{0}', space=vmem, size = 0x400, scoped, tag = 'input window, operand 2, single buffered']
    #allocation9 [shape = 'u8[8192]{0}', space=vmem, size = 0x2000, scoped, tag = 'input window, operand 3, single buffered']
    #allocation10 [shape = 's32[1]{0}', space=sflag, size = 0x4, scoped, tag = 'scoped memory for tpu_custom_call.1']
    #allocation11 [shape = 'u8[512]{0}', space=vmem, size = 0x400, scoped, tag = 'input window, operand 4, single buffered']
    #allocation12 [shape = 'u8[512]{0}', space=vmem, size = 0x400, scoped, tag = 'input window, operand 5, single buffered']
    #allocation13 [shape = 's32[1]{0}', space=sflag, size = 0x4, scoped, tag = 'scoped memory for tpu_custom_call.1']
    #allocation14 [shape = 'u8[512]{0}', space=vmem, size = 0x400, scoped, tag = 'input window, operand 6, single buffered']
    #allocation15 [shape = 'u8[8192]{0}', space=vmem, size = 0x2000, scoped, tag = 'input window, operand 7, single buffered']
    #allocation16 [shape = 's32[1]{0}', space=sflag, size = 0x4, scoped, tag = 'scoped memory for tpu_custom_call.1']
    #allocation17 [shape = 'u8[512]{0}', space=vmem, size = 0x400, scoped, tag = 'input window, operand 8, single buffered']
    #allocation18 [shape = 'u8[16384]{0}', space=vmem, size = 0x4000, scoped, tag = 'input window, operand 9, single buffered']
    #allocation19 [shape = 's32[1]{0}', space=sflag, size = 0x4, scoped, tag = 'scoped memory for tpu_custom_call.1']
    #allocation20 [shape = 'u8[512]{0}', space=vmem, size = 0x400, scoped, tag = 'input window, operand 10, single buffered']
    #allocation21 [shape = 'u8[512]{0}', space=vmem, size = 0x400, scoped, tag = 'input window, operand 11, single buffered']
    #allocation22 [shape = 's32[1]{0}', space=sflag, size = 0x4, scoped, tag = 'scoped memory for tpu_custom_call.1']
    #allocation23 [shape = 'u8[512]{0}', space=vmem, size = 0x400, scoped, tag = 'input window, operand 12, single buffered']
    #allocation24 [shape = 'u8[16384]{0}', space=vmem, size = 0x4000, scoped, tag = 'output window, operand 0']
    %18 = vsyncpa [#allocation4], 0
    %s19 = scalar_lea.sflag [#allocation4], 1
    %20 = vsyncpa %s19, 0
    %21 = vsyncpa [#allocation7], 0
    %22 = vsyncpa [#allocation10], 0
    %23 = vsyncpa [#allocation13], 0
    %24 = vsyncpa [#allocation16], 0
    %25 = vsyncpa [#allocation19], 0
    %26 = vsyncpa [#allocation22], 0
    %27 = vsyncpa [#allocation5], 0
    %s28 = scalar_lea.sflag [#allocation5], 1
    %29 = vsyncpa %s28, 0
    loop: start=0, step=1, limit=4
    $region2: #{tpu_custom_call.1} parent=1 // loop_pre_header
      _
    $region3: #{tpu_custom_call.1} parent=1 // loop_header
      %s31 = sphi 0, %s35
      %p32 = scmp.ge.s32.totalorder %s31, 4
      %s41 = sphi 0, %s43
      %s44 = sphi 0, %s41
      %s45 = sphi 0, %s44
      %s61 = sphi 0, %s45
      %s65 = sphi 0, %s65
      %s67 = sphi 0, %s65
      %s68 = sphi 0, %s67
      %s82 = sphi 0, %s68
      %s86 = sphi 0, %s86
      %s88 = sphi 0, %s86
      %s89 = sphi 0, %s88
      %s103 = sphi 0, %s89
      %s107 = sphi 0, %s107
      %s109 = sphi 0, %s107
      %s110 = sphi 0, %s109
      %s124 = sphi 0, %s110
      %s128 = sphi 0, %s128
      %s130 = sphi 0, %s128
      %s131 = sphi 0, %s130
      %s145 = sphi 0, %s131
      %s149 = sphi 0, %s149
      %s151 = sphi 0, %s149
      %s152 = sphi 0, %s151
      %s166 = sphi 0, %s152
      %s170 = sphi 0, %s170
      %s172 = sphi 0, %s170
      %s173 = sphi 0, %s172
      %s187 = sphi 0, %s173
      %s191 = sphi 0, %s191
      %s193 = sphi 0, %s191
      %s194 = sphi 0, %s193
      %s208 = sphi 0, %s194
      %s212 = sphi 0, %s212
      %s214 = sphi 0, %s212
      %s215 = sphi 0, %s214
      %s229 = sphi 0, %s215
      %s233 = sphi 0, %s233
      %s235 = sphi 0, %s233
      %s236 = sphi 0, %s235
      %s250 = sphi 0, %s236
      %s254 = sphi 0, %s254
      %s256 = sphi 0, %s254
      %s257 = sphi 0, %s256
      %s271 = sphi 0, %s257
      %s275 = sphi 0, %s275
      %s277 = sphi 0, %s275
      %s278 = sphi 0, %s277
      %s292 = sphi 0, %s278
      %s296 = sphi 0, %s296
      %s298 = sphi 0, %s296
      %s299 = sphi 0, %s298
      %s313 = sphi 0, %s299
      %s319 = sphi 0, %s321
      %s322 = sphi 0, %s319
      %s323 = sphi 0, %s322
      %s339 = sphi 0, %s323
    $region4: #{tpu_custom_call.1} parent=1 // loop_header_branch
      %34 = sbr.rel (%p32) target = $region8
    $region5: #{tpu_custom_call.1} parent=1 // loop_body
      %s36 = ssub.s32 %s31, 1
      %s37 = ssub.s32 %s31, 2
      %s38 = sadd.s32 %s31, 1
      %s39 = ssub.s32 %s31, %s38
      %p40 = scmp.eq.s32.totalorder %s39, 0
      %s42 = sadd.s32 %s41, 1
      %s43 = scalar_select %p40, %s41, %s42
      %p46 = pneg %p40
      %p47 = scmp.eq.s32.totalorder %s31, 1
      %p48 = por %p46, %p47
      %p49 = scmp.ne.s32.totalorder %s41, %s44
      %p50 = scmp.eq.s32.totalorder %s31, 0
      %p51 = por %p49, %p50
      %p52 = scmp.ne.s32.totalorder %s41, %s44
      %p53 = scmp.eq.s32.totalorder %s36, 1
      %p54 = por %p52, %p53
      %p55 = scmp.ne.s32.totalorder %s44, %s45
      %p56 = scmp.eq.s32.totalorder %s36, 0
      %p57 = por %p55, %p56
      %p58 = scmp.ne.s32.totalorder %s44, %s45
      %p59 = scmp.eq.s32.totalorder %s37, 1
      %p60 = por %p58, %p59
      %p62 = scmp.ne.s32.totalorder %s45, %s61
      %p63 = scmp.eq.s32.totalorder %s37, 0
      %p64 = por %p62, %p63
      %s66 = sadd.s32 %s65, 1
      %p69 = scmp.eq.s32.totalorder %s31, 1
      %p70 = scmp.ne.s32.totalorder %s65, %s67
      %p71 = scmp.eq.s32.totalorder %s31, 0
      %p72 = por %p70, %p71
      %p73 = scmp.ne.s32.totalorder %s65, %s67
      %p74 = scmp.eq.s32.totalorder %s36, 1
      %p75 = por %p73, %p74
      %p76 = scmp.ne.s32.totalorder %s67, %s68
      %p77 = scmp.eq.s32.totalorder %s36, 0
      %p78 = por %p76, %p77
      %p79 = scmp.ne.s32.totalorder %s67, %s68
      %p80 = scmp.eq.s32.totalorder %s37, 1
      %p81 = por %p79, %p80
      %p83 = scmp.ne.s32.totalorder %s68, %s82
      %p84 = scmp.eq.s32.totalorder %s37, 0
      %p85 = por %p83, %p84
      %s87 = sadd.s32 %s86, 1
      %p90 = scmp.eq.s32.totalorder %s31, 1
      %p91 = scmp.ne.s32.totalorder %s86, %s88
      %p92 = scmp.eq.s32.totalorder %s31, 0
      %p93 = por %p91, %p92
      %p94 = scmp.ne.s32.totalorder %s86, %s88
      %p95 = scmp.eq.s32.totalorder %s36, 1
      %p96 = por %p94, %p95
      %p97 = scmp.ne.s32.totalorder %s88, %s89
      %p98 = scmp.eq.s32.totalorder %s36, 0
      %p99 = por %p97, %p98
      %p100 = scmp.ne.s32.totalorder %s88, %s89
      %p101 = scmp.eq.s32.totalorder %s37, 1
      %p102 = por %p100, %p101
      %p104 = scmp.ne.s32.totalorder %s89, %s103
      %p105 = scmp.eq.s32.totalorder %s37, 0
      %p106 = por %p104, %p105
      %s108 = sadd.s32 %s107, 1
      %p111 = scmp.eq.s32.totalorder %s31, 1
      %p112 = scmp.ne.s32.totalorder %s107, %s109
      %p113 = scmp.eq.s32.totalorder %s31, 0
      %p114 = por %p112, %p113
      %p115 = scmp.ne.s32.totalorder %s107, %s109
      %p116 = scmp.eq.s32.totalorder %s36, 1
      %p117 = por %p115, %p116
      %p118 = scmp.ne.s32.totalorder %s109, %s110
      %p119 = scmp.eq.s32.totalorder %s36, 0
      %p120 = por %p118, %p119
      %p121 = scmp.ne.s32.totalorder %s109, %s110
      %p122 = scmp.eq.s32.totalorder %s37, 1
      %p123 = por %p121, %p122
      %p125 = scmp.ne.s32.totalorder %s110, %s124
      %p126 = scmp.eq.s32.totalorder %s37, 0
      %p127 = por %p125, %p126
      %s129 = sadd.s32 %s128, 1
      %p132 = scmp.eq.s32.totalorder %s31, 1
      %p133 = scmp.ne.s32.totalorder %s128, %s130
      %p134 = scmp.eq.s32.totalorder %s31, 0
      %p135 = por %p133, %p134
      %p136 = scmp.ne.s32.totalorder %s128, %s130
      %p137 = scmp.eq.s32.totalorder %s36, 1
      %p138 = por %p136, %p137
      %p139 = scmp.ne.s32.totalorder %s130, %s131
      %p140 = scmp.eq.s32.totalorder %s36, 0
      %p141 = por %p139, %p140
      %p142 = scmp.ne.s32.totalorder %s130, %s131
      %p143 = scmp.eq.s32.totalorder %s37, 1
      %p144 = por %p142, %p143
      %p146 = scmp.ne.s32.totalorder %s131, %s145
      %p147 = scmp.eq.s32.totalorder %s37, 0
      %p148 = por %p146, %p147
      %s150 = sadd.s32 %s149, 1
      %p153 = scmp.eq.s32.totalorder %s31, 1
      %p154 = scmp.ne.s32.totalorder %s149, %s151
      %p155 = scmp.eq.s32.totalorder %s31, 0
      %p156 = por %p154, %p155
      %p157 = scmp.ne.s32.totalorder %s149, %s151
      %p158 = scmp.eq.s32.totalorder %s36, 1
      %p159 = por %p157, %p158
      %p160 = scmp.ne.s32.totalorder %s151, %s152
      %p161 = scmp.eq.s32.totalorder %s36, 0
      %p162 = por %p160, %p161
      %p163 = scmp.ne.s32.totalorder %s151, %s152
      %p164 = scmp.eq.s32.totalorder %s37, 1
      %p165 = por %p163, %p164
      %p167 = scmp.ne.s32.totalorder %s152, %s166
      %p168 = scmp.eq.s32.totalorder %s37, 0
      %p169 = por %p167, %p168
      %s171 = sadd.s32 %s170, 1
      %p174 = scmp.eq.s32.totalorder %s31, 1
      %p175 = scmp.ne.s32.totalorder %s170, %s172
      %p176 = scmp.eq.s32.totalorder %s31, 0
      %p177 = por %p175, %p176
      %p178 = scmp.ne.s32.totalorder %s170, %s172
      %p179 = scmp.eq.s32.totalorder %s36, 1
      %p180 = por %p178, %p179
      %p181 = scmp.ne.s32.totalorder %s172, %s173
      %p182 = scmp.eq.s32.totalorder %s36, 0
      %p183 = por %p181, %p182
      %p184 = scmp.ne.s32.totalorder %s172, %s173
      %p185 = scmp.eq.s32.totalorder %s37, 1
      %p186 = por %p184, %p185
      %p188 = scmp.ne.s32.totalorder %s173, %s187
      %p189 = scmp.eq.s32.totalorder %s37, 0
      %p190 = por %p188, %p189
      %s192 = sadd.s32 %s191, 1
      %p195 = scmp.eq.s32.totalorder %s31, 1
      %p196 = scmp.ne.s32.totalorder %s191, %s193
      %p197 = scmp.eq.s32.totalorder %s31, 0
      %p198 = por %p196, %p197
      %p199 = scmp.ne.s32.totalorder %s191, %s193
      %p200 = scmp.eq.s32.totalorder %s36, 1
      %p201 = por %p199, %p200
      %p202 = scmp.ne.s32.totalorder %s193, %s194
      %p203 = scmp.eq.s32.totalorder %s36, 0
      %p204 = por %p202, %p203
      %p205 = scmp.ne.s32.totalorder %s193, %s194
      %p206 = scmp.eq.s32.totalorder %s37, 1
      %p207 = por %p205, %p206
      %p209 = scmp.ne.s32.totalorder %s194, %s208
      %p210 = scmp.eq.s32.totalorder %s37, 0
      %p211 = por %p209, %p210
      %s213 = sadd.s32 %s212, 1
      %p216 = scmp.eq.s32.totalorder %s31, 1
      %p217 = scmp.ne.s32.totalorder %s212, %s214
      %p218 = scmp.eq.s32.totalorder %s31, 0
      %p219 = por %p217, %p218
      %p220 = scmp.ne.s32.totalorder %s212, %s214
      %p221 = scmp.eq.s32.totalorder %s36, 1
      %p222 = por %p220, %p221
      %p223 = scmp.ne.s32.totalorder %s214, %s215
      %p224 = scmp.eq.s32.totalorder %s36, 0
      %p225 = por %p223, %p224
      %p226 = scmp.ne.s32.totalorder %s214, %s215
      %p227 = scmp.eq.s32.totalorder %s37, 1
      %p228 = por %p226, %p227
      %p230 = scmp.ne.s32.totalorder %s215, %s229
      %p231 = scmp.eq.s32.totalorder %s37, 0
      %p232 = por %p230, %p231
      %s234 = sadd.s32 %s233, 1
      %p237 = scmp.eq.s32.totalorder %s31, 1
      %p238 = scmp.ne.s32.totalorder %s233, %s235
      %p239 = scmp.eq.s32.totalorder %s31, 0
      %p240 = por %p238, %p239
      %p241 = scmp.ne.s32.totalorder %s233, %s235
      %p242 = scmp.eq.s32.totalorder %s36, 1
      %p243 = por %p241, %p242
      %p244 = scmp.ne.s32.totalorder %s235, %s236
      %p245 = scmp.eq.s32.totalorder %s36, 0
      %p246 = por %p244, %p245
      %p247 = scmp.ne.s32.totalorder %s235, %s236
      %p248 = scmp.eq.s32.totalorder %s37, 1
      %p249 = por %p247, %p248
      %p251 = scmp.ne.s32.totalorder %s236, %s250
      %p252 = scmp.eq.s32.totalorder %s37, 0
      %p253 = por %p251, %p252
      %s255 = sadd.s32 %s254, 1
      %p258 = scmp.eq.s32.totalorder %s31, 1
      %p259 = scmp.ne.s32.totalorder %s254, %s256
      %p260 = scmp.eq.s32.totalorder %s31, 0
      %p261 = por %p259, %p260
      %p262 = scmp.ne.s32.totalorder %s254, %s256
      %p263 = scmp.eq.s32.totalorder %s36, 1
      %p264 = por %p262, %p263
      %p265 = scmp.ne.s32.totalorder %s256, %s257
      %p266 = scmp.eq.s32.totalorder %s36, 0
      %p267 = por %p265, %p266
      %p268 = scmp.ne.s32.totalorder %s256, %s257
      %p269 = scmp.eq.s32.totalorder %s37, 1
      %p270 = por %p268, %p269
      %p272 = scmp.ne.s32.totalorder %s257, %s271
      %p273 = scmp.eq.s32.totalorder %s37, 0
      %p274 = por %p272, %p273
      %s276 = sadd.s32 %s275, 1
      %p279 = scmp.eq.s32.totalorder %s31, 1
      %p280 = scmp.ne.s32.totalorder %s275, %s277
      %p281 = scmp.eq.s32.totalorder %s31, 0
      %p282 = por %p280, %p281
      %p283 = scmp.ne.s32.totalorder %s275, %s277
      %p284 = scmp.eq.s32.totalorder %s36, 1
      %p285 = por %p283, %p284
      %p286 = scmp.ne.s32.totalorder %s277, %s278
      %p287 = scmp.eq.s32.totalorder %s36, 0
      %p288 = por %p286, %p287
      %p289 = scmp.ne.s32.totalorder %s277, %s278
      %p290 = scmp.eq.s32.totalorder %s37, 1
      %p291 = por %p289, %p290
      %p293 = scmp.ne.s32.totalorder %s278, %s292
      %p294 = scmp.eq.s32.totalorder %s37, 0
      %p295 = por %p293, %p294
      %s297 = sadd.s32 %s296, 1
      %p300 = scmp.eq.s32.totalorder %s31, 1
      %p301 = scmp.ne.s32.totalorder %s296, %s298
      %p302 = scmp.eq.s32.totalorder %s31, 0
      %p303 = por %p301, %p302
      %p304 = scmp.ne.s32.totalorder %s296, %s298
      %p305 = scmp.eq.s32.totalorder %s36, 1
      %p306 = por %p304, %p305
      %p307 = scmp.ne.s32.totalorder %s298, %s299
      %p308 = scmp.eq.s32.totalorder %s36, 0
      %p309 = por %p307, %p308
      %p310 = scmp.ne.s32.totalorder %s298, %s299
      %p311 = scmp.eq.s32.totalorder %s37, 1
      %p312 = por %p310, %p311
      %p314 = scmp.ne.s32.totalorder %s299, %s313
      %p315 = scmp.eq.s32.totalorder %s37, 0
      %p316 = por %p314, %p315
      %s317 = ssub.s32 %s31, %s38
      %p318 = scmp.eq.s32.totalorder %s317, 0
      %s320 = sadd.s32 %s319, 1
      %s321 = scalar_select %p318, %s319, %s320
      %p324 = pneg %p318
      %p325 = scmp.eq.s32.totalorder %s31, 1
      %p326 = por %p324, %p325
      %p327 = scmp.ne.s32.totalorder %s319, %s322
      %p328 = scmp.eq.s32.totalorder %s31, 0
      %p329 = por %p327, %p328
      %p330 = scmp.ne.s32.totalorder %s319, %s322
      %p331 = scmp.eq.s32.totalorder %s36, 1
      %p332 = por %p330, %p331
      %p333 = scmp.ne.s32.totalorder %s322, %s323
      %p334 = scmp.eq.s32.totalorder %s36, 0
      %p335 = por %p333, %p334
      %p336 = scmp.ne.s32.totalorder %s322, %s323
      %p337 = scmp.eq.s32.totalorder %s37, 1
      %p338 = por %p336, %p337
      %p340 = scmp.ne.s32.totalorder %s323, %s339
      %p341 = scmp.eq.s32.totalorder %s37, 0
      %p342 = por %p340, %p341
      %p343 = scmp.le.s32.totalorder 1, %s31
      %p344 = scmp.lt.s32.totalorder %s31, 3
      %p345 = pnand %p343, %p344
      %p346 = pneg %p345
      // Predicated region
      $region9: #{tpu_custom_call.1} parent=5 // pred_check
        _
      $region10: #{tpu_custom_call.1} parent=5 // pred_check_branch
        %348 = sbr.rel (%p345) target = $region12
      $region11: #{tpu_custom_call.1} parent=5 // pred_region
        %s349 = ssub.s32 %s31, 1
        // Predicated region
        $region13: #{tpu_custom_call.1} parent=11 // pred_check
          %p350 = pneg %p78
        $region14: #{tpu_custom_call.1} parent=11 // pred_check_branch
          %352 = sbr.rel (%p350) target = $region16
        $region15: #{tpu_custom_call.1} parent=11 // pred_region
          %s354 = ssub.s32 256, 256
          %355 = vsyncadd [#allocation7], %s354
          %s356 = sshll.u32 [#allocation6], 4
          %s357 = int_to_ptr.vmem [resolvable:$true] %s356
          %362 = dma.hbm_to_vmem [thread:$0]  %s1, 256, %s357, [#allocation7], 64, 64, 4
        $region16: #{tpu_custom_call.1} parent=11 // pred_fallthru
          _
        // Predicated region
        $region17: #{tpu_custom_call.1} parent=11 // pred_check
          %p363 = pneg %p99
        $region18: #{tpu_custom_call.1} parent=11 // pred_check_branch
          %365 = sbr.rel (%p363) target = $region20
        $region19: #{tpu_custom_call.1} parent=11 // pred_region
          %s367 = ssub.s32 16, 16
          %368 = vsyncadd [#allocation7], %s367
          %s370 = sshll.u32 [#allocation8], 4
          %s371 = int_to_ptr.vmem [resolvable:$true] %s370
          %373 = dma.hbm_to_vmem [thread:$0]  %s2, 16, %s371, [#allocation7]
        $region20: #{tpu_custom_call.1} parent=11 // pred_fallthru
          _
        // Predicated region
        $region21: #{tpu_custom_call.1} parent=11 // pred_check
          %p374 = pneg %p120
        $region22: #{tpu_custom_call.1} parent=11 // pred_check_branch
          %376 = sbr.rel (%p374) target = $region24
        $region23: #{tpu_custom_call.1} parent=11 // pred_region
          %s378 = ssub.s32 256, 256
          %379 = vsyncadd [#allocation10], %s378
          %s380 = sshll.u32 [#allocation9], 4
          %s381 = int_to_ptr.vmem [resolvable:$true] %s380
          %386 = dma.hbm_to_vmem [thread:$0]  %s3, 256, %s381, [#allocation10], 64, 64, 4
        $region24: #{tpu_custom_call.1} parent=11 // pred_fallthru
          _
        // Predicated region
        $region25: #{tpu_custom_call.1} parent=11 // pred_check
          %p387 = pneg %p141
        $region26: #{tpu_custom_call.1} parent=11 // pred_check_branch
          %389 = sbr.rel (%p387) target = $region28
        $region27: #{tpu_custom_call.1} parent=11 // pred_region
          %s391 = ssub.s32 16, 16
          %392 = vsyncadd [#allocation10], %s391
          %s394 = sshll.u32 [#allocation11], 4
          %s395 = int_to_ptr.vmem [resolvable:$true] %s394
          %397 = dma.hbm_to_vmem [thread:$0]  %s4, 16, %s395, [#allocation10]
        $region28: #{tpu_custom_call.1} parent=11 // pred_fallthru
          _
        // Predicated region
        $region29: #{tpu_custom_call.1} parent=11 // pred_check
          %p398 = pneg %p162
        $region30: #{tpu_custom_call.1} parent=11 // pred_check_branch
          %400 = sbr.rel (%p398) target = $region32
        $region31: #{tpu_custom_call.1} parent=11 // pred_region
          %s402 = ssub.s32 16, 16
          %403 = vsyncadd [#allocation13], %s402
          %s405 = sshll.u32 [#allocation12], 4
          %s406 = int_to_ptr.vmem [resolvable:$true] %s405
          %408 = dma.hbm_to_vmem [thread:$0]  %s5, 16, %s406, [#allocation13]
        $region32: #{tpu_custom_call.1} parent=11 // pred_fallthru
          _
        // Predicated region
        $region33: #{tpu_custom_call.1} parent=11 // pred_check
          %p409 = pneg %p183
        $region34: #{tpu_custom_call.1} parent=11 // pred_check_branch
          %411 = sbr.rel (%p409) target = $region36
        $region35: #{tpu_custom_call.1} parent=11 // pred_region
          %s413 = ssub.s32 16, 16
          %414 = vsyncadd [#allocation13], %s413
          %s416 = sshll.u32 [#allocation14], 4
          %s417 = int_to_ptr.vmem [resolvable:$true] %s416
          %419 = dma.hbm_to_vmem [thread:$0]  %s6, 16, %s417, [#allocation13]
        $region36: #{tpu_custom_call.1} parent=11 // pred_fallthru
          _
        // Predicated region
        $region37: #{tpu_custom_call.1} parent=11 // pred_check
          %p420 = pneg %p204
        $region38: #{tpu_custom_call.1} parent=11 // pred_check_branch
          %422 = sbr.rel (%p420) target = $region40
        $region39: #{tpu_custom_call.1} parent=11 // pred_region
          %s424 = ssub.s32 256, 256
          %425 = vsyncadd [#allocation16], %s424
          %s426 = sshll.u32 [#allocation15], 4
          %s427 = int_to_ptr.vmem [resolvable:$true] %s426
          %432 = dma.hbm_to_vmem [thread:$0]  %s7, 256, %s427, [#allocation16], 64, 64, 4
        $region40: #{tpu_custom_call.1} parent=11 // pred_fallthru
          _
        // Predicated region
        $region41: #{tpu_custom_call.1} parent=11 // pred_check
          %p433 = pneg %p225
        $region42: #{tpu_custom_call.1} parent=11 // pred_check_branch
          %435 = sbr.rel (%p433) target = $region44
        $region43: #{tpu_custom_call.1} parent=11 // pred_region
          %s437 = ssub.s32 16, 16
          %438 = vsyncadd [#allocation16], %s437
          %s440 = sshll.u32 [#allocation17], 4
          %s441 = int_to_ptr.vmem [resolvable:$true] %s440
          %443 = dma.hbm_to_vmem [thread:$0]  %s8, 16, %s441, [#allocation16]
        $region44: #{tpu_custom_call.1} parent=11 // pred_fallthru
          _
        // Predicated region
        $region45: #{tpu_custom_call.1} parent=11 // pred_check
          %p444 = pneg %p246
        $region46: #{tpu_custom_call.1} parent=11 // pred_check_branch
          %446 = sbr.rel (%p444) target = $region48
        $region47: #{tpu_custom_call.1} parent=11 // pred_region
          %s448 = ssub.s32 512, 512
          %449 = vsyncadd [#allocation19], %s448
          %s450 = sshll.u32 [#allocation18], 4
          %s451 = int_to_ptr.vmem [resolvable:$true] %s450
          %456 = dma.hbm_to_vmem [thread:$0]  %s9, 512, %s451, [#allocation19], 64, 64, 4
        $region48: #{tpu_custom_call.1} parent=11 // pred_fallthru
          _
        // Predicated region
        $region49: #{tpu_custom_call.1} parent=11 // pred_check
          %p457 = pneg %p267
        $region50: #{tpu_custom_call.1} parent=11 // pred_check_branch
          %459 = sbr.rel (%p457) target = $region52
        $region51: #{tpu_custom_call.1} parent=11 // pred_region
          %s461 = ssub.s32 16, 16
          %462 = vsyncadd [#allocation19], %s461
          %s464 = sshll.u32 [#allocation20], 4
          %s465 = int_to_ptr.vmem [resolvable:$true] %s464
          %467 = dma.hbm_to_vmem [thread:$0]  %s10, 16, %s465, [#allocation19]
        $region52: #{tpu_custom_call.1} parent=11 // pred_fallthru
          _
        // Predicated region
        $region53: #{tpu_custom_call.1} parent=11 // pred_check
          %p468 = pneg %p288
        $region54: #{tpu_custom_call.1} parent=11 // pred_check_branch
          %470 = sbr.rel (%p468) target = $region56
        $region55: #{tpu_custom_call.1} parent=11 // pred_region
          %s472 = ssub.s32 16, 16
          %473 = vsyncadd [#allocation22], %s472
          %s475 = sshll.u32 [#allocation21], 4
          %s476 = int_to_ptr.vmem [resolvable:$true] %s475
          %478 = dma.hbm_to_vmem [thread:$0]  %s11, 16, %s476, [#allocation22]
        $region56: #{tpu_custom_call.1} parent=11 // pred_fallthru
          _
        // Predicated region
        $region57: #{tpu_custom_call.1} parent=11 // pred_check
          %p479 = pneg %p309
        $region58: #{tpu_custom_call.1} parent=11 // pred_check_branch
          %481 = sbr.rel (%p479) target = $region60
        $region59: #{tpu_custom_call.1} parent=11 // pred_region
          %s483 = ssub.s32 16, 16
          %484 = vsyncadd [#allocation22], %s483
          %s486 = sshll.u32 [#allocation23], 4
          %s487 = int_to_ptr.vmem [resolvable:$true] %s486
          %489 = dma.hbm_to_vmem [thread:$0]  %s12, 16, %s487, [#allocation22]
        $region60: #{tpu_custom_call.1} parent=11 // pred_fallthru
          _
      $region12: #{tpu_custom_call.1} parent=5 // pred_fallthru
        _
      %p490 = scmp.lt.s32.totalorder %s31, 2
      // Predicated region
      $region61: #{tpu_custom_call.1} parent=5 // pred_check
        %p491 = pneg %p490
      $region62: #{tpu_custom_call.1} parent=5 // pred_check_branch
        %493 = sbr.rel (%p491) target = $region64
      $region63: #{tpu_custom_call.1} parent=5 // pred_region
        // Predicated region
        $region65: #{tpu_custom_call.1} parent=63 // pred_check
          %p494 = pneg %p51
        $region66: #{tpu_custom_call.1} parent=63 // pred_check_branch
          %496 = sbr.rel (%p494) target = $region68
        $region67: #{tpu_custom_call.1} parent=63 // pred_region
          %s497 = sand.u32 %s41, 1
          %s498 = scalar_lea.sflag [#allocation4], %s497
          %s499 = sand.u32 %s41, 1
          %s500 = smul.addr %s499, 16
          %s501 = scalar_lea.vmem [#allocation3], %s500
          %s502 = smul.u32 2, %s31
          %s504 = ssub.s32 256, 256
          %505 = vsyncadd %s498, %s504
          %s506 = smul.addr %s502, 128
          %s507 = scalar_lea.hbm %s0, %s506
          %s508 = sshll.u32 %s501, 4
          %s509 = int_to_ptr.vmem [resolvable:$true] %s508
          %514 = dma.hbm_to_vmem [thread:$0]  %s507, 256, %s509, %s498, 128, 128, 8
        $region68: #{tpu_custom_call.1} parent=63 // pred_fallthru
          _
      $region64: #{tpu_custom_call.1} parent=5 // pred_fallthru
        _
      %p515 = scmp.le.s32.totalorder 1, %s31
      %p516 = scmp.lt.s32.totalorder %s31, 3
      %p517 = pnand %p515, %p516
      %p518 = pneg %p517
      // Predicated region
      $region69: #{tpu_custom_call.1} parent=5 // pred_check
        _
      $region70: #{tpu_custom_call.1} parent=5 // pred_check_branch
        %520 = sbr.rel (%p517) target = $region72
      $region71: #{tpu_custom_call.1} parent=5 // pred_region
        %s521 = ssub.s32 %s31, 1
        %s522 = sand.u32 %s44, 1
        %s523 = scalar_lea.sflag [#allocation4], %s522
        %s524 = sand.u32 %s44, 1
        %s525 = smul.addr %s524, 16
        %s526 = scalar_lea.vmem [#allocation3], %s525
        // Predicated region
        $region73: #{tpu_custom_call.1} parent=71 // pred_check
          %p527 = pneg %p57
        $region74: #{tpu_custom_call.1} parent=71 // pred_check_branch
          %529 = sbr.rel (%p527) target = $region76
        $region75: #{tpu_custom_call.1} parent=71 // pred_region
          %530 = dma.done %s523, 256
        $region76: #{tpu_custom_call.1} parent=71 // pred_fallthru
          _
        // Predicated region
        $region77: #{tpu_custom_call.1} parent=71 // pred_check
          %p531 = pneg %p78
        $region78: #{tpu_custom_call.1} parent=71 // pred_check_branch
          %533 = sbr.rel (%p531) target = $region80
        $region79: #{tpu_custom_call.1} parent=71 // pred_region
          %534 = dma.done [#allocation7], 256
        $region80: #{tpu_custom_call.1} parent=71 // pred_fallthru
          _
        // Predicated region
        $region81: #{tpu_custom_call.1} parent=71 // pred_check
          %p535 = pneg %p99
        $region82: #{tpu_custom_call.1} parent=71 // pred_check_branch
          %537 = sbr.rel (%p535) target = $region84
        $region83: #{tpu_custom_call.1} parent=71 // pred_region
          %538 = dma.done [#allocation7], 16
        $region84: #{tpu_custom_call.1} parent=71 // pred_fallthru
          _
        // Predicated region
        $region85: #{tpu_custom_call.1} parent=71 // pred_check
          %p539 = pneg %p120
        $region86: #{tpu_custom_call.1} parent=71 // pred_check_branch
          %541 = sbr.rel (%p539) target = $region88
        $region87: #{tpu_custom_call.1} parent=71 // pred_region
          %542 = dma.done [#allocation10], 256
        $region88: #{tpu_custom_call.1} parent=71 // pred_fallthru
          _
        // Predicated region
        $region89: #{tpu_custom_call.1} parent=71 // pred_check
          %p543 = pneg %p141
        $region90: #{tpu_custom_call.1} parent=71 // pred_check_branch
          %545 = sbr.rel (%p543) target = $region92
        $region91: #{tpu_custom_call.1} parent=71 // pred_region
          %546 = dma.done [#allocation10], 16
        $region92: #{tpu_custom_call.1} parent=71 // pred_fallthru
          _
        // Predicated region
        $region93: #{tpu_custom_call.1} parent=71 // pred_check
          %p547 = pneg %p162
        $region94: #{tpu_custom_call.1} parent=71 // pred_check_branch
          %549 = sbr.rel (%p547) target = $region96
        $region95: #{tpu_custom_call.1} parent=71 // pred_region
          %550 = dma.done [#allocation13], 16
        $region96: #{tpu_custom_call.1} parent=71 // pred_fallthru
          _
        // Predicated region
        $region97: #{tpu_custom_call.1} parent=71 // pred_check
          %p551 = pneg %p183
        $region98: #{tpu_custom_call.1} parent=71 // pred_check_branch
          %553 = sbr.rel (%p551) target = $region100
        $region99: #{tpu_custom_call.1} parent=71 // pred_region
          %554 = dma.done [#allocation13], 16
        $region100: #{tpu_custom_call.1} parent=71 // pred_fallthru
          _
        // Predicated region
        $region101: #{tpu_custom_call.1} parent=71 // pred_check
          %p555 = pneg %p204
        $region102: #{tpu_custom_call.1} parent=71 // pred_check_branch
          %557 = sbr.rel (%p555) target = $region104
        $region103: #{tpu_custom_call.1} parent=71 // pred_region
          %558 = dma.done [#allocation16], 256
        $region104: #{tpu_custom_call.1} parent=71 // pred_fallthru
          _
        // Predicated region
        $region105: #{tpu_custom_call.1} parent=71 // pred_check
          %p559 = pneg %p225
        $region106: #{tpu_custom_call.1} parent=71 // pred_check_branch
          %561 = sbr.rel (%p559) target = $region108
        $region107: #{tpu_custom_call.1} parent=71 // pred_region
          %562 = dma.done [#allocation16], 16
        $region108: #{tpu_custom_call.1} parent=71 // pred_fallthru
          _
        // Predicated region
        $region109: #{tpu_custom_call.1} parent=71 // pred_check
          %p563 = pneg %p246
        $region110: #{tpu_custom_call.1} parent=71 // pred_check_branch
          %565 = sbr.rel (%p563) target = $region112
        $region111: #{tpu_custom_call.1} parent=71 // pred_region
          %566 = dma.done [#allocation19], 512
        $region112: #{tpu_custom_call.1} parent=71 // pred_fallthru
          _
        // Predicated region
        $region113: #{tpu_custom_call.1} parent=71 // pred_check
          %p567 = pneg %p267
        $region114: #{tpu_custom_call.1} parent=71 // pred_check_branch
          %569 = sbr.rel (%p567) target = $region116
        $region115: #{tpu_custom_call.1} parent=71 // pred_region
          %570 = dma.done [#allocation19], 16
        $region116: #{tpu_custom_call.1} parent=71 // pred_fallthru
          _
        // Predicated region
        $region117: #{tpu_custom_call.1} parent=71 // pred_check
          %p571 = pneg %p288
        $region118: #{tpu_custom_call.1} parent=71 // pred_check_branch
          %573 = sbr.rel (%p571) target = $region120
        $region119: #{tpu_custom_call.1} parent=71 // pred_region
          %574 = dma.done [#allocation22], 16
        $region120: #{tpu_custom_call.1} parent=71 // pred_fallthru
          _
        // Predicated region
        $region121: #{tpu_custom_call.1} parent=71 // pred_check
          %p575 = pneg %p309
        $region122: #{tpu_custom_call.1} parent=71 // pred_check_branch
          %577 = sbr.rel (%p575) target = $region124
        $region123: #{tpu_custom_call.1} parent=71 // pred_region
          %578 = dma.done [#allocation22], 16
        $region124: #{tpu_custom_call.1} parent=71 // pred_fallthru
          _
        %s579 = sand.u32 %s44, 1
        %s580 = scalar_lea.sflag [#allocation4], %s579
        %s581 = sand.u32 %s44, 1
        %s582 = smul.addr %s581, 16
        %s583 = scalar_lea.vmem [#allocation3], %s582
        %p584 = pneg %p57
        %p585 = pneg %p54
        %p586 = pneg %p78
        %p587 = pneg %p75
        %p588 = pneg %p99
        %p589 = pneg %p96
        %p590 = pneg %p120
        %p591 = pneg %p117
        %p592 = pneg %p141
        %p593 = pneg %p138
        %p594 = pneg %p162
        %p595 = pneg %p159
        %p596 = pneg %p183
        %p597 = pneg %p180
        %p598 = pneg %p204
        %p599 = pneg %p201
        %p600 = pneg %p225
        %p601 = pneg %p222
        %p602 = pneg %p246
        %p603 = pneg %p243
        %p604 = pneg %p267
        %p605 = pneg %p264
        %p606 = pneg %p288
        %p607 = pneg %p285
        %p608 = pneg %p309
        %p609 = pneg %p306
        %p610 = pneg %p335
        %p611 = pneg %p332
        %s612 = sand.u32 %s322, 1
        %s613 = scalar_lea.sflag [#allocation5], %s612
        %s614 = sand.u32 %s322, 1
        %s615 = smul.addr %s614, 16
        %s616 = scalar_lea.vmem [#allocation24], %s615
        %s617 = smul.u32 2, %s36
        %s618 = smul.u32 2, %s36
        %v620 = vld [vmem:[%s526] sm:$0xff]
        %v621 = vld [vmem:[%s526 + $0x8] sm:$0xff]
        %v622 = vpack.c.bf16 %v621, %v620
        %v623 = vld [vmem:[#allocation6] sm:$0xf]
        %v624 = vld [vmem:[#allocation6 + $0x4] sm:$0xf]
        %v625 = vld [vmem:[#allocation6 + $0x8] sm:$0xf]
        %v626 = vld [vmem:[#allocation6 + $0xc] sm:$0xf]
        %v627 = vld [vmem:[#allocation8] sm:$0x1]
        %v629 = vlaneseq
        %v630 = vshrl.u32 %v629, 7
        %v631 = vsub.s32 0, %v630
        %v632 = vrot.slane %v627, %v631
        %v638 = vunpack.c.l.b16 %v623
        %v639 = vunpack.c.l.b16 %v624
        %v640 = vunpack.c.l.b16 %v625
        %v641 = vunpack.c.l.b16 %v626
        %v642 = vpack.c.b16 %v639, %v638
        %v643 = vpack.c.b16 %v641, %v640
        %vm646 = vcmask 261120
        %v648 = vsel %vm646, %v622, 0
        %650 = vmatprep.subr.bf16.mxu0 0
        %651 = vmatpush1.bf16.msra.mxu0 %v642
        %652 = vmatprep.subr.bf16.mxu0 0
        %653 = vmatpush1.bf16.msra.mxu0 %v643
        %654 = vmatprep.subr.bf16.mxu0 0
        %655 = vmatpush1.bf16.msra.mxu0 0
        %656 = vmatprep.subr.bf16.mxu0 0
        %657 = vmatpush1.bf16.msra.mxu0 0
        %658 = vmatprep.subr.bf16.mxu0 0
        %659 = vmatpush1.bf16.msra.mxu0 0
        %660 = vmatprep.subr.bf16.mxu0 0
        %661 = vmatpush1.bf16.msra.mxu0 0
        %662 = vmatprep.subr.bf16.mxu0 0
        %663 = vmatpush1.bf16.msra.mxu0 0
        %664 = vmatprep.subr.bf16.mxu0 0
        %665 = vmatpush1.bf16.msra.mxu0 0
        %666 = vmatprep.subr.bf16.mxu0 0
        %667 = vmatpush1.bf16.msra.mxu0 0
        %668 = vmatprep.subr.bf16.mxu0 0
        %669 = vmatpush1.bf16.msra.mxu0 0
        %670 = vmatprep.subr.bf16.mxu0 0
        %671 = vmatpush1.bf16.msra.mxu0 0
        %672 = vmatprep.subr.bf16.mxu0 0
        %673 = vmatpush1.bf16.msra.mxu0 0
        %674 = vmatprep.subr.bf16.mxu0 0
        %675 = vmatpush1.bf16.msra.mxu0 0
        %676 = vmatprep.subr.bf16.mxu0 0
        %677 = vmatpush1.bf16.msra.mxu0 0
        %678 = vmatprep.subr.bf16.mxu0 0
        %679 = vmatpush1.bf16.msra.mxu0 0
        %680 = vmatprep.subr.bf16.mxu0 0
        %681 = vmatpush1.bf16.msra.mxu0 0
        %682 = vmatprep.mubr.bf16.mxu0 0
        %683 = vmatmul.mubr.bf16.gmra.mrb[0].mxu0 %v648
        %v684 = vpop.f32.mrb[0].mxu0
        %v685 = vadd.f32 %v632, %v684
        %v686 = vpop.f32.mrb[0].mxu0
        %v687 = vpop.f32.mrb[0].mxu0
        %v688 = vadd.f32 %v632, %v687
        %v689 = vpop.f32.mrb[0].mxu0
        %690 = vdwg.mxu0
        %v691 = vpack.c.bf16 %v688, %v685
        %v693 = vunpack.c.l.b16 %v691
        %v694 = vunpack.c.h.b16 %v691
        %v695 = vpack.c.b16 %v693, %v693
        %v696 = vpack.c.b16 %v694, %v694
        %697 = vrot.lane.b32.xlu0 %v695, 96
        %v698 = vpop.permute.xlu0 %697
        %vm699 = vcmask 64512
        %v701 = vsel %vm699, %v695, 0
        %v704 = vsel %vm699, %v698, 0
        %706 = vmatprep.subr.bf16.mxu0 0
        %707 = vmatpush1.bf16.xpose.msra.mxu0 %v704
        %708 = vmatprep.subr.bf16.mxu0 0
        %709 = vmatpush1.bf16.xpose.msra.mxu0 0
        %710 = vmatprep.subr.bf16.mxu0 0
        %711 = vmatpush1.bf16.xpose.msra.mxu0 0
        %712 = vmatprep.subr.bf16.mxu0 0
        %713 = vmatpush1.bf16.xpose.msra.mxu0 0
        %714 = vmatprep.subr.bf16.mxu0 0
        %715 = vmatpush1.bf16.xpose.msra.mxu0 0
        %716 = vmatprep.subr.bf16.mxu0 0
        %717 = vmatpush1.bf16.xpose.msra.mxu0 0
        %718 = vmatprep.subr.bf16.mxu0 0
        %719 = vmatpush1.bf16.xpose.msra.mxu0 0
        %720 = vmatprep.subr.bf16.mxu0 0
        %721 = vmatpush1.bf16.xpose.msra.mxu0 0
        %722 = vmatprep.subr.bf16.mxu0 0
        %723 = vmatpush1.bf16.xpose.msra.mxu0 0
        %724 = vmatprep.subr.bf16.mxu0 0
        %725 = vmatpush1.bf16.xpose.msra.mxu0 0
        %726 = vmatprep.subr.bf16.mxu0 0
        %727 = vmatpush1.bf16.xpose.msra.mxu0 0
        %728 = vmatprep.subr.bf16.mxu0 0
        %729 = vmatpush1.bf16.xpose.msra.mxu0 0
        %730 = vmatprep.subr.bf16.mxu0 0
        %731 = vmatpush1.bf16.xpose.msra.mxu0 0
        %732 = vmatprep.subr.bf16.mxu0 0
        %733 = vmatpush1.bf16.xpose.msra.mxu0 0
        %734 = vmatprep.subr.bf16.mxu0 0
        %735 = vmatpush1.bf16.xpose.msra.mxu0 0
        %736 = vmatprep.subr.bf16.mxu0 0
        %737 = vmatpush1.bf16.xpose.msra.mxu0 0
        %738 = vmatprep.mubr.bf16.mxu0 0
        %739 = vmatmul.mubr.bf16.gmra.mrb[0].mxu0 %v701
        %v740 = vpop.f32.mrb[0].mxu0
        %v741 = vadd.f32 0.0, %v740
        %v742 = vpop.f32.mrb[0].mxu0
        %v743 = vpop.f32.mrb[0].mxu0
        %v744 = vpop.f32.mrb[0].mxu0
        %745 = vdwg.mxu0
        %746 = vrot.lane.b32.xlu0 %v696, 96
        %v747 = vpop.permute.xlu0 %746
        %v749 = vsel %vm699, %v696, 0
        %v752 = vsel %vm699, %v747, 0
        %754 = vmatprep.subr.bf16.mxu0 0
        %755 = vmatpush1.bf16.xpose.msra.mxu0 %v752
        %756 = vmatprep.subr.bf16.mxu0 0
        %757 = vmatpush1.bf16.xpose.msra.mxu0 0
        %758 = vmatprep.subr.bf16.mxu0 0
        %759 = vmatpush1.bf16.xpose.msra.mxu0 0
        %760 = vmatprep.subr.bf16.mxu0 0
        %761 = vmatpush1.bf16.xpose.msra.mxu0 0
        %762 = vmatprep.subr.bf16.mxu0 0
        %763 = vmatpush1.bf16.xpose.msra.mxu0 0
        %764 = vmatprep.subr.bf16.mxu0 0
        %765 = vmatpush1.bf16.xpose.msra.mxu0 0
        %766 = vmatprep.subr.bf16.mxu0 0
        %767 = vmatpush1.bf16.xpose.msra.mxu0 0
        %768 = vmatprep.subr.bf16.mxu0 0
        %769 = vmatpush1.bf16.xpose.msra.mxu0 0
        %770 = vmatprep.subr.bf16.mxu0 0
        %771 = vmatpush1.bf16.xpose.msra.mxu0 0
        %772 = vmatprep.subr.bf16.mxu0 0
        %773 = vmatpush1.bf16.xpose.msra.mxu0 0
        %774 = vmatprep.subr.bf16.mxu0 0
        %775 = vmatpush1.bf16.xpose.msra.mxu0 0
        %776 = vmatprep.subr.bf16.mxu0 0
        %777 = vmatpush1.bf16.xpose.msra.mxu0 0
        %778 = vmatprep.subr.bf16.mxu0 0
        %779 = vmatpush1.bf16.xpose.msra.mxu0 0
        %780 = vmatprep.subr.bf16.mxu0 0
        %781 = vmatpush1.bf16.xpose.msra.mxu0 0
        %782 = vmatprep.subr.bf16.mxu0 0
        %783 = vmatpush1.bf16.xpose.msra.mxu0 0
        %784 = vmatprep.subr.bf16.mxu0 0
        %785 = vmatpush1.bf16.xpose.msra.mxu0 0
        %786 = vmatprep.mubr.bf16.mxu0 0
        %787 = vmatmul.mubr.bf16.gmra.mrb[0].mxu0 %v749
        %v788 = vpop.f32.mrb[0].mxu0
        %v789 = vadd.f32 0.0, %v788
        %v790 = vpop.f32.mrb[0].mxu0
        %v791 = vpop.f32.mrb[0].mxu0
        %v792 = vpop.f32.mrb[0].mxu0
        %793 = vdwg.mxu0
        %v794 = vsel %vm699, %v741, -inf
        %795 = vmax.xlane.f32.xlu0 %v794
        %v796 = vpop.xlane.xlu0 %795
        %v797 = vsel %vm699, %v789, -inf
        %798 = vmax.xlane.f32.xlu0 %v797
        %v799 = vpop.xlane.xlu0 %798
        %v800 = vsub.f32 %v741, %v796
        %v801 = vsub.f32 %v789, %v799
        %v802 = vmul.f32 %v800, 1.442695
        %v803 = vpow.pop %v802
        %v804 = vmul.f32 %v801, 1.442695
        %v805 = vpow.pop %v804
        %v806 = vsel %vm699, %v803, 0.0
        %807 = vadd.xlane.f32.xlu0 %v806
        %v808 = vpop.xlane.xlu0 %807
        %v809 = vsel %vm699, %v805, 0.0
        %810 = vadd.xlane.f32.xlu0 %v809
        %v811 = vpop.xlane.xlu0 %810
        %v812 = vrcp.pop %v808
        %v813 = vrcp.pop %v811
        %v814 = vmul.f32 %v803, %v812
        %v815 = vmul.f32 %v805, %v813
        %v816 = vpack.c.bf16 %v814, %v814
        %v817 = vpack.c.bf16 %v815, %v815
        %818 = vrot.lane.b32.xlu0 %v695, 64
        %v819 = vpop.permute.xlu0 %818
        %v821 = vsel %vm699, %v816, 0
        %vm823 = vcmask 1043456
        %v825 = vsel %vm823, %v819, 0
        %827 = vmatprep.subr.bf16.mxu0 0
        %828 = vmatpush1.bf16.msra.mxu0 %v825
        %829 = vmatprep.subr.bf16.mxu0 0
        %830 = vmatpush1.bf16.msra.mxu0 0
        %831 = vmatprep.subr.bf16.mxu0 0
        %832 = vmatpush1.bf16.msra.mxu0 0
        %833 = vmatprep.subr.bf16.mxu0 0
        %834 = vmatpush1.bf16.msra.mxu0 0
        %835 = vmatprep.subr.bf16.mxu0 0
        %836 = vmatpush1.bf16.msra.mxu0 0
        %837 = vmatprep.subr.bf16.mxu0 0
        %838 = vmatpush1.bf16.msra.mxu0 0
        %839 = vmatprep.subr.bf16.mxu0 0
        %840 = vmatpush1.bf16.msra.mxu0 0
        %841 = vmatprep.subr.bf16.mxu0 0
        %842 = vmatpush1.bf16.msra.mxu0 0
        %843 = vmatprep.subr.bf16.mxu0 0
        %844 = vmatpush1.bf16.msra.mxu0 0
        %845 = vmatprep.subr.bf16.mxu0 0
        %846 = vmatpush1.bf16.msra.mxu0 0
        %847 = vmatprep.subr.bf16.mxu0 0
        %848 = vmatpush1.bf16.msra.mxu0 0
        %849 = vmatprep.subr.bf16.mxu0 0
        %850 = vmatpush1.bf16.msra.mxu0 0
        %851 = vmatprep.subr.bf16.mxu0 0
        %852 = vmatpush1.bf16.msra.mxu0 0
        %853 = vmatprep.subr.bf16.mxu0 0
        %854 = vmatpush1.bf16.msra.mxu0 0
        %855 = vmatprep.subr.bf16.mxu0 0
        %856 = vmatpush1.bf16.msra.mxu0 0
        %857 = vmatprep.subr.bf16.mxu0 0
        %858 = vmatpush1.bf16.msra.mxu0 0
        %859 = vmatprep.mubr.bf16.mxu0 0
        %860 = vmatmul.mubr.bf16.gmra.mrb[0].mxu0 %v821
        %v861 = vpop.f32.mrb[0].mxu0
        %v862 = vadd.f32 0.0, %v861
        %v863 = vpop.f32.mrb[0].mxu0
        %v864 = vpop.f32.mrb[0].mxu0
        %v865 = vpop.f32.mrb[0].mxu0
        %866 = vdwg.mxu0
        %867 = vrot.lane.b32.xlu0 %v696, 64
        %v868 = vpop.permute.xlu0 %867
        %v870 = vsel %vm699, %v817, 0
        %v873 = vsel %vm823, %v868, 0
        %875 = vmatprep.subr.bf16.mxu0 0
        %876 = vmatpush1.bf16.msra.mxu0 %v873
        %877 = vmatprep.subr.bf16.mxu0 0
        %878 = vmatpush1.bf16.msra.mxu0 0
        %879 = vmatprep.subr.bf16.mxu0 0
        %880 = vmatpush1.bf16.msra.mxu0 0
        %881 = vmatprep.subr.bf16.mxu0 0
        %882 = vmatpush1.bf16.msra.mxu0 0
        %883 = vmatprep.subr.bf16.mxu0 0
        %884 = vmatpush1.bf16.msra.mxu0 0
        %885 = vmatprep.subr.bf16.mxu0 0
        %886 = vmatpush1.bf16.msra.mxu0 0
        %887 = vmatprep.subr.bf16.mxu0 0
        %888 = vmatpush1.bf16.msra.mxu0 0
        %889 = vmatprep.subr.bf16.mxu0 0
        %890 = vmatpush1.bf16.msra.mxu0 0
        %891 = vmatprep.subr.bf16.mxu0 0
        %892 = vmatpush1.bf16.msra.mxu0 0
        %893 = vmatprep.subr.bf16.mxu0 0
        %894 = vmatpush1.bf16.msra.mxu0 0
        %895 = vmatprep.subr.bf16.mxu0 0
        %896 = vmatpush1.bf16.msra.mxu0 0
        %897 = vmatprep.subr.bf16.mxu0 0
        %898 = vmatpush1.bf16.msra.mxu0 0
        %899 = vmatprep.subr.bf16.mxu0 0
        %900 = vmatpush1.bf16.msra.mxu0 0
        %901 = vmatprep.subr.bf16.mxu0 0
        %902 = vmatpush1.bf16.msra.mxu0 0
        %903 = vmatprep.subr.bf16.mxu0 0
        %904 = vmatpush1.bf16.msra.mxu0 0
        %905 = vmatprep.subr.bf16.mxu0 0
        %906 = vmatpush1.bf16.msra.mxu0 0
        %907 = vmatprep.mubr.bf16.mxu0 0
        %908 = vmatmul.mubr.bf16.gmra.mrb[0].mxu0 %v870
        %v909 = vpop.f32.mrb[0].mxu0
        %v910 = vadd.f32 0.0, %v909
        %v911 = vpop.f32.mrb[0].mxu0
        %v912 = vpop.f32.mrb[0].mxu0
        %v913 = vpop.f32.mrb[0].mxu0
        %914 = vdwg.mxu0
        %v915 = vpack.c.bf16 %v910, %v862
        %916 = vst.msk [vmem:[#allocation2] sm:$0xff] %vm699, %v915
        %917 = vrot.lane.b32.xlu0 %v695, 120
        %v918 = vpop.permute.xlu0 %917
        %919 = vrot.lane.b32.xlu0 %v695, 88
        %v920 = vpop.permute.xlu0 %919
        %v922 = vsel %vm699, %v918, 0
        %v925 = vsel %vm699, %v920, 0
        %927 = vmatprep.subr.bf16.mxu0 0
        %928 = vmatpush1.bf16.xpose.msra.mxu0 %v925
        %929 = vmatprep.subr.bf16.mxu0 0
        %930 = vmatpush1.bf16.xpose.msra.mxu0 0
        %931 = vmatprep.subr.bf16.mxu0 0
        %932 = vmatpush1.bf16.xpose.msra.mxu0 0
        %933 = vmatprep.subr.bf16.mxu0 0
        %934 = vmatpush1.bf16.xpose.msra.mxu0 0
        %935 = vmatprep.subr.bf16.mxu0 0
        %936 = vmatpush1.bf16.xpose.msra.mxu0 0
        %937 = vmatprep.subr.bf16.mxu0 0
        %938 = vmatpush1.bf16.xpose.msra.mxu0 0
        %939 = vmatprep.subr.bf16.mxu0 0
        %940 = vmatpush1.bf16.xpose.msra.mxu0 0
        %941 = vmatprep.subr.bf16.mxu0 0
        %942 = vmatpush1.bf16.xpose.msra.mxu0 0
        %943 = vmatprep.subr.bf16.mxu0 0
        %944 = vmatpush1.bf16.xpose.msra.mxu0 0
        %945 = vmatprep.subr.bf16.mxu0 0
        %946 = vmatpush1.bf16.xpose.msra.mxu0 0
        %947 = vmatprep.subr.bf16.mxu0 0
        %948 = vmatpush1.bf16.xpose.msra.mxu0 0
        %949 = vmatprep.subr.bf16.mxu0 0
        %950 = vmatpush1.bf16.xpose.msra.mxu0 0
        %951 = vmatprep.subr.bf16.mxu0 0
        %952 = vmatpush1.bf16.xpose.msra.mxu0 0
        %953 = vmatprep.subr.bf16.mxu0 0
        %954 = vmatpush1.bf16.xpose.msra.mxu0 0
        %955 = vmatprep.subr.bf16.mxu0 0
        %956 = vmatpush1.bf16.xpose.msra.mxu0 0
        %957 = vmatprep.subr.bf16.mxu0 0
        %958 = vmatpush1.bf16.xpose.msra.mxu0 0
        %959 = vmatprep.mubr.bf16.mxu0 0
        %960 = vmatmul.mubr.bf16.gmra.mrb[0].mxu0 %v922
        %v961 = vpop.f32.mrb[0].mxu0
        %v962 = vadd.f32 0.0, %v961
        %v963 = vpop.f32.mrb[0].mxu0
        %v964 = vpop.f32.mrb[0].mxu0
        %v965 = vpop.f32.mrb[0].mxu0
        %966 = vdwg.mxu0
        %967 = vrot.lane.b32.xlu0 %v696, 120
        %v968 = vpop.permute.xlu0 %967
        %969 = vrot.lane.b32.xlu0 %v696, 88
        %v970 = vpop.permute.xlu0 %969
        %v972 = vsel %vm699, %v968, 0
        %v975 = vsel %vm699, %v970, 0
        %977 = vmatprep.subr.bf16.mxu0 0
        %978 = vmatpush1.bf16.xpose.msra.mxu0 %v975
        %979 = vmatprep.subr.bf16.mxu0 0
        %980 = vmatpush1.bf16.xpose.msra.mxu0 0
        %981 = vmatprep.subr.bf16.mxu0 0
        %982 = vmatpush1.bf16.xpose.msra.mxu0 0
        %983 = vmatprep.subr.bf16.mxu0 0
        %984 = vmatpush1.bf16.xpose.msra.mxu0 0
        %985 = vmatprep.subr.bf16.mxu0 0
        %986 = vmatpush1.bf16.xpose.msra.mxu0 0
        %987 = vmatprep.subr.bf16.mxu0 0
        %988 = vmatpush1.bf16.xpose.msra.mxu0 0
        %989 = vmatprep.subr.bf16.mxu0 0
        %990 = vmatpush1.bf16.xpose.msra.mxu0 0
        %991 = vmatprep.subr.bf16.mxu0 0
        %992 = vmatpush1.bf16.xpose.msra.mxu0 0
        %993 = vmatprep.subr.bf16.mxu0 0
        %994 = vmatpush1.bf16.xpose.msra.mxu0 0
        %995 = vmatprep.subr.bf16.mxu0 0
        %996 = vmatpush1.bf16.xpose.msra.mxu0 0
        %997 = vmatprep.subr.bf16.mxu0 0
        %998 = vmatpush1.bf16.xpose.msra.mxu0 0
        %999 = vmatprep.subr.bf16.mxu0 0
        %1000 = vmatpush1.bf16.xpose.msra.mxu0 0
        %1001 = vmatprep.subr.bf16.mxu0 0
        %1002 = vmatpush1.bf16.xpose.msra.mxu0 0
        %1003 = vmatprep.subr.bf16.mxu0 0
        %1004 = vmatpush1.bf16.xpose.msra.mxu0 0
        %1005 = vmatprep.subr.bf16.mxu0 0
        %1006 = vmatpush1.bf16.xpose.msra.mxu0 0
        %1007 = vmatprep.subr.bf16.mxu0 0
        %1008 = vmatpush1.bf16.xpose.msra.mxu0 0
        %1009 = vmatprep.mubr.bf16.mxu0 0
        %1010 = vmatmul.mubr.bf16.gmra.mrb[0].mxu0 %v972
        %v1011 = vpop.f32.mrb[0].mxu0
        %v1012 = vadd.f32 0.0, %v1011
        %v1013 = vpop.f32.mrb[0].mxu0
        %v1014 = vpop.f32.mrb[0].mxu0
        %v1015 = vpop.f32.mrb[0].mxu0
        %1016 = vdwg.mxu0
        %v1017 = vsel %vm699, %v962, -inf
        %1018 = vmax.xlane.f32.xlu0 %v1017
        %v1019 = vpop.xlane.xlu0 %1018
        %v1020 = vsel %vm699, %v1012, -inf
        %1021 = vmax.xlane.f32.xlu0 %v1020
        %v1022 = vpop.xlane.xlu0 %1021
        %v1023 = vsub.f32 %v962, %v1019
        %v1024 = vsub.f32 %v1012, %v1022
        %v1025 = vmul.f32 %v1023, 1.442695
        %v1026 = vpow.pop %v1025
        %v1027 = vmul.f32 %v1024, 1.442695
        %v1028 = vpow.pop %v1027
        %v1029 = vsel %vm699, %v1026, 0.0
        %1030 = vadd.xlane.f32.xlu0 %v1029
        %v1031 = vpop.xlane.xlu0 %1030
        %v1032 = vsel %vm699, %v1028, 0.0
        %1033 = vadd.xlane.f32.xlu0 %v1032
        %v1034 = vpop.xlane.xlu0 %1033
        %v1035 = vrcp.pop %v1031
        %v1036 = vrcp.pop %v1034
        %v1037 = vmul.f32 %v1026, %v1035
        %v1038 = vmul.f32 %v1028, %v1036
        %v1039 = vpack.c.bf16 %v1037, %v1037
        %v1040 = vpack.c.bf16 %v1038, %v1038
        %1041 = vrot.lane.b32.xlu0 %v695, 56
        %v1042 = vpop.permute.xlu0 %1041
        %v1044 = vsel %vm699, %v1039, 0
        %v1047 = vsel %vm823, %v1042, 0
        %1049 = vmatprep.subr.bf16.mxu0 0
        %1050 = vmatpush1.bf16.msra.mxu0 %v1047
        %1051 = vmatprep.subr.bf16.mxu0 0
        %1052 = vmatpush1.bf16.msra.mxu0 0
        %1053 = vmatprep.subr.bf16.mxu0 0
        %1054 = vmatpush1.bf16.msra.mxu0 0
        %1055 = vmatprep.subr.bf16.mxu0 0
        %1056 = vmatpush1.bf16.msra.mxu0 0
        %1057 = vmatprep.subr.bf16.mxu0 0
        %1058 = vmatpush1.bf16.msra.mxu0 0
        %1059 = vmatprep.subr.bf16.mxu0 0
        %1060 = vmatpush1.bf16.msra.mxu0 0
        %1061 = vmatprep.subr.bf16.mxu0 0
        %1062 = vmatpush1.bf16.msra.mxu0 0
        %1063 = vmatprep.subr.bf16.mxu0 0
        %1064 = vmatpush1.bf16.msra.mxu0 0
        %1065 = vmatprep.subr.bf16.mxu0 0
        %1066 = vmatpush1.bf16.msra.mxu0 0
        %1067 = vmatprep.subr.bf16.mxu0 0
        %1068 = vmatpush1.bf16.msra.mxu0 0
        %1069 = vmatprep.subr.bf16.mxu0 0
        %1070 = vmatpush1.bf16.msra.mxu0 0
        %1071 = vmatprep.subr.bf16.mxu0 0
        %1072 = vmatpush1.bf16.msra.mxu0 0
        %1073 = vmatprep.subr.bf16.mxu0 0
        %1074 = vmatpush1.bf16.msra.mxu0 0
        %1075 = vmatprep.subr.bf16.mxu0 0
        %1076 = vmatpush1.bf16.msra.mxu0 0
        %1077 = vmatprep.subr.bf16.mxu0 0
        %1078 = vmatpush1.bf16.msra.mxu0 0
        %1079 = vmatprep.subr.bf16.mxu0 0
        %1080 = vmatpush1.bf16.msra.mxu0 0
        %1081 = vmatprep.mubr.bf16.mxu0 0
        %1082 = vmatmul.mubr.bf16.gmra.mrb[0].mxu0 %v1044
        %v1083 = vpop.f32.mrb[0].mxu0
        %v1084 = vadd.f32 0.0, %v1083
        %v1085 = vpop.f32.mrb[0].mxu0
        %v1086 = vpop.f32.mrb[0].mxu0
        %v1087 = vpop.f32.mrb[0].mxu0
        %1088 = vdwg.mxu0
        %1089 = vrot.lane.b32.xlu0 %v696, 56
        %v1090 = vpop.permute.xlu0 %1089
        %v1092 = vsel %vm699, %v1040, 0
        %v1095 = vsel %vm823, %v1090, 0
        %1097 = vmatprep.subr.bf16.mxu0 0
        %1098 = vmatpush1.bf16.msra.mxu0 %v1095
        %1099 = vmatprep.subr.bf16.mxu0 0
        %1100 = vmatpush1.bf16.msra.mxu0 0
        %1101 = vmatprep.subr.bf16.mxu0 0
        %1102 = vmatpush1.bf16.msra.mxu0 0
        %1103 = vmatprep.subr.bf16.mxu0 0
        %1104 = vmatpush1.bf16.msra.mxu0 0
        %1105 = vmatprep.subr.bf16.mxu0 0
        %1106 = vmatpush1.bf16.msra.mxu0 0
        %1107 = vmatprep.subr.bf16.mxu0 0
        %1108 = vmatpush1.bf16.msra.mxu0 0
        %1109 = vmatprep.subr.bf16.mxu0 0
        %1110 = vmatpush1.bf16.msra.mxu0 0
        %1111 = vmatprep.subr.bf16.mxu0 0
        %1112 = vmatpush1.bf16.msra.mxu0 0
        %1113 = vmatprep.subr.bf16.mxu0 0
        %1114 = vmatpush1.bf16.msra.mxu0 0
        %1115 = vmatprep.subr.bf16.mxu0 0
        %1116 = vmatpush1.bf16.msra.mxu0 0
        %1117 = vmatprep.subr.bf16.mxu0 0
        %1118 = vmatpush1.bf16.msra.mxu0 0
        %1119 = vmatprep.subr.bf16.mxu0 0
        %1120 = vmatpush1.bf16.msra.mxu0 0
        %1121 = vmatprep.subr.bf16.mxu0 0
        %1122 = vmatpush1.bf16.msra.mxu0 0
        %1123 = vmatprep.subr.bf16.mxu0 0
        %1124 = vmatpush1.bf16.msra.mxu0 0
        %1125 = vmatprep.subr.bf16.mxu0 0
        %1126 = vmatpush1.bf16.msra.mxu0 0
        %1127 = vmatprep.subr.bf16.mxu0 0
        %1128 = vmatpush1.bf16.msra.mxu0 0
        %1129 = vmatprep.mubr.bf16.mxu0 0
        %1130 = vmatmul.mubr.bf16.gmra.mrb[0].mxu0 %v1092
        %v1131 = vpop.f32.mrb[0].mxu0
        %v1132 = vadd.f32 0.0, %v1131
        %v1133 = vpop.f32.mrb[0].mxu0
        %v1134 = vpop.f32.mrb[0].mxu0
        %v1135 = vpop.f32.mrb[0].mxu0
        %1136 = vdwg.mxu0
        %v1137 = vpack.c.bf16 %v1132, %v1084
        %1139 = vrot.lane.b32.xlu0 %v1137, 8
        %v1140 = vpop.permute.xlu0 %1139
        %vm1142 = vcmask 130112
        %1143 = vst.msk [vmem:[#allocation2] sm:$0xff] %vm1142, %v1140
        %1144 = vrot.lane.b32.xlu0 %v695, 112
        %v1145 = vpop.permute.xlu0 %1144
        %1146 = vrot.lane.b32.xlu0 %v695, 80
        %v1147 = vpop.permute.xlu0 %1146
        %v1149 = vsel %vm699, %v1145, 0
        %v1152 = vsel %vm699, %v1147, 0
        %1154 = vmatprep.subr.bf16.mxu0 0
        %1155 = vmatpush1.bf16.xpose.msra.mxu0 %v1152
        %1156 = vmatprep.subr.bf16.mxu0 0
        %1157 = vmatpush1.bf16.xpose.msra.mxu0 0
        %1158 = vmatprep.subr.bf16.mxu0 0
        %1159 = vmatpush1.bf16.xpose.msra.mxu0 0
        %1160 = vmatprep.subr.bf16.mxu0 0
        %1161 = vmatpush1.bf16.xpose.msra.mxu0 0
        %1162 = vmatprep.subr.bf16.mxu0 0
        %1163 = vmatpush1.bf16.xpose.msra.mxu0 0
        %1164 = vmatprep.subr.bf16.mxu0 0
        %1165 = vmatpush1.bf16.xpose.msra.mxu0 0
        %1166 = vmatprep.subr.bf16.mxu0 0
        %1167 = vmatpush1.bf16.xpose.msra.mxu0 0
        %1168 = vmatprep.subr.bf16.mxu0 0
        %1169 = vmatpush1.bf16.xpose.msra.mxu0 0
        %1170 = vmatprep.subr.bf16.mxu0 0
        %1171 = vmatpush1.bf16.xpose.msra.mxu0 0
        %1172 = vmatprep.subr.bf16.mxu0 0
        %1173 = vmatpush1.bf16.xpose.msra.mxu0 0
        %1174 = vmatprep.subr.bf16.mxu0 0
        %1175 = vmatpush1.bf16.xpose.msra.mxu0 0
        %1176 = vmatprep.subr.bf16.mxu0 0
        %1177 = vmatpush1.bf16.xpose.msra.mxu0 0
        %1178 = vmatprep.subr.bf16.mxu0 0
        %1179 = vmatpush1.bf16.xpose.msra.mxu0 0
        %1180 = vmatprep.subr.bf16.mxu0 0
        %1181 = vmatpush1.bf16.xpose.msra.mxu0 0
        %1182 = vmatprep.subr.bf16.mxu0 0
        %1183 = vmatpush1.bf16.xpose.msra.mxu0 0
        %1184 = vmatprep.subr.bf16.mxu0 0
        %1185 = vmatpush1.bf16.xpose.msra.mxu0 0
        %1186 = vmatprep.mubr.bf16.mxu0 0
        %1187 = vmatmul.mubr.bf16.gmra.mrb[0].mxu0 %v1149
        %v1188 = vpop.f32.mrb[0].mxu0
        %v1189 = vadd.f32 0.0, %v1188
        %v1190 = vpop.f32.mrb[0].mxu0
        %v1191 = vpop.f32.mrb[0].mxu0
        %v1192 = vpop.f32.mrb[0].mxu0
        %1193 = vdwg.mxu0
        %1194 = vrot.lane.b32.xlu0 %v696, 112
        %v1195 = vpop.permute.xlu0 %1194
        %1196 = vrot.lane.b32.xlu0 %v696, 80
        %v1197 = vpop.permute.xlu0 %1196
        %v1199 = vsel %vm699, %v1195, 0
        %v1202 = vsel %vm699, %v1197, 0
        %1204 = vmatprep.subr.bf16.mxu0 0
        %1205 = vmatpush1.bf16.xpose.msra.mxu0 %v1202
        %1206 = vmatprep.subr.bf16.mxu0 0
        %1207 = vmatpush1.bf16.xpose.msra.mxu0 0
        %1208 = vmatprep.subr.bf16.mxu0 0
        %1209 = vmatpush1.bf16.xpose.msra.mxu0 0
        %1210 = vmatprep.subr.bf16.mxu0 0
        %1211 = vmatpush1.bf16.xpose.msra.mxu0 0
        %1212 = vmatprep.subr.bf16.mxu0 0
        %1213 = vmatpush1.bf16.xpose.msra.mxu0 0
        %1214 = vmatprep.subr.bf16.mxu0 0
        %1215 = vmatpush1.bf16.xpose.msra.mxu0 0
        %1216 = vmatprep.subr.bf16.mxu0 0
        %1217 = vmatpush1.bf16.xpose.msra.mxu0 0
        %1218 = vmatprep.subr.bf16.mxu0 0
        %1219 = vmatpush1.bf16.xpose.msra.mxu0 0
        %1220 = vmatprep.subr.bf16.mxu0 0
        %1221 = vmatpush1.bf16.xpose.msra.mxu0 0
        %1222 = vmatprep.subr.bf16.mxu0 0
        %1223 = vmatpush1.bf16.xpose.msra.mxu0 0
        %1224 = vmatprep.subr.bf16.mxu0 0
        %1225 = vmatpush1.bf16.xpose.msra.mxu0 0
        %1226 = vmatprep.subr.bf16.mxu0 0
        %1227 = vmatpush1.bf16.xpose.msra.mxu0 0
        %1228 = vmatprep.subr.bf16.mxu0 0
        %1229 = vmatpush1.bf16.xpose.msra.mxu0 0
        %1230 = vmatprep.subr.bf16.mxu0 0
        %1231 = vmatpush1.bf16.xpose.msra.mxu0 0
        %1232 = vmatprep.subr.bf16.mxu0 0
        %1233 = vmatpush1.bf16.xpose.msra.mxu0 0
        %1234 = vmatprep.subr.bf16.mxu0 0
        %1235 = vmatpush1.bf16.xpose.msra.mxu0 0
        %1236 = vmatprep.mubr.bf16.mxu0 0
        %1237 = vmatmul.mubr.bf16.gmra.mrb[0].mxu0 %v1199
        %v1238 = vpop.f32.mrb[0].mxu0
        %v1239 = vadd.f32 0.0, %v1238
        %v1240 = vpop.f32.mrb[0].mxu0
        %v1241 = vpop.f32.mrb[0].mxu0
        %v1242 = vpop.f32.mrb[0].mxu0
        %1243 = vdwg.mxu0
        %v1244 = vsel %vm699, %v1189, -inf
        %1245 = vmax.xlane.f32.xlu0 %v1244
        %v1246 = vpop.xlane.xlu0 %1245
        %v1247 = vsel %vm699, %v1239, -inf
        %1248 = vmax.xlane.f32.xlu0 %v1247
        %v1249 = vpop.xlane.xlu0 %1248
        %v1250 = vsub.f32 %v1189, %v1246
        %v1251 = vsub.f32 %v1239, %v1249
        %v1252 = vmul.f32 %v1250, 1.442695
        %v1253 = vpow.pop %v1252
        %v1254 = vmul.f32 %v1251, 1.442695
        %v1255 = vpow.pop %v1254
        %v1256 = vsel %vm699, %v1253, 0.0
        %1257 = vadd.xlane.f32.xlu0 %v1256
        %v1258 = vpop.xlane.xlu0 %1257
        %v1259 = vsel %vm699, %v1255, 0.0
        %1260 = vadd.xlane.f32.xlu0 %v1259
        %v1261 = vpop.xlane.xlu0 %1260
        %v1262 = vrcp.pop %v1258
        %v1263 = vrcp.pop %v1261
        %v1264 = vmul.f32 %v1253, %v1262
        %v1265 = vmul.f32 %v1255, %v1263
        %v1266 = vpack.c.bf16 %v1264, %v1264
        %v1267 = vpack.c.bf16 %v1265, %v1265
        %1268 = vrot.lane.b32.xlu0 %v695, 48
        %v1269 = vpop.permute.xlu0 %1268
        %v1271 = vsel %vm699, %v1266, 0
        %v1274 = vsel %vm823, %v1269, 0
        %1276 = vmatprep.subr.bf16.mxu0 0
        %1277 = vmatpush1.bf16.msra.mxu0 %v1274
        %1278 = vmatprep.subr.bf16.mxu0 0
        %1279 = vmatpush1.bf16.msra.mxu0 0
        %1280 = vmatprep.subr.bf16.mxu0 0
        %1281 = vmatpush1.bf16.msra.mxu0 0
        %1282 = vmatprep.subr.bf16.mxu0 0
        %1283 = vmatpush1.bf16.msra.mxu0 0
        %1284 = vmatprep.subr.bf16.mxu0 0
        %1285 = vmatpush1.bf16.msra.mxu0 0
        %1286 = vmatprep.subr.bf16.mxu0 0
        %1287 = vmatpush1.bf16.msra.mxu0 0
        %1288 = vmatprep.subr.bf16.mxu0 0
        %1289 = vmatpush1.bf16.msra.mxu0 0
        %1290 = vmatprep.subr.bf16.mxu0 0
        %1291 = vmatpush1.bf16.msra.mxu0 0
        %1292 = vmatprep.subr.bf16.mxu0 0
        %1293 = vmatpush1.bf16.msra.mxu0 0
        %1294 = vmatprep.subr.bf16.mxu0 0
        %1295 = vmatpush1.bf16.msra.mxu0 0
        %1296 = vmatprep.subr.bf16.mxu0 0
        %1297 = vmatpush1.bf16.msra.mxu0 0
        %1298 = vmatprep.subr.bf16.mxu0 0
        %1299 = vmatpush1.bf16.msra.mxu0 0
        %1300 = vmatprep.subr.bf16.mxu0 0
        %1301 = vmatpush1.bf16.msra.mxu0 0
        %1302 = vmatprep.subr.bf16.mxu0 0
        %1303 = vmatpush1.bf16.msra.mxu0 0
        %1304 = vmatprep.subr.bf16.mxu0 0
        %1305 = vmatpush1.bf16.msra.mxu0 0
        %1306 = vmatprep.subr.bf16.mxu0 0
        %1307 = vmatpush1.bf16.msra.mxu0 0
        %1308 = vmatprep.mubr.bf16.mxu0 0
        %1309 = vmatmul.mubr.bf16.gmra.mrb[0].mxu0 %v1271
        %v1310 = vpop.f32.mrb[0].mxu0
        %v1311 = vadd.f32 0.0, %v1310
        %v1312 = vpop.f32.mrb[0].mxu0
        %v1313 = vpop.f32.mrb[0].mxu0
        %v1314 = vpop.f32.mrb[0].mxu0
        %1315 = vdwg.mxu0
        %1316 = vrot.lane.b32.xlu0 %v696, 48
        %v1317 = vpop.permute.xlu0 %1316
        %v1319 = vsel %vm699, %v1267, 0
        %v1322 = vsel %vm823, %v1317, 0
        %1324 = vmatprep.subr.bf16.mxu0 0
        %1325 = vmatpush1.bf16.msra.mxu0 %v1322
        %1326 = vmatprep.subr.bf16.mxu0 0
        %1327 = vmatpush1.bf16.msra.mxu0 0
        %1328 = vmatprep.subr.bf16.mxu0 0
        %1329 = vmatpush1.bf16.msra.mxu0 0
        %1330 = vmatprep.subr.bf16.mxu0 0
        %1331 = vmatpush1.bf16.msra.mxu0 0
        %1332 = vmatprep.subr.bf16.mxu0 0
        %1333 = vmatpush1.bf16.msra.mxu0 0
        %1334 = vmatprep.subr.bf16.mxu0 0
        %1335 = vmatpush1.bf16.msra.mxu0 0
        %1336 = vmatprep.subr.bf16.mxu0 0
        %1337 = vmatpush1.bf16.msra.mxu0 0
        %1338 = vmatprep.subr.bf16.mxu0 0
        %1339 = vmatpush1.bf16.msra.mxu0 0
        %1340 = vmatprep.subr.bf16.mxu0 0
        %1341 = vmatpush1.bf16.msra.mxu0 0
        %1342 = vmatprep.subr.bf16.mxu0 0
        %1343 = vmatpush1.bf16.msra.mxu0 0
        %1344 = vmatprep.subr.bf16.mxu0 0
        %1345 = vmatpush1.bf16.msra.mxu0 0
        %1346 = vmatprep.subr.bf16.mxu0 0
        %1347 = vmatpush1.bf16.msra.mxu0 0
        %1348 = vmatprep.subr.bf16.mxu0 0
        %1349 = vmatpush1.bf16.msra.mxu0 0
        %1350 = vmatprep.subr.bf16.mxu0 0
        %1351 = vmatpush1.bf16.msra.mxu0 0
        %1352 = vmatprep.subr.bf16.mxu0 0
        %1353 = vmatpush1.bf16.msra.mxu0 0
        %1354 = vmatprep.subr.bf16.mxu0 0
        %1355 = vmatpush1.bf16.msra.mxu0 0
        %1356 = vmatprep.mubr.bf16.mxu0 0
        %1357 = vmatmul.mubr.bf16.gmra.mrb[0].mxu0 %v1319
        %v1358 = vpop.f32.mrb[0].mxu0
        %v1359 = vadd.f32 0.0, %v1358
        %v1360 = vpop.f32.mrb[0].mxu0
        %v1361 = vpop.f32.mrb[0].mxu0
        %v1362 = vpop.f32.mrb[0].mxu0
        %1363 = vdwg.mxu0
        %v1364 = vpack.c.bf16 %v1359, %v1311
        %1366 = vrot.lane.b32.xlu0 %v1364, 16
        %v1367 = vpop.permute.xlu0 %1366
        %vm1369 = vcmask 195712
        %1370 = vst.msk [vmem:[#allocation2] sm:$0xff] %vm1369, %v1367
        %1371 = vrot.lane.b32.xlu0 %v695, 104
        %v1372 = vpop.permute.xlu0 %1371
        %1373 = vrot.lane.b32.xlu0 %v695, 72
        %v1374 = vpop.permute.xlu0 %1373
        %v1376 = vsel %vm699, %v1372, 0
        %v1379 = vsel %vm699, %v1374, 0
        %1381 = vmatprep.subr.bf16.mxu0 0
        %1382 = vmatpush1.bf16.xpose.msra.mxu0 %v1379
        %1383 = vmatprep.subr.bf16.mxu0 0
        %1384 = vmatpush1.bf16.xpose.msra.mxu0 0
        %1385 = vmatprep.subr.bf16.mxu0 0
        %1386 = vmatpush1.bf16.xpose.msra.mxu0 0
        %1387 = vmatprep.subr.bf16.mxu0 0
        %1388 = vmatpush1.bf16.xpose.msra.mxu0 0
        %1389 = vmatprep.subr.bf16.mxu0 0
        %1390 = vmatpush1.bf16.xpose.msra.mxu0 0
        %1391 = vmatprep.subr.bf16.mxu0 0
        %1392 = vmatpush1.bf16.xpose.msra.mxu0 0
        %1393 = vmatprep.subr.bf16.mxu0 0
        %1394 = vmatpush1.bf16.xpose.msra.mxu0 0
        %1395 = vmatprep.subr.bf16.mxu0 0
        %1396 = vmatpush1.bf16.xpose.msra.mxu0 0
        %1397 = vmatprep.subr.bf16.mxu0 0
        %1398 = vmatpush1.bf16.xpose.msra.mxu0 0
        %1399 = vmatprep.subr.bf16.mxu0 0
        %1400 = vmatpush1.bf16.xpose.msra.mxu0 0
        %1401 = vmatprep.subr.bf16.mxu0 0
        %1402 = vmatpush1.bf16.xpose.msra.mxu0 0
        %1403 = vmatprep.subr.bf16.mxu0 0
        %1404 = vmatpush1.bf16.xpose.msra.mxu0 0
        %1405 = vmatprep.subr.bf16.mxu0 0
        %1406 = vmatpush1.bf16.xpose.msra.mxu0 0
        %1407 = vmatprep.subr.bf16.mxu0 0
        %1408 = vmatpush1.bf16.xpose.msra.mxu0 0
        %1409 = vmatprep.subr.bf16.mxu0 0
        %1410 = vmatpush1.bf16.xpose.msra.mxu0 0
        %1411 = vmatprep.subr.bf16.mxu0 0
        %1412 = vmatpush1.bf16.xpose.msra.mxu0 0
        %1413 = vmatprep.mubr.bf16.mxu0 0
        %1414 = vmatmul.mubr.bf16.gmra.mrb[0].mxu0 %v1376
        %v1415 = vpop.f32.mrb[0].mxu0
        %v1416 = vadd.f32 0.0, %v1415
        %v1417 = vpop.f32.mrb[0].mxu0
        %v1418 = vpop.f32.mrb[0].mxu0
        %v1419 = vpop.f32.mrb[0].mxu0
        %1420 = vdwg.mxu0
        %1421 = vrot.lane.b32.xlu0 %v696, 104
        %v1422 = vpop.permute.xlu0 %1421
        %1423 = vrot.lane.b32.xlu0 %v696, 72
        %v1424 = vpop.permute.xlu0 %1423
        %v1426 = vsel %vm699, %v1422, 0
        %v1429 = vsel %vm699, %v1424, 0
        %1431 = vmatprep.subr.bf16.mxu0 0
        %1432 = vmatpush1.bf16.xpose.msra.mxu0 %v1429
        %1433 = vmatprep.subr.bf16.mxu0 0
        %1434 = vmatpush1.bf16.xpose.msra.mxu0 0
        %1435 = vmatprep.subr.bf16.mxu0 0
        %1436 = vmatpush1.bf16.xpose.msra.mxu0 0
        %1437 = vmatprep.subr.bf16.mxu0 0
        %1438 = vmatpush1.bf16.xpose.msra.mxu0 0
        %1439 = vmatprep.subr.bf16.mxu0 0
        %1440 = vmatpush1.bf16.xpose.msra.mxu0 0
        %1441 = vmatprep.subr.bf16.mxu0 0
        %1442 = vmatpush1.bf16.xpose.msra.mxu0 0
        %1443 = vmatprep.subr.bf16.mxu0 0
        %1444 = vmatpush1.bf16.xpose.msra.mxu0 0
        %1445 = vmatprep.subr.bf16.mxu0 0
        %1446 = vmatpush1.bf16.xpose.msra.mxu0 0
        %1447 = vmatprep.subr.bf16.mxu0 0
        %1448 = vmatpush1.bf16.xpose.msra.mxu0 0
        %1449 = vmatprep.subr.bf16.mxu0 0
        %1450 = vmatpush1.bf16.xpose.msra.mxu0 0
        %1451 = vmatprep.subr.bf16.mxu0 0
        %1452 = vmatpush1.bf16.xpose.msra.mxu0 0
        %1453 = vmatprep.subr.bf16.mxu0 0
        %1454 = vmatpush1.bf16.xpose.msra.mxu0 0
        %1455 = vmatprep.subr.bf16.mxu0 0
        %1456 = vmatpush1.bf16.xpose.msra.mxu0 0
        %1457 = vmatprep.subr.bf16.mxu0 0
        %1458 = vmatpush1.bf16.xpose.msra.mxu0 0
        %1459 = vmatprep.subr.bf16.mxu0 0
        %1460 = vmatpush1.bf16.xpose.msra.mxu0 0
        %1461 = vmatprep.subr.bf16.mxu0 0
        %1462 = vmatpush1.bf16.xpose.msra.mxu0 0
        %1463 = vmatprep.mubr.bf16.mxu0 0
        %1464 = vmatmul.mubr.bf16.gmra.mrb[0].mxu0 %v1426
        %v1465 = vpop.f32.mrb[0].mxu0
        %v1466 = vadd.f32 0.0, %v1465
        %v1467 = vpop.f32.mrb[0].mxu0
        %v1468 = vpop.f32.mrb[0].mxu0
        %v1469 = vpop.f32.mrb[0].mxu0
        %1470 = vdwg.mxu0
        %v1471 = vsel %vm699, %v1416, -inf
        %1472 = vmax.xlane.f32.xlu0 %v1471
        %v1473 = vpop.xlane.xlu0 %1472
        %v1474 = vsel %vm699, %v1466, -inf
        %1475 = vmax.xlane.f32.xlu0 %v1474
        %v1476 = vpop.xlane.xlu0 %1475
        %v1477 = vsub.f32 %v1416, %v1473
        %v1478 = vsub.f32 %v1466, %v1476
        %v1479 = vmul.f32 %v1477, 1.442695
        %v1480 = vpow.pop %v1479
        %v1481 = vmul.f32 %v1478, 1.442695
        %v1482 = vpow.pop %v1481
        %v1483 = vsel %vm699, %v1480, 0.0
        %1484 = vadd.xlane.f32.xlu0 %v1483
        %v1485 = vpop.xlane.xlu0 %1484
        %v1486 = vsel %vm699, %v1482, 0.0
        %1487 = vadd.xlane.f32.xlu0 %v1486
        %v1488 = vpop.xlane.xlu0 %1487
        %v1489 = vrcp.pop %v1485
        %v1490 = vrcp.pop %v1488
        %v1491 = vmul.f32 %v1480, %v1489
        %v1492 = vmul.f32 %v1482, %v1490
        %v1493 = vpack.c.bf16 %v1491, %v1491
        %v1494 = vpack.c.bf16 %v1492, %v1492
        %1495 = vrot.lane.b32.xlu0 %v695, 40
        %v1496 = vpop.permute.xlu0 %1495
        %v1498 = vsel %vm699, %v1493, 0
        %v1501 = vsel %vm823, %v1496, 0
        %1503 = vmatprep.subr.bf16.mxu0 0
        %1504 = vmatpush1.bf16.msra.mxu0 %v1501
        %1505 = vmatprep.subr.bf16.mxu0 0
        %1506 = vmatpush1.bf16.msra.mxu0 0
        %1507 = vmatprep.subr.bf16.mxu0 0
        %1508 = vmatpush1.bf16.msra.mxu0 0
        %1509 = vmatprep.subr.bf16.mxu0 0
        %1510 = vmatpush1.bf16.msra.mxu0 0
        %1511 = vmatprep.subr.bf16.mxu0 0
        %1512 = vmatpush1.bf16.msra.mxu0 0
        %1513 = vmatprep.subr.bf16.mxu0 0
        %1514 = vmatpush1.bf16.msra.mxu0 0
        %1515 = vmatprep.subr.bf16.mxu0 0
        %1516 = vmatpush1.bf16.msra.mxu0 0
        %1517 = vmatprep.subr.bf16.mxu0 0
        %1518 = vmatpush1.bf16.msra.mxu0 0
        %1519 = vmatprep.subr.bf16.mxu0 0
        %1520 = vmatpush1.bf16.msra.mxu0 0
        %1521 = vmatprep.subr.bf16.mxu0 0
        %1522 = vmatpush1.bf16.msra.mxu0 0
        %1523 = vmatprep.subr.bf16.mxu0 0
        %1524 = vmatpush1.bf16.msra.mxu0 0
        %1525 = vmatprep.subr.bf16.mxu0 0
        %1526 = vmatpush1.bf16.msra.mxu0 0
        %1527 = vmatprep.subr.bf16.mxu0 0
        %1528 = vmatpush1.bf16.msra.mxu0 0
        %1529 = vmatprep.subr.bf16.mxu0 0
        %1530 = vmatpush1.bf16.msra.mxu0 0
        %1531 = vmatprep.subr.bf16.mxu0 0
        %1532 = vmatpush1.bf16.msra.mxu0 0
        %1533 = vmatprep.subr.bf16.mxu0 0
        %1534 = vmatpush1.bf16.msra.mxu0 0
        %1535 = vmatprep.mubr.bf16.mxu0 0
        %1536 = vmatmul.mubr.bf16.gmra.mrb[0].mxu0 %v1498
        %v1537 = vpop.f32.mrb[0].mxu0
        %v1538 = vadd.f32 0.0, %v1537
        %v1539 = vpop.f32.mrb[0].mxu0
        %v1540 = vpop.f32.mrb[0].mxu0
        %v1541 = vpop.f32.mrb[0].mxu0
        %1542 = vdwg.mxu0
        %1543 = vrot.lane.b32.xlu0 %v696, 40
        %v1544 = vpop.permute.xlu0 %1543
        %v1546 = vsel %vm699, %v1494, 0
        %v1549 = vsel %vm823, %v1544, 0
        %1551 = vmatprep.subr.bf16.mxu0 0
        %1552 = vmatpush1.bf16.msra.mxu0 %v1549
        %1553 = vmatprep.subr.bf16.mxu0 0
        %1554 = vmatpush1.bf16.msra.mxu0 0
        %1555 = vmatprep.subr.bf16.mxu0 0
        %1556 = vmatpush1.bf16.msra.mxu0 0
        %1557 = vmatprep.subr.bf16.mxu0 0
        %1558 = vmatpush1.bf16.msra.mxu0 0
        %1559 = vmatprep.subr.bf16.mxu0 0
        %1560 = vmatpush1.bf16.msra.mxu0 0
        %1561 = vmatprep.subr.bf16.mxu0 0
        %1562 = vmatpush1.bf16.msra.mxu0 0
        %1563 = vmatprep.subr.bf16.mxu0 0
        %1564 = vmatpush1.bf16.msra.mxu0 0
        %1565 = vmatprep.subr.bf16.mxu0 0
        %1566 = vmatpush1.bf16.msra.mxu0 0
        %1567 = vmatprep.subr.bf16.mxu0 0
        %1568 = vmatpush1.bf16.msra.mxu0 0
        %1569 = vmatprep.subr.bf16.mxu0 0
        %1570 = vmatpush1.bf16.msra.mxu0 0
        %1571 = vmatprep.subr.bf16.mxu0 0
        %1572 = vmatpush1.bf16.msra.mxu0 0
        %1573 = vmatprep.subr.bf16.mxu0 0
        %1574 = vmatpush1.bf16.msra.mxu0 0
        %1575 = vmatprep.subr.bf16.mxu0 0
        %1576 = vmatpush1.bf16.msra.mxu0 0
        %1577 = vmatprep.subr.bf16.mxu0 0
        %1578 = vmatpush1.bf16.msra.mxu0 0
        %1579 = vmatprep.subr.bf16.mxu0 0
        %1580 = vmatpush1.bf16.msra.mxu0 0
        %1581 = vmatprep.subr.bf16.mxu0 0
        %1582 = vmatpush1.bf16.msra.mxu0 0
        %1583 = vmatprep.mubr.bf16.mxu0 0
        %1584 = vmatmul.mubr.bf16.gmra.mrb[0].mxu0 %v1546
        %v1585 = vpop.f32.mrb[0].mxu0
        %v1586 = vadd.f32 0.0, %v1585
        %v1587 = vpop.f32.mrb[0].mxu0
        %v1588 = vpop.f32.mrb[0].mxu0
        %v1589 = vpop.f32.mrb[0].mxu0
        %1590 = vdwg.mxu0
        %v1591 = vpack.c.bf16 %v1586, %v1538
        %1593 = vrot.lane.b32.xlu0 %v1591, 24
        %v1594 = vpop.permute.xlu0 %1593
        %vm1596 = vcmask 261312
        %1597 = vst.msk [vmem:[#allocation2] sm:$0xff] %vm1596, %v1594
        %v1598 = vld [vmem:[#allocation2] sm:$0xff]
        %v1599 = vld [vmem:[#allocation9] sm:$0xf]
        %v1600 = vld [vmem:[#allocation9 + $0x4] sm:$0xf]
        %v1601 = vld [vmem:[#allocation9 + $0x8] sm:$0xf]
        %v1602 = vld [vmem:[#allocation9 + $0xc] sm:$0xf]
        %v1603 = vld [vmem:[#allocation11] sm:$0x1]
        %v1605 = vlaneseq
        %v1606 = vshrl.u32 %v1605, 7
        %v1607 = vsub.s32 0, %v1606
        %v1608 = vrot.slane %v1603, %v1607
        %v1614 = vunpack.c.l.b16 %v1599
        %v1615 = vunpack.c.l.b16 %v1600
        %v1616 = vunpack.c.l.b16 %v1601
        %v1617 = vunpack.c.l.b16 %v1602
        %v1618 = vpack.c.b16 %v1615, %v1614
        %v1619 = vpack.c.b16 %v1617, %v1616
        %v1623 = vsel %vm646, %v1598, 0
        %1625 = vmatprep.subr.bf16.mxu0 0
        %1626 = vmatpush1.bf16.msra.mxu0 %v1618
        %1627 = vmatprep.subr.bf16.mxu0 0
        %1628 = vmatpush1.bf16.msra.mxu0 %v1619
        %1629 = vmatprep.subr.bf16.mxu0 0
        %1630 = vmatpush1.bf16.msra.mxu0 0
        %1631 = vmatprep.subr.bf16.mxu0 0
        %1632 = vmatpush1.bf16.msra.mxu0 0
        %1633 = vmatprep.subr.bf16.mxu0 0
        %1634 = vmatpush1.bf16.msra.mxu0 0
        %1635 = vmatprep.subr.bf16.mxu0 0
        %1636 = vmatpush1.bf16.msra.mxu0 0
        %1637 = vmatprep.subr.bf16.mxu0 0
        %1638 = vmatpush1.bf16.msra.mxu0 0
        %1639 = vmatprep.subr.bf16.mxu0 0
        %1640 = vmatpush1.bf16.msra.mxu0 0
        %1641 = vmatprep.subr.bf16.mxu0 0
        %1642 = vmatpush1.bf16.msra.mxu0 0
        %1643 = vmatprep.subr.bf16.mxu0 0
        %1644 = vmatpush1.bf16.msra.mxu0 0
        %1645 = vmatprep.subr.bf16.mxu0 0
        %1646 = vmatpush1.bf16.msra.mxu0 0
        %1647 = vmatprep.subr.bf16.mxu0 0
        %1648 = vmatpush1.bf16.msra.mxu0 0
        %1649 = vmatprep.subr.bf16.mxu0 0
        %1650 = vmatpush1.bf16.msra.mxu0 0
        %1651 = vmatprep.subr.bf16.mxu0 0
        %1652 = vmatpush1.bf16.msra.mxu0 0
        %1653 = vmatprep.subr.bf16.mxu0 0
        %1654 = vmatpush1.bf16.msra.mxu0 0
        %1655 = vmatprep.subr.bf16.mxu0 0
        %1656 = vmatpush1.bf16.msra.mxu0 0
        %1657 = vmatprep.mubr.bf16.mxu0 0
        %1658 = vmatmul.mubr.bf16.gmra.mrb[0].mxu0 %v1623
        %v1659 = vpop.f32.mrb[0].mxu0
        %v1660 = vadd.f32 %v1608, %v1659
        %v1661 = vpop.f32.mrb[0].mxu0
        %v1662 = vpop.f32.mrb[0].mxu0
        %v1663 = vadd.f32 %v1608, %v1662
        %v1664 = vpop.f32.mrb[0].mxu0
        %1665 = vdwg.mxu0
        %v1666 = vadd.f32 %v620, %v1660
        %v1667 = vadd.f32 %v621, %v1663
        %v1668 = vld [vmem:[#allocation12] sm:$0x1]
        %v1669 = vld [vmem:[#allocation14] sm:$0x1]
        %v1670 = vsel %vm646, %v1666, 0.0
        %1671 = vadd.xlane.f32.xlu0 %v1670
        %v1672 = vpop.xlane.xlu0 %1671
        %v1673 = vsel %vm646, %v1667, 0.0
        %1674 = vadd.xlane.f32.xlu0 %v1673
        %v1675 = vpop.xlane.xlu0 %1674
        %v1676 = vrcp.pop 32.0
        %v1677 = vmul.f32 %v1672, %v1676
        %v1678 = vmul.f32 %v1675, %v1676
        %v1679 = vsub.f32 %v1666, %v1677
        %v1680 = vsub.f32 %v1667, %v1678
        %v1681 = vmul.f32 %v1679, %v1679
        %v1682 = vmul.f32 %v1680, %v1680
        %v1683 = vsel %vm646, %v1681, 0.0
        %1684 = vadd.xlane.f32.xlu0 %v1683
        %v1685 = vpop.xlane.xlu0 %1684
        %v1686 = vsel %vm646, %v1682, 0.0
        %1687 = vadd.xlane.f32.xlu0 %v1686
        %v1688 = vpop.xlane.xlu0 %1687
        %v1689 = vmul.f32 %v1685, %v1676
        %v1690 = vmul.f32 %v1688, %v1676
        %v1691 = vadd.f32 %v1689, 1e-05
        %v1692 = vadd.f32 %v1690, 1e-05
        %v1693 = vrsqrt.pop %v1691
        %v1694 = vrsqrt.pop %v1692
        %v1695 = vmul.f32 %v1679, %v1693
        %v1696 = vmul.f32 %v1680, %v1694
        %v1698 = vlaneseq
        %v1699 = vshrl.u32 %v1698, 7
        %v1700 = vsub.s32 0, %v1699
        %v1701 = vrot.slane %v1668, %v1700
        %v1703 = vmul.f32 %v1695, %v1701
        %v1704 = vmul.f32 %v1696, %v1701
        %v1706 = vlaneseq
        %v1707 = vshrl.u32 %v1706, 7
        %v1708 = vsub.s32 0, %v1707
        %v1709 = vrot.slane %v1669, %v1708
        %v1711 = vadd.f32 %v1703, %v1709
        %v1712 = vadd.f32 %v1704, %v1709
        %v1713 = vpack.c.bf16 %v1712, %v1711
        %v1714 = vld [vmem:[#allocation15] sm:$0xf]
        %v1715 = vld [vmem:[#allocation15 + $0x4] sm:$0xf]
        %v1716 = vld [vmem:[#allocation15 + $0x8] sm:$0xf]
        %v1717 = vld [vmem:[#allocation15 + $0xc] sm:$0xf]
        %v1718 = vld [vmem:[#allocation17] sm:$0x1]
        %v1720 = vlaneseq
        %v1721 = vshrl.u32 %v1720, 7
        %v1722 = vsub.s32 0, %v1721
        %v1723 = vrot.slane %v1718, %v1722
        %v1729 = vunpack.c.l.b16 %v1714
        %v1730 = vunpack.c.l.b16 %v1715
        %v1731 = vunpack.c.l.b16 %v1716
        %v1732 = vunpack.c.l.b16 %v1717
        %v1733 = vpack.c.b16 %v1730, %v1729
        %v1734 = vpack.c.b16 %v1732, %v1731
        %v1738 = vsel %vm646, %v1713, 0
        %1740 = vmatprep.subr.bf16.mxu0 0
        %1741 = vmatpush1.bf16.msra.mxu0 %v1733
        %1742 = vmatprep.subr.bf16.mxu0 0
        %1743 = vmatpush1.bf16.msra.mxu0 %v1734
        %1744 = vmatprep.subr.bf16.mxu0 0
        %1745 = vmatpush1.bf16.msra.mxu0 0
        %1746 = vmatprep.subr.bf16.mxu0 0
        %1747 = vmatpush1.bf16.msra.mxu0 0
        %1748 = vmatprep.subr.bf16.mxu0 0
        %1749 = vmatpush1.bf16.msra.mxu0 0
        %1750 = vmatprep.subr.bf16.mxu0 0
        %1751 = vmatpush1.bf16.msra.mxu0 0
        %1752 = vmatprep.subr.bf16.mxu0 0
        %1753 = vmatpush1.bf16.msra.mxu0 0
        %1754 = vmatprep.subr.bf16.mxu0 0
        %1755 = vmatpush1.bf16.msra.mxu0 0
        %1756 = vmatprep.subr.bf16.mxu0 0
        %1757 = vmatpush1.bf16.msra.mxu0 0
        %1758 = vmatprep.subr.bf16.mxu0 0
        %1759 = vmatpush1.bf16.msra.mxu0 0
        %1760 = vmatprep.subr.bf16.mxu0 0
        %1761 = vmatpush1.bf16.msra.mxu0 0
        %1762 = vmatprep.subr.bf16.mxu0 0
        %1763 = vmatpush1.bf16.msra.mxu0 0
        %1764 = vmatprep.subr.bf16.mxu0 0
        %1765 = vmatpush1.bf16.msra.mxu0 0
        %1766 = vmatprep.subr.bf16.mxu0 0
        %1767 = vmatpush1.bf16.msra.mxu0 0
        %1768 = vmatprep.subr.bf16.mxu0 0
        %1769 = vmatpush1.bf16.msra.mxu0 0
        %1770 = vmatprep.subr.bf16.mxu0 0
        %1771 = vmatpush1.bf16.msra.mxu0 0
        %1772 = vmatprep.mubr.bf16.mxu0 0
        %1773 = vmatmul.mubr.bf16.gmra.mrb[0].mxu0 %v1738
        %v1774 = vpop.f32.mrb[0].mxu0
        %v1775 = vadd.f32 %v1723, %v1774
        %v1776 = vpop.f32.mrb[0].mxu0
        %v1777 = vpop.f32.mrb[0].mxu0
        %v1778 = vadd.f32 %v1723, %v1777
        %v1779 = vpop.f32.mrb[0].mxu0
        %1780 = vdwg.mxu0
        %v1781 = vmul.f32 %v1775, 0.5
        %v1782 = vmul.f32 %v1778, 0.5
        %v1783 = vrcp.pop 1.4142135
        %v1784 = vmul.f32 %v1775, %v1783
        %v1785 = vmul.f32 %v1778, %v1783
        %v1786 = verf.f32.pop %v1784
        %v1787 = verf.f32.pop %v1785
        %v1788 = vadd.f32 %v1786, 1.0
        %v1789 = vadd.f32 %v1787, 1.0
        %v1790 = vmul.f32 %v1781, %v1788
        %v1791 = vmul.f32 %v1782, %v1789
        %v1792 = vpack.c.bf16 %v1791, %v1790
        %v1793 = vld [vmem:[#allocation18] sm:$0xf]
        %v1794 = vld [vmem:[#allocation18 + $0x4] sm:$0xf]
        %v1795 = vld [vmem:[#allocation18 + $0x8] sm:$0xf]
        %v1796 = vld [vmem:[#allocation18 + $0xc] sm:$0xf]
        %v1797 = vld [vmem:[#allocation18 + $0x10] sm:$0xf]
        %v1798 = vld [vmem:[#allocation18 + $0x14] sm:$0xf]
        %v1799 = vld [vmem:[#allocation18 + $0x18] sm:$0xf]
        %v1800 = vld [vmem:[#allocation18 + $0x1c] sm:$0xf]
        %v1801 = vld [vmem:[#allocation20] sm:$0x1]
        %v1803 = vlaneseq
        %v1804 = vshrl.u32 %v1803, 7
        %v1805 = vsub.s32 0, %v1804
        %v1806 = vrot.slane %v1801, %v1805
        %v1816 = vunpack.c.l.b16 %v1793
        %v1817 = vunpack.c.l.b16 %v1794
        %v1818 = vunpack.c.l.b16 %v1795
        %v1819 = vunpack.c.l.b16 %v1796
        %v1820 = vunpack.c.l.b16 %v1797
        %v1821 = vunpack.c.l.b16 %v1798
        %v1822 = vunpack.c.l.b16 %v1799
        %v1823 = vunpack.c.l.b16 %v1800
        %v1824 = vpack.c.b16 %v1817, %v1816
        %v1825 = vpack.c.b16 %v1819, %v1818
        %v1826 = vpack.c.b16 %v1821, %v1820
        %v1827 = vpack.c.b16 %v1823, %v1822
        %vm1832 = vcmask 523264
        %v1834 = vsel %vm1832, %v1792, 0
        %1836 = vmatprep.subr.bf16.mxu0 0
        %1837 = vmatpush1.bf16.msra.mxu0 %v1824
        %1838 = vmatprep.subr.bf16.mxu0 0
        %1839 = vmatpush1.bf16.msra.mxu0 %v1825
        %1840 = vmatprep.subr.bf16.mxu0 0
        %1841 = vmatpush1.bf16.msra.mxu0 %v1826
        %1842 = vmatprep.subr.bf16.mxu0 0
        %1843 = vmatpush1.bf16.msra.mxu0 %v1827
        %1844 = vmatprep.subr.bf16.mxu0 0
        %1845 = vmatpush1.bf16.msra.mxu0 0
        %1846 = vmatprep.subr.bf16.mxu0 0
        %1847 = vmatpush1.bf16.msra.mxu0 0
        %1848 = vmatprep.subr.bf16.mxu0 0
        %1849 = vmatpush1.bf16.msra.mxu0 0
        %1850 = vmatprep.subr.bf16.mxu0 0
        %1851 = vmatpush1.bf16.msra.mxu0 0
        %1852 = vmatprep.subr.bf16.mxu0 0
        %1853 = vmatpush1.bf16.msra.mxu0 0
        %1854 = vmatprep.subr.bf16.mxu0 0
        %1855 = vmatpush1.bf16.msra.mxu0 0
        %1856 = vmatprep.subr.bf16.mxu0 0
        %1857 = vmatpush1.bf16.msra.mxu0 0
        %1858 = vmatprep.subr.bf16.mxu0 0
        %1859 = vmatpush1.bf16.msra.mxu0 0
        %1860 = vmatprep.subr.bf16.mxu0 0
        %1861 = vmatpush1.bf16.msra.mxu0 0
        %1862 = vmatprep.subr.bf16.mxu0 0
        %1863 = vmatpush1.bf16.msra.mxu0 0
        %1864 = vmatprep.subr.bf16.mxu0 0
        %1865 = vmatpush1.bf16.msra.mxu0 0
        %1866 = vmatprep.subr.bf16.mxu0 0
        %1867 = vmatpush1.bf16.msra.mxu0 0
        %1868 = vmatprep.mubr.bf16.mxu0 0
        %1869 = vmatmul.mubr.bf16.gmra.mrb[0].mxu0 %v1834
        %v1870 = vpop.f32.mrb[0].mxu0
        %v1871 = vadd.f32 %v1806, %v1870
        %v1872 = vpop.f32.mrb[0].mxu0
        %v1873 = vpop.f32.mrb[0].mxu0
        %v1874 = vadd.f32 %v1806, %v1873
        %v1875 = vpop.f32.mrb[0].mxu0
        %1876 = vdwg.mxu0
        %v1877 = vadd.f32 %v1711, %v1871
        %v1878 = vadd.f32 %v1712, %v1874
        %v1879 = vld [vmem:[#allocation21] sm:$0x1]
        %v1880 = vld [vmem:[#allocation23] sm:$0x1]
        %v1881 = vsel %vm646, %v1877, 0.0
        %1882 = vadd.xlane.f32.xlu0 %v1881
        %v1883 = vpop.xlane.xlu0 %1882
        %v1884 = vsel %vm646, %v1878, 0.0
        %1885 = vadd.xlane.f32.xlu0 %v1884
        %v1886 = vpop.xlane.xlu0 %1885
        %v1887 = vmul.f32 %v1883, %v1676
        %v1888 = vmul.f32 %v1886, %v1676
        %v1889 = vsub.f32 %v1877, %v1887
        %v1890 = vsub.f32 %v1878, %v1888
        %v1891 = vmul.f32 %v1889, %v1889
        %v1892 = vmul.f32 %v1890, %v1890
        %v1893 = vsel %vm646, %v1891, 0.0
        %1894 = vadd.xlane.f32.xlu0 %v1893
        %v1895 = vpop.xlane.xlu0 %1894
        %v1896 = vsel %vm646, %v1892, 0.0
        %1897 = vadd.xlane.f32.xlu0 %v1896
        %v1898 = vpop.xlane.xlu0 %1897
        %v1899 = vmul.f32 %v1895, %v1676
        %v1900 = vmul.f32 %v1898, %v1676
        %v1901 = vadd.f32 %v1899, 1e-05
        %v1902 = vadd.f32 %v1900, 1e-05
        %v1903 = vrsqrt.pop %v1901
        %v1904 = vrsqrt.pop %v1902
        %v1905 = vmul.f32 %v1889, %v1903
        %v1906 = vmul.f32 %v1890, %v1904
        %v1908 = vlaneseq
        %v1909 = vshrl.u32 %v1908, 7
        %v1910 = vsub.s32 0, %v1909
        %v1911 = vrot.slane %v1879, %v1910
        %v1913 = vmul.f32 %v1905, %v1911
        %v1914 = vmul.f32 %v1906, %v1911
        %v1916 = vlaneseq
        %v1917 = vshrl.u32 %v1916, 7
        %v1918 = vsub.s32 0, %v1917
        %v1919 = vrot.slane %v1880, %v1918
        %v1921 = vadd.f32 %v1913, %v1919
        %v1922 = vadd.f32 %v1914, %v1919
        %1923 = vst.msk [vmem:[%s616] sm:$0xff] %vm646, %v1921
        %1924 = vst.msk [vmem:[%s616 + $0x8] sm:$0xff] %vm646, %v1922
        %s1925 = sand.u32 %s322, 1
        %s1926 = scalar_lea.sflag [#allocation5], %s1925
        %s1927 = sand.u32 %s322, 1
        %s1928 = smul.addr %s1927, 16
        %s1929 = scalar_lea.vmem [#allocation24], %s1928
        // Predicated region
        $region125: #{tpu_custom_call.1} parent=71 // pred_check
          %p1930 = pneg %p332
        $region126: #{tpu_custom_call.1} parent=71 // pred_check_branch
          %1932 = sbr.rel (%p1930) target = $region128
        $region127: #{tpu_custom_call.1} parent=71 // pred_region
          %s1933 = smul.u32 2, %s36
          %s1935 = ssub.s32 256, 256
          %1936 = vsyncadd %s1926, %s1935
          %s1937 = smul.addr %s1933, 128
          %s1938 = scalar_lea.hbm %s13, %s1937
          %s1939 = sshll.u32 %s1929, 4
          %s1940 = int_to_ptr.vmem [resolvable:$true] %s1939
          %1945 = dma.vmem_to_hbm [thread:$0]  %s1940, 256, %s1938, %s1926, 128, 128, 8
        $region128: #{tpu_custom_call.1} parent=71 // pred_fallthru
          _
      $region72: #{tpu_custom_call.1} parent=5 // pred_fallthru
        _
      %p1946 = scmp.le.s32.totalorder 2, %s31
      // Predicated region
      $region129: #{tpu_custom_call.1} parent=5 // pred_check
        %p1947 = pneg %p1946
      $region130: #{tpu_custom_call.1} parent=5 // pred_check_branch
        %1949 = sbr.rel (%p1947) target = $region132
      $region131: #{tpu_custom_call.1} parent=5 // pred_region
        %s1950 = ssub.s32 %s31, 2
        // Predicated region
        $region133: #{tpu_custom_call.1} parent=131 // pred_check
          %p1951 = pneg %p338
        $region134: #{tpu_custom_call.1} parent=131 // pred_check_branch
          %1953 = sbr.rel (%p1951) target = $region136
        $region135: #{tpu_custom_call.1} parent=131 // pred_region
          %s1954 = sand.u32 %s323, 1
          %s1955 = scalar_lea.sflag [#allocation5], %s1954
          %s1956 = sand.u32 %s323, 1
          %s1957 = smul.addr %s1956, 16
          %s1958 = scalar_lea.vmem [#allocation24], %s1957
          %1959 = dma.done %s1955, 256
        $region136: #{tpu_custom_call.1} parent=131 // pred_fallthru
          _
      $region132: #{tpu_custom_call.1} parent=5 // pred_fallthru
        _
    $region6: #{tpu_custom_call.1} parent=1 // loop_footer
      %s35 = sadd.s32 1, %s31
    $region7: #{tpu_custom_call.1} parent=1 // loop_footer_branch
      %30 = sbr.rel target = $region3
    $region8: #{tpu_custom_call.1} parent=1 // loop_exit
      _
    %1960 = vsyncpa [#allocation4], 1
    %s1961 = scalar_lea.sflag [#allocation4], 1
    %1962 = vsyncpa %s1961, 1
    %1963 = vsyncpa [#allocation7], 1
    %1964 = vsyncpa [#allocation10], 1
    %1965 = vsyncpa [#allocation13], 1
    %1966 = vsyncpa [#allocation16], 1
    %1967 = vsyncpa [#allocation19], 1
    %1968 = vsyncpa [#allocation22], 1
    %1969 = vsyncpa [#allocation5], 1
    %s1970 = scalar_lea.sflag [#allocation5], 1
    %1971 = vsyncpa %s1970, 1

// kernel: tpu_custom_call.1
$region0: #{tpu_custom_call.1}
  #allocation0 [shape = 'u32[]', space=smem, size = 0x4, offset = 0x4, fixed_abs, tag = 'smem constant byte address 0x4 - core index']
  #allocation1 [shape = 'u32[144,128]{1,0:T(1,128)}', space=vmem, size = 0x12000, scoped, tag = 'internal scratch']
  #allocation2 [shape = 'bf16[16,32]{1,0:T(16,128)(2,1)}', space=vmem, size = 0x1000, scoped, tag = 'scratch operand']
  %s0 = inlined_call_operand.hbm [shape: f32[4,8,32], index: 0, kind: input, shape index: {}]
  %s1 = inlined_call_operand.hbm [shape: bf16[32,96], index: 1, kind: input, shape index: {}]
  %s2 = inlined_call_operand.hbm [shape: f32[1,96], index: 2, kind: input, shape index: {}]
  %s3 = inlined_call_operand.hbm [shape: bf16[32,32], index: 3, kind: input, shape index: {}]
  %s4 = inlined_call_operand.hbm [shape: f32[1,32], index: 4, kind: input, shape index: {}]
  %s5 = inlined_call_operand.hbm [shape: f32[1,32], index: 5, kind: input, shape index: {}]
  %s6 = inlined_call_operand.hbm [shape: f32[1,32], index: 6, kind: input, shape index: {}]
  %s7 = inlined_call_operand.hbm [shape: bf16[32,64], index: 7, kind: input, shape index: {}]
  %s8 = inlined_call_operand.hbm [shape: f32[1,64], index: 8, kind: input, shape index: {}]
  %s9 = inlined_call_operand.hbm [shape: bf16[64,32], index: 9, kind: input, shape index: {}]
  %s10 = inlined_call_operand.hbm [shape: f32[1,32], index: 10, kind: input, shape index: {}]
  %s11 = inlined_call_operand.hbm [shape: f32[1,32], index: 11, kind: input, shape index: {}]
  %s12 = inlined_call_operand.hbm [shape: f32[1,32], index: 12, kind: input, shape index: {}]
  %s13 = inlined_call_operand.hbm [shape: f32[4,8,32], index: 13, kind: output, shape index: {}]
  %s14 = sld [smem:[#allocation0]]
  $region137: #{tpu_custom_call.1} parent=0
    _
  %s16 = ssub.s32 1, %s14
  %s17 = scalar_select 0, %s16, %s14
  $region1: #{tpu_custom_call.1} parent=0
    #allocation3 [shape = 'u8[16384]{0}', space=vmem, size = 0x4000, scoped, tag = 'input window, operand 0']
    #allocation4 [shape = 's32[2]{0}', space=sflag, size = 0x8, scoped, tag = 'scoped memory for tpu_custom_call.1']
    #allocation5 [shape = 's32[2]{0}', space=sflag, size = 0x8, scoped, tag = 'scoped memory for tpu_custom_call.1']
    #allocation6 [shape = 'u8[8192]{0}', space=vmem, size = 0x2000, scoped, tag = 'input window, operand 1, single buffered']
    #allocation7 [shape = 's32[1]{0}', space=sflag, size = 0x4, scoped, tag = 'scoped memory for tpu_custom_call.1']
    #allocation8 [shape = 'u8[512]{0}', space=vmem, size = 0x400, scoped, tag = 'input window, operand 2, single buffered']
    #allocation9 [shape = 'u8[8192]{0}', space=vmem, size = 0x2000, scoped, tag = 'input window, operand 3, single buffered']
    #allocation10 [shape = 's32[1]{0}', space=sflag, size = 0x4, scoped, tag = 'scoped memory for tpu_custom_call.1']
    #allocation11 [shape = 'u8[512]{0}', space=vmem, size = 0x400, scoped, tag = 'input window, operand 4, single buffered']
    #allocation12 [shape = 'u8[512]{0}', space=vmem, size = 0x400, scoped, tag = 'input window, operand 5, single buffered']
    #allocation13 [shape = 's32[1]{0}', space=sflag, size = 0x4, scoped, tag = 'scoped memory for tpu_custom_call.1']
    #allocation14 [shape = 'u8[512]{0}', space=vmem, size = 0x400, scoped, tag = 'input window, operand 6, single buffered']
    #allocation15 [shape = 'u8[8192]{0}', space=vmem, size = 0x2000, scoped, tag = 'input window, operand 7, single buffered']
    #allocation16 [shape = 's32[1]{0}', space=sflag, size = 0x4, scoped, tag = 'scoped memory for tpu_custom_call.1']
    #allocation17 [shape = 'u8[512]{0}', space=vmem, size = 0x400, scoped, tag = 'input window, operand 8, single buffered']
    #allocation18 [shape = 'u8[16384]{0}', space=vmem, size = 0x4000, scoped, tag = 'input window, operand 9, single buffered']
    #allocation19 [shape = 's32[1]{0}', space=sflag, size = 0x4, scoped, tag = 'scoped memory for tpu_custom_call.1']
    #allocation20 [shape = 'u8[512]{0}', space=vmem, size = 0x400, scoped, tag = 'input window, operand 10, single buffered']
    #allocation21 [shape = 'u8[512]{0}', space=vmem, size = 0x400, scoped, tag = 'input window, operand 11, single buffered']
    #allocation22 [shape = 's32[1]{0}', space=sflag, size = 0x4, scoped, tag = 'scoped memory for tpu_custom_call.1']
    #allocation23 [shape = 'u8[512]{0}', space=vmem, size = 0x400, scoped, tag = 'input window, operand 12, single buffered']
    #allocation24 [shape = 'u8[16384]{0}', space=vmem, size = 0x4000, scoped, tag = 'output window, operand 0']
    %18 = vsyncpa [#allocation4], 0
    %s19 = scalar_lea.sflag [#allocation4], 1
    %20 = vsyncpa %s19, 0
    %21 = vsyncpa [#allocation7], 0
    %22 = vsyncpa [#allocation10], 0
    %23 = vsyncpa [#allocation13], 0
    %24 = vsyncpa [#allocation16], 0
    %25 = vsyncpa [#allocation19], 0
    %26 = vsyncpa [#allocation22], 0
    %27 = vsyncpa [#allocation5], 0
    %s28 = scalar_lea.sflag [#allocation5], 1
    %29 = vsyncpa %s28, 0
    loop: start=0, step=1, limit=4
    $region2: #{tpu_custom_call.1} parent=1 // loop_pre_header
      _
    $region3: #{tpu_custom_call.1} parent=1 // loop_header
      %s31 = sphi 0, %s35
      %p32 = scmp.ge.s32.totalorder %s31, 4
      %s41 = sphi 0, %s43
      %s44 = sphi 0, %s41
      %s45 = sphi 0, %s44
      %s61 = sphi 0, %s45
      %s65 = sphi 0, %s65
      %s67 = sphi 0, %s65
      %s68 = sphi 0, %s67
      %s82 = sphi 0, %s68
      %s86 = sphi 0, %s86
      %s88 = sphi 0, %s86
      %s89 = sphi 0, %s88
      %s103 = sphi 0, %s89
      %s107 = sphi 0, %s107
      %s109 = sphi 0, %s107
      %s110 = sphi 0, %s109
      %s124 = sphi 0, %s110
      %s128 = sphi 0, %s128
      %s130 = sphi 0, %s128
      %s131 = sphi 0, %s130
      %s145 = sphi 0, %s131
      %s149 = sphi 0, %s149
      %s151 = sphi 0, %s149
      %s152 = sphi 0, %s151
      %s166 = sphi 0, %s152
      %s170 = sphi 0, %s170
      %s172 = sphi 0, %s170
      %s173 = sphi 0, %s172
      %s187 = sphi 0, %s173
      %s191 = sphi 0, %s191
      %s193 = sphi 0, %s191
      %s194 = sphi 0, %s193
      %s208 = sphi 0, %s194
      %s212 = sphi 0, %s212
      %s214 = sphi 0, %s212
      %s215 = sphi 0, %s214
      %s229 = sphi 0, %s215
      %s233 = sphi 0, %s233
      %s235 = sphi 0, %s233
      %s236 = sphi 0, %s235
      %s250 = sphi 0, %s236
      %s254 = sphi 0, %s254
      %s256 = sphi 0, %s254
      %s257 = sphi 0, %s256
      %s271 = sphi 0, %s257
      %s275 = sphi 0, %s275
      %s277 = sphi 0, %s275
      %s278 = sphi 0, %s277
      %s292 = sphi 0, %s278
      %s296 = sphi 0, %s296
      %s298 = sphi 0, %s296
      %s299 = sphi 0, %s298
      %s313 = sphi 0, %s299
      %s319 = sphi 0, %s321
      %s322 = sphi 0, %s319
      %s323 = sphi 0, %s322
      %s339 = sphi 0, %s323
    $region4: #{tpu_custom_call.1} parent=1 // loop_header_branch
      %34 = sbr.rel (%p32) target = $region8
    $region5: #{tpu_custom_call.1} parent=1 // loop_body
      %s36 = ssub.s32 %s31, 1
      %s37 = ssub.s32 %s31, 2
      %s38 = sadd.s32 %s31, 1
      %s39 = ssub.s32 %s31, %s38
      %p40 = scmp.eq.s32.totalorder %s39, 0
      %s42 = sadd.s32 %s41, 1
      %s43 = scalar_select %p40, %s41, %s42
      %p46 = pneg %p40
      %p47 = scmp.eq.s32.totalorder %s31, 1
      %p48 = por %p46, %p47
      %p49 = scmp.ne.s32.totalorder %s41, %s44
      %p50 = scmp.eq.s32.totalorder %s31, 0
      %p51 = por %p49, %p50
      %p52 = scmp.ne.s32.totalorder %s41, %s44
      %p53 = scmp.eq.s32.totalorder %s36, 1
      %p54 = por %p52, %p53
      %p55 = scmp.ne.s32.totalorder %s44, %s45
      %p56 = scmp.eq.s32.totalorder %s36, 0
      %p57 = por %p55, %p56
      %p58 = scmp.ne.s32.totalorder %s44, %s45
      %p59 = scmp.eq.s32.totalorder %s37, 1
      %p60 = por %p58, %p59
      %p62 = scmp.ne.s32.totalorder %s45, %s61
      %p63 = scmp.eq.s32.totalorder %s37, 0
      %p64 = por %p62, %p63
      %s66 = sadd.s32 %s65, 1
      %p69 = scmp.eq.s32.totalorder %s31, 1
      %p70 = scmp.ne.s32.totalorder %s65, %s67
      %p71 = scmp.eq.s32.totalorder %s31, 0
      %p72 = por %p70, %p71
      %p73 = scmp.ne.s32.totalorder %s65, %s67
      %p74 = scmp.eq.s32.totalorder %s36, 1
      %p75 = por %p73, %p74
      %p76 = scmp.ne.s32.totalorder %s67, %s68
      %p77 = scmp.eq.s32.totalorder %s36, 0
      %p78 = por %p76, %p77
      %p79 = scmp.ne.s32.totalorder %s67, %s68
      %p80 = scmp.eq.s32.totalorder %s37, 1
      %p81 = por %p79, %p80
      %p83 = scmp.ne.s32.totalorder %s68, %s82
      %p84 = scmp.eq.s32.totalorder %s37, 0
      %p85 = por %p83, %p84
      %s87 = sadd.s32 %s86, 1
      %p90 = scmp.eq.s32.totalorder %s31, 1
      %p91 = scmp.ne.s32.totalorder %s86, %s88
      %p92 = scmp.eq.s32.totalorder %s31, 0
      %p93 = por %p91, %p92
      %p94 = scmp.ne.s32.totalorder %s86, %s88
      %p95 = scmp.eq.s32.totalorder %s36, 1
      %p96 = por %p94, %p95
      %p97 = scmp.ne.s32.totalorder %s88, %s89
      %p98 = scmp.eq.s32.totalorder %s36, 0
      %p99 = por %p97, %p98
      %p100 = scmp.ne.s32.totalorder %s88, %s89
      %p101 = scmp.eq.s32.totalorder %s37, 1
      %p102 = por %p100, %p101
      %p104 = scmp.ne.s32.totalorder %s89, %s103
      %p105 = scmp.eq.s32.totalorder %s37, 0
      %p106 = por %p104, %p105
      %s108 = sadd.s32 %s107, 1
      %p111 = scmp.eq.s32.totalorder %s31, 1
      %p112 = scmp.ne.s32.totalorder %s107, %s109
      %p113 = scmp.eq.s32.totalorder %s31, 0
      %p114 = por %p112, %p113
      %p115 = scmp.ne.s32.totalorder %s107, %s109
      %p116 = scmp.eq.s32.totalorder %s36, 1
      %p117 = por %p115, %p116
      %p118 = scmp.ne.s32.totalorder %s109, %s110
      %p119 = scmp.eq.s32.totalorder %s36, 0
      %p120 = por %p118, %p119
      %p121 = scmp.ne.s32.totalorder %s109, %s110
      %p122 = scmp.eq.s32.totalorder %s37, 1
      %p123 = por %p121, %p122
      %p125 = scmp.ne.s32.totalorder %s110, %s124
      %p126 = scmp.eq.s32.totalorder %s37, 0
      %p127 = por %p125, %p126
      %s129 = sadd.s32 %s128, 1
      %p132 = scmp.eq.s32.totalorder %s31, 1
      %p133 = scmp.ne.s32.totalorder %s128, %s130
      %p134 = scmp.eq.s32.totalorder %s31, 0
      %p135 = por %p133, %p134
      %p136 = scmp.ne.s32.totalorder %s128, %s130
      %p137 = scmp.eq.s32.totalorder %s36, 1
      %p138 = por %p136, %p137
      %p139 = scmp.ne.s32.totalorder %s130, %s131
      %p140 = scmp.eq.s32.totalorder %s36, 0
      %p141 = por %p139, %p140
      %p142 = scmp.ne.s32.totalorder %s130, %s131
      %p143 = scmp.eq.s32.totalorder %s37, 1
      %p144 = por %p142, %p143
      %p146 = scmp.ne.s32.totalorder %s131, %s145
      %p147 = scmp.eq.s32.totalorder %s37, 0
      %p148 = por %p146, %p147
      %s150 = sadd.s32 %s149, 1
      %p153 = scmp.eq.s32.totalorder %s31, 1
      %p154 = scmp.ne.s32.totalorder %s149, %s151
      %p155 = scmp.eq.s32.totalorder %s31, 0
      %p156 = por %p154, %p155
      %p157 = scmp.ne.s32.totalorder %s149, %s151
      %p158 = scmp.eq.s32.totalorder %s36, 1
      %p159 = por %p157, %p158
      %p160 = scmp.ne.s32.totalorder %s151, %s152
      %p161 = scmp.eq.s32.totalorder %s36, 0
      %p162 = por %p160, %p161
      %p163 = scmp.ne.s32.totalorder %s151, %s152
      %p164 = scmp.eq.s32.totalorder %s37, 1
      %p165 = por %p163, %p164
      %p167 = scmp.ne.s32.totalorder %s152, %s166
      %p168 = scmp.eq.s32.totalorder %s37, 0
      %p169 = por %p167, %p168
      %s171 = sadd.s32 %s170, 1
      %p174 = scmp.eq.s32.totalorder %s31, 1
      %p175 = scmp.ne.s32.totalorder %s170, %s172
      %p176 = scmp.eq.s32.totalorder %s31, 0
      %p177 = por %p175, %p176
      %p178 = scmp.ne.s32.totalorder %s170, %s172
      %p179 = scmp.eq.s32.totalorder %s36, 1
      %p180 = por %p178, %p179
      %p181 = scmp.ne.s32.totalorder %s172, %s173
      %p182 = scmp.eq.s32.totalorder %s36, 0
      %p183 = por %p181, %p182
      %p184 = scmp.ne.s32.totalorder %s172, %s173
      %p185 = scmp.eq.s32.totalorder %s37, 1
      %p186 = por %p184, %p185
      %p188 = scmp.ne.s32.totalorder %s173, %s187
      %p189 = scmp.eq.s32.totalorder %s37, 0
      %p190 = por %p188, %p189
      %s192 = sadd.s32 %s191, 1
      %p195 = scmp.eq.s32.totalorder %s31, 1
      %p196 = scmp.ne.s32.totalorder %s191, %s193
      %p197 = scmp.eq.s32.totalorder %s31, 0
      %p198 = por %p196, %p197
      %p199 = scmp.ne.s32.totalorder %s191, %s193
      %p200 = scmp.eq.s32.totalorder %s36, 1
      %p201 = por %p199, %p200
      %p202 = scmp.ne.s32.totalorder %s193, %s194
      %p203 = scmp.eq.s32.totalorder %s36, 0
      %p204 = por %p202, %p203
      %p205 = scmp.ne.s32.totalorder %s193, %s194
      %p206 = scmp.eq.s32.totalorder %s37, 1
      %p207 = por %p205, %p206
      %p209 = scmp.ne.s32.totalorder %s194, %s208
      %p210 = scmp.eq.s32.totalorder %s37, 0
      %p211 = por %p209, %p210
      %s213 = sadd.s32 %s212, 1
      %p216 = scmp.eq.s32.totalorder %s31, 1
      %p217 = scmp.ne.s32.totalorder %s212, %s214
      %p218 = scmp.eq.s32.totalorder %s31, 0
      %p219 = por %p217, %p218
      %p220 = scmp.ne.s32.totalorder %s212, %s214
      %p221 = scmp.eq.s32.totalorder %s36, 1
      %p222 = por %p220, %p221
      %p223 = scmp.ne.s32.totalorder %s214, %s215
      %p224 = scmp.eq.s32.totalorder %s36, 0
      %p225 = por %p223, %p224
      %p226 = scmp.ne.s32.totalorder %s214, %s215
      %p227 = scmp.eq.s32.totalorder %s37, 1
      %p228 = por %p226, %p227
      %p230 = scmp.ne.s32.totalorder %s215, %s229
      %p231 = scmp.eq.s32.totalorder %s37, 0
      %p232 = por %p230, %p231
      %s234 = sadd.s32 %s233, 1
      %p237 = scmp.eq.s32.totalorder %s31, 1
      %p238 = scmp.ne.s32.totalorder %s233, %s235
      %p239 = scmp.eq.s32.totalorder %s31, 0
      %p240 = por %p238, %p239
      %p241 = scmp.ne.s32.totalorder %s233, %s235
      %p242 = scmp.eq.s32.totalorder %s36, 1
      %p243 = por %p241, %p242
      %p244 = scmp.ne.s32.totalorder %s235, %s236
      %p245 = scmp.eq.s32.totalorder %s36, 0
      %p246 = por %p244, %p245
      %p247 = scmp.ne.s32.totalorder %s235, %s236
      %p248 = scmp.eq.s32.totalorder %s37, 1
      %p249 = por %p247, %p248
      %p251 = scmp.ne.s32.totalorder %s236, %s250
      %p252 = scmp.eq.s32.totalorder %s37, 0
      %p253 = por %p251, %p252
      %s255 = sadd.s32 %s254, 1
      %p258 = scmp.eq.s32.totalorder %s31, 1
      %p259 = scmp.ne.s32.totalorder %s254, %s256
      %p260 = scmp.eq.s32.totalorder %s31, 0
      %p261 = por %p259, %p260
      %p262 = scmp.ne.s32.totalorder %s254, %s256
      %p263 = scmp.eq.s32.totalorder %s36, 1
      %p264 = por %p262, %p263
      %p265 = scmp.ne.s32.totalorder %s256, %s257
      %p266 = scmp.eq.s32.totalorder %s36, 0
      %p267 = por %p265, %p266
      %p268 = scmp.ne.s32.totalorder %s256, %s257
      %p269 = scmp.eq.s32.totalorder %s37, 1
      %p270 = por %p268, %p269
      %p272 = scmp.ne.s32.totalorder %s257, %s271
      %p273 = scmp.eq.s32.totalorder %s37, 0
      %p274 = por %p272, %p273
      %s276 = sadd.s32 %s275, 1
      %p279 = scmp.eq.s32.totalorder %s31, 1
      %p280 = scmp.ne.s32.totalorder %s275, %s277
      %p281 = scmp.eq.s32.totalorder %s31, 0
      %p282 = por %p280, %p281
      %p283 = scmp.ne.s32.totalorder %s275, %s277
      %p284 = scmp.eq.s32.totalorder %s36, 1
      %p285 = por %p283, %p284
      %p286 = scmp.ne.s32.totalorder %s277, %s278
      %p287 = scmp.eq.s32.totalorder %s36, 0
      %p288 = por %p286, %p287
      %p289 = scmp.ne.s32.totalorder %s277, %s278
      %p290 = scmp.eq.s32.totalorder %s37, 1
      %p291 = por %p289, %p290
      %p293 = scmp.ne.s32.totalorder %s278, %s292
      %p294 = scmp.eq.s32.totalorder %s37, 0
      %p295 = por %p293, %p294
      %s297 = sadd.s32 %s296, 1
      %p300 = scmp.eq.s32.totalorder %s31, 1
      %p301 = scmp.ne.s32.totalorder %s296, %s298
      %p302 = scmp.eq.s32.totalorder %s31, 0
      %p303 = por %p301, %p302
      %p304 = scmp.ne.s32.totalorder %s296, %s298
      %p305 = scmp.eq.s32.totalorder %s36, 1
      %p306 = por %p304, %p305
      %p307 = scmp.ne.s32.totalorder %s298, %s299
      %p308 = scmp.eq.s32.totalorder %s36, 0
      %p309 = por %p307, %p308
      %p310 = scmp.ne.s32.totalorder %s298, %s299
      %p311 = scmp.eq.s32.totalorder %s37, 1
      %p312 = por %p310, %p311
      %p314 = scmp.ne.s32.totalorder %s299, %s313
      %p315 = scmp.eq.s32.totalorder %s37, 0
      %p316 = por %p314, %p315
      %s317 = ssub.s32 %s31, %s38
      %p318 = scmp.eq.s32.totalorder %s317, 0
      %s320 = sadd.s32 %s319, 1
      %s321 = scalar_select %p318, %s319, %s320
      %p324 = pneg %p318
      %p325 = scmp.eq.s32.totalorder %s31, 1
      %p326 = por %p324, %p325
      %p327 = scmp.ne.s32.totalorder %s319, %s322
      %p328 = scmp.eq.s32.totalorder %s31, 0
      %p329 = por %p327, %p328
      %p330 = scmp.ne.s32.totalorder %s319, %s322
      %p331 = scmp.eq.s32.totalorder %s36, 1
      %p332 = por %p330, %p331
      %p333 = scmp.ne.s32.totalorder %s322, %s323
      %p334 = scmp.eq.s32.totalorder %s36, 0
      %p335 = por %p333, %p334
      %p336 = scmp.ne.s32.totalorder %s322, %s323
      %p337 = scmp.eq.s32.totalorder %s37, 1
      %p338 = por %p336, %p337
      %p340 = scmp.ne.s32.totalorder %s323, %s339
      %p341 = scmp.eq.s32.totalorder %s37, 0
      %p342 = por %p340, %p341
      %p343 = scmp.le.s32.totalorder 1, %s31
      %p344 = scmp.lt.s32.totalorder %s31, 3
      %p345 = pnand %p343, %p344
      %p346 = pneg %p345
      // Predicated region
      $region9: #{tpu_custom_call.1} parent=5 // pred_check
        _
      $region10: #{tpu_custom_call.1} parent=5 // pred_check_branch
        %348 = sbr.rel (%p345) target = $region12
      $region11: #{tpu_custom_call.1} parent=5 // pred_region
        %s349 = ssub.s32 %s31, 1
        // Predicated region
        $region13: #{tpu_custom_call.1} parent=11 // pred_check
          %p350 = pneg %p78
        $region14: #{tpu_custom_call.1} parent=11 // pred_check_branch
          %352 = sbr.rel (%p350) target = $region16
        $region15: #{tpu_custom_call.1} parent=11 // pred_region
          %s354 = ssub.s32 256, 256
          %355 = vsyncadd [#allocation7], %s354
          %s356 = sshll.u32 [#allocation6], 4
          %s357 = int_to_ptr.vmem [resolvable:$true] %s356
          %362 = dma.hbm_to_vmem [thread:$0]  %s1, 256, %s357, [#allocation7], 64, 64, 4
        $region16: #{tpu_custom_call.1} parent=11 // pred_fallthru
          _
        // Predicated region
        $region17: #{tpu_custom_call.1} parent=11 // pred_check
          %p363 = pneg %p99
        $region18: #{tpu_custom_call.1} parent=11 // pred_check_branch
          %365 = sbr.rel (%p363) target = $region20
        $region19: #{tpu_custom_call.1} parent=11 // pred_region
          %s367 = ssub.s32 16, 16
          %368 = vsyncadd [#allocation7], %s367
          %s370 = sshll.u32 [#allocation8], 4
          %s371 = int_to_ptr.vmem [resolvable:$true] %s370
          %373 = dma.hbm_to_vmem [thread:$0]  %s2, 16, %s371, [#allocation7]
        $region20: #{tpu_custom_call.1} parent=11 // pred_fallthru
          _
        // Predicated region
        $region21: #{tpu_custom_call.1} parent=11 // pred_check
          %p374 = pneg %p120
        $region22: #{tpu_custom_call.1} parent=11 // pred_check_branch
          %376 = sbr.rel (%p374) target = $region24
        $region23: #{tpu_custom_call.1} parent=11 // pred_region
          %s378 = ssub.s32 256, 256
          %379 = vsyncadd [#allocation10], %s378
          %s380 = sshll.u32 [#allocation9], 4
          %s381 = int_to_ptr.vmem [resolvable:$true] %s380
          %386 = dma.hbm_to_vmem [thread:$0]  %s3, 256, %s381, [#allocation10], 64, 64, 4
        $region24: #{tpu_custom_call.1} parent=11 // pred_fallthru
          _
        // Predicated region
        $region25: #{tpu_custom_call.1} parent=11 // pred_check
          %p387 = pneg %p141
        $region26: #{tpu_custom_call.1} parent=11 // pred_check_branch
          %389 = sbr.rel (%p387) target = $region28
        $region27: #{tpu_custom_call.1} parent=11 // pred_region
          %s391 = ssub.s32 16, 16
          %392 = vsyncadd [#allocation10], %s391
          %s394 = sshll.u32 [#allocation11], 4
          %s395 = int_to_ptr.vmem [resolvable:$true] %s394
          %397 = dma.hbm_to_vmem [thread:$0]  %s4, 16, %s395, [#allocation10]
        $region28: #{tpu_custom_call.1} parent=11 // pred_fallthru
          _
        // Predicated region
        $region29: #{tpu_custom_call.1} parent=11 // pred_check
          %p398 = pneg %p162
        $region30: #{tpu_custom_call.1} parent=11 // pred_check_branch
          %400 = sbr.rel (%p398) target = $region32
        $region31: #{tpu_custom_call.1} parent=11 // pred_region
          %s402 = ssub.s32 16, 16
          %403 = vsyncadd [#allocation13], %s402
          %s405 = sshll.u32 [#allocation12], 4
          %s406 = int_to_ptr.vmem [resolvable:$true] %s405
          %408 = dma.hbm_to_vmem [thread:$0]  %s5, 16, %s406, [#allocation13]
        $region32: #{tpu_custom_call.1} parent=11 // pred_fallthru
          _
        // Predicated region
        $region33: #{tpu_custom_call.1} parent=11 // pred_check
          %p409 = pneg %p183
        $region34: #{tpu_custom_call.1} parent=11 // pred_check_branch
          %411 = sbr.rel (%p409) target = $region36
        $region35: #{tpu_custom_call.1} parent=11 // pred_region
          %s413 = ssub.s32 16, 16
          %414 = vsyncadd [#allocation13], %s413
          %s416 = sshll.u32 [#allocation14], 4
          %s417 = int_to_ptr.vmem [resolvable:$true] %s416
          %419 = dma.hbm_to_vmem [thread:$0]  %s6, 16, %s417, [#allocation13]
        $region36: #{tpu_custom_call.1} parent=11 // pred_fallthru
          _
        // Predicated region
        $region37: #{tpu_custom_call.1} parent=11 // pred_check
          %p420 = pneg %p204
        $region38: #{tpu_custom_call.1} parent=11 // pred_check_branch
          %422 = sbr.rel (%p420) target = $region40
        $region39: #{tpu_custom_call.1} parent=11 // pred_region
          %s424 = ssub.s32 256, 256
          %425 = vsyncadd [#allocation16], %s424
          %s426 = sshll.u32 [#allocation15], 4
          %s427 = int_to_ptr.vmem [resolvable:$true] %s426
          %432 = dma.hbm_to_vmem [thread:$0]  %s7, 256, %s427, [#allocation16], 64, 64, 4
        $region40: #{tpu_custom_call.1} parent=11 // pred_fallthru
          _
        // Predicated region
        $region41: #{tpu_custom_call.1} parent=11 // pred_check
          %p433 = pneg %p225
        $region42: #{tpu_custom_call.1} parent=11 // pred_check_branch
          %435 = sbr.rel (%p433) target = $region44
        $region43: #{tpu_custom_call.1} parent=11 // pred_region
          %s437 = ssub.s32 16, 16
          %438 = vsyncadd [#allocation16], %s437
          %s440 = sshll.u32 [#allocation17], 4
          %s441 = int_to_ptr.vmem [resolvable:$true] %s440
          %443 = dma.hbm_to_vmem [thread:$0]  %s8, 16, %s441, [#allocation16]
        $region44: #{tpu_custom_call.1} parent=11 // pred_fallthru
          _
        // Predicated region
        $region45: #{tpu_custom_call.1} parent=11 // pred_check
          %p444 = pneg %p246
        $region46: #{tpu_custom_call.1} parent=11 // pred_check_branch
          %446 = sbr.rel (%p444) target = $region48
        $region47: #{tpu_custom_call.1} parent=11 // pred_region
          %s448 = ssub.s32 512, 512
          %449 = vsyncadd [#allocation19], %s448
          %s450 = sshll.u32 [#allocation18], 4
          %s451 = int_to_ptr.vmem [resolvable:$true] %s450
          %456 = dma.hbm_to_vmem [thread:$0]  %s9, 512, %s451, [#allocation19], 64, 64, 4
        $region48: #{tpu_custom_call.1} parent=11 // pred_fallthru
          _
        // Predicated region
        $region49: #{tpu_custom_call.1} parent=11 // pred_check
          %p457 = pneg %p267
        $region50: #{tpu_custom_call.1} parent=11 // pred_check_branch
          %459 = sbr.rel (%p457) target = $region52
        $region51: #{tpu_custom_call.1} parent=11 // pred_region
          %s461 = ssub.s32 16, 16
          %462 = vsyncadd [#allocation19], %s461
          %s464 = sshll.u32 [#allocation20], 4
          %s465 = int_to_ptr.vmem [resolvable:$true] %s464
          %467 = dma.hbm_to_vmem [thread:$0]  %s10, 16, %s465, [#allocation19]
        $region52: #{tpu_custom_call.1} parent=11 // pred_fallthru
          _
        // Predicated region
        $region53: #{tpu_custom_call.1} parent=11 // pred_check
          %p468 = pneg %p288
        $region54: #{tpu_custom_call.1} parent=11 // pred_check_branch
          %470 = sbr.rel (%p468) target = $region56
        $region55: #{tpu_custom_call.1} parent=11 // pred_region
          %s472 = ssub.s32 16, 16
          %473 = vsyncadd [#allocation22], %s472
          %s475 = sshll.u32 [#allocation21], 4
          %s476 = int_to_ptr.vmem [resolvable:$true] %s475
          %478 = dma.hbm_to_vmem [thread:$0]  %s11, 16, %s476, [#allocation22]
        $region56: #{tpu_custom_call.1} parent=11 // pred_fallthru
          _
        // Predicated region
        $region57: #{tpu_custom_call.1} parent=11 // pred_check
          %p479 = pneg %p309
        $region58: #{tpu_custom_call.1} parent=11 // pred_check_branch
          %481 = sbr.rel (%p479) target = $region60
        $region59: #{tpu_custom_call.1} parent=11 // pred_region
          %s483 = ssub.s32 16, 16
          %484 = vsyncadd [#allocation22], %s483
          %s486 = sshll.u32 [#allocation23], 4
          %s487 = int_to_ptr.vmem [resolvable:$true] %s486
          %489 = dma.hbm_to_vmem [thread:$0]  %s12, 16, %s487, [#allocation22]
        $region60: #{tpu_custom_call.1} parent=11 // pred_fallthru
          _
      $region12: #{tpu_custom_call.1} parent=5 // pred_fallthru
        _
      %p490 = scmp.lt.s32.totalorder %s31, 2
      // Predicated region
      $region61: #{tpu_custom_call.1} parent=5 // pred_check
        %p491 = pneg %p490
      $region62: #{tpu_custom_call.1} parent=5 // pred_check_branch
        %493 = sbr.rel (%p491) target = $region64
      $region63: #{tpu_custom_call.1} parent=5 // pred_region
        // Predicated region
        $region65: #{tpu_custom_call.1} parent=63 // pred_check
          %p494 = pneg %p51
        $region66: #{tpu_custom_call.1} parent=63 // pred_check_branch
          %496 = sbr.rel (%p494) target = $region68
        $region67: #{tpu_custom_call.1} parent=63 // pred_region
          %s497 = sand.u32 %s41, 1
          %s498 = scalar_lea.sflag [#allocation4], %s497
          %s499 = sand.u32 %s41, 1
          %s500 = smul.addr %s499, 16
          %s501 = scalar_lea.vmem [#allocation3], %s500
          %s502 = smul.u32 2, %s31
          %s504 = ssub.s32 256, 256
          %505 = vsyncadd %s498, %s504
          %s506 = smul.addr %s502, 128
          %s507 = scalar_lea.hbm %s0, %s506
          %s508 = sshll.u32 %s501, 4
          %s509 = int_to_ptr.vmem [resolvable:$true] %s508
          %514 = dma.hbm_to_vmem [thread:$0]  %s507, 256, %s509, %s498, 128, 128, 8
        $region68: #{tpu_custom_call.1} parent=63 // pred_fallthru
          _
      $region64: #{tpu_custom_call.1} parent=5 // pred_fallthru
        _
      %p515 = scmp.le.s32.totalorder 1, %s31
      %p516 = scmp.lt.s32.totalorder %s31, 3
      %p517 = pnand %p515, %p516
      %p518 = pneg %p517
      // Predicated region
      $region69: #{tpu_custom_call.1} parent=5 // pred_check
        _
      $region70: #{tpu_custom_call.1} parent=5 // pred_check_branch
        %520 = sbr.rel (%p517) target = $region72
      $region71: #{tpu_custom_call.1} parent=5 // pred_region
        %s521 = ssub.s32 %s31, 1
        %s522 = sand.u32 %s44, 1
        %s523 = scalar_lea.sflag [#allocation4], %s522
        %s524 = sand.u32 %s44, 1
        %s525 = smul.addr %s524, 16
        %s526 = scalar_lea.vmem [#allocation3], %s525
        // Predicated region
        $region73: #{tpu_custom_call.1} parent=71 // pred_check
          %p527 = pneg %p57
        $region74: #{tpu_custom_call.1} parent=71 // pred_check_branch
          %529 = sbr.rel (%p527) target = $region76
        $region75: #{tpu_custom_call.1} parent=71 // pred_region
          %530 = dma.done %s523, 256
        $region76: #{tpu_custom_call.1} parent=71 // pred_fallthru
          _
        // Predicated region
        $region77: #{tpu_custom_call.1} parent=71 // pred_check
          %p531 = pneg %p78
        $region78: #{tpu_custom_call.1} parent=71 // pred_check_branch
          %533 = sbr.rel (%p531) target = $region80
        $region79: #{tpu_custom_call.1} parent=71 // pred_region
          %534 = dma.done [#allocation7], 256
        $region80: #{tpu_custom_call.1} parent=71 // pred_fallthru
          _
        // Predicated region
        $region81: #{tpu_custom_call.1} parent=71 // pred_check
          %p535 = pneg %p99
        $region82: #{tpu_custom_call.1} parent=71 // pred_check_branch
          %537 = sbr.rel (%p535) target = $region84
        $region83: #{tpu_custom_call.1} parent=71 // pred_region
          %538 = dma.done [#allocation7], 16
        $region84: #{tpu_custom_call.1} parent=71 // pred_fallthru
          _
        // Predicated region
        $region85: #{tpu_custom_call.1} parent=71 // pred_check
          %p539 = pneg %p120
        $region86: #{tpu_custom_call.1} parent=71 // pred_check_branch
          %541 = sbr.rel (%p539) target = $region88
        $region87: #{tpu_custom_call.1} parent=71 // pred_region
          %542 = dma.done [#allocation10], 256
        $region88: #{tpu_custom_call.1} parent=71 // pred_fallthru
          _
        // Predicated region
        $region89: #{tpu_custom_call.1} parent=71 // pred_check
          %p543 = pneg %p141
        $region90: #{tpu_custom_call.1} parent=71 // pred_check_branch
          %545 = sbr.rel (%p543) target = $region92
        $region91: #{tpu_custom_call.1} parent=71 // pred_region
          %546 = dma.done [#allocation10], 16
        $region92: #{tpu_custom_call.1} parent=71 // pred_fallthru
          _
        // Predicated region
        $region93: #{tpu_custom_call.1} parent=71 // pred_check
          %p547 = pneg %p162
        $region94: #{tpu_custom_call.1} parent=71 // pred_check_branch
          %549 = sbr.rel (%p547) target = $region96
        $region95: #{tpu_custom_call.1} parent=71 // pred_region
          %550 = dma.done [#allocation13], 16
        $region96: #{tpu_custom_call.1} parent=71 // pred_fallthru
          _
        // Predicated region
        $region97: #{tpu_custom_call.1} parent=71 // pred_check
          %p551 = pneg %p183
        $region98: #{tpu_custom_call.1} parent=71 // pred_check_branch
          %553 = sbr.rel (%p551) target = $region100
        $region99: #{tpu_custom_call.1} parent=71 // pred_region
          %554 = dma.done [#allocation13], 16
        $region100: #{tpu_custom_call.1} parent=71 // pred_fallthru
          _
        // Predicated region
        $region101: #{tpu_custom_call.1} parent=71 // pred_check
          %p555 = pneg %p204
        $region102: #{tpu_custom_call.1} parent=71 // pred_check_branch
          %557 = sbr.rel (%p555) target = $region104
        $region103: #{tpu_custom_call.1} parent=71 // pred_region
          %558 = dma.done [#allocation16], 256
        $region104: #{tpu_custom_call.1} parent=71 // pred_fallthru
          _
        // Predicated region
        $region105: #{tpu_custom_call.1} parent=71 // pred_check
          %p559 = pneg %p225
        $region106: #{tpu_custom_call.1} parent=71 // pred_check_branch
          %561 = sbr.rel (%p559) target = $region108
        $region107: #{tpu_custom_call.1} parent=71 // pred_region
          %562 = dma.done [#allocation16], 16
        $region108: #{tpu_custom_call.1} parent=71 // pred_fallthru
          _
        // Predicated region
        $region109: #{tpu_custom_call.1} parent=71 // pred_check
          %p563 = pneg %p246
        $region110: #{tpu_custom_call.1} parent=71 // pred_check_branch
          %565 = sbr.rel (%p563) target = $region112
        $region111: #{tpu_custom_call.1} parent=71 // pred_region
          %566 = dma.done [#allocation19], 512
        $region112: #{tpu_custom_call.1} parent=71 // pred_fallthru
          _
        // Predicated region
        $region113: #{tpu_custom_call.1} parent=71 // pred_check
          %p567 = pneg %p267
        $region114: #{tpu_custom_call.1} parent=71 // pred_check_branch
          %569 = sbr.rel (%p567) target = $region116
        $region115: #{tpu_custom_call.1} parent=71 // pred_region
          %570 = dma.done [#allocation19], 16
        $region116: #{tpu_custom_call.1} parent=71 // pred_fallthru
          _
        // Predicated region
        $region117: #{tpu_custom_call.1} parent=71 // pred_check
          %p571 = pneg %p288
        $region118: #{tpu_custom_call.1} parent=71 // pred_check_branch
          %573 = sbr.rel (%p571) target = $region120
        $region119: #{tpu_custom_call.1} parent=71 // pred_region
          %574 = dma.done [#allocation22], 16
        $region120: #{tpu_custom_call.1} parent=71 // pred_fallthru
          _
        // Predicated region
        $region121: #{tpu_custom_call.1} parent=71 // pred_check
          %p575 = pneg %p309
        $region122: #{tpu_custom_call.1} parent=71 // pred_check_branch
          %577 = sbr.rel (%p575) target = $region124
        $region123: #{tpu_custom_call.1} parent=71 // pred_region
          %578 = dma.done [#allocation22], 16
        $region124: #{tpu_custom_call.1} parent=71 // pred_fallthru
          _
        %s579 = sand.u32 %s44, 1
        %s580 = scalar_lea.sflag [#allocation4], %s579
        %s581 = sand.u32 %s44, 1
        %s582 = smul.addr %s581, 16
        %s583 = scalar_lea.vmem [#allocation3], %s582
        %p584 = pneg %p57
        %p585 = pneg %p54
        %p586 = pneg %p78
        %p587 = pneg %p75
        %p588 = pneg %p99
        %p589 = pneg %p96
        %p590 = pneg %p120
        %p591 = pneg %p117
        %p592 = pneg %p141
        %p593 = pneg %p138
        %p594 = pneg %p162
        %p595 = pneg %p159
        %p596 = pneg %p183
        %p597 = pneg %p180
        %p598 = pneg %p204
        %p599 = pneg %p201
        %p600 = pneg %p225
        %p601 = pneg %p222
        %p602 = pneg %p246
        %p603 = pneg %p243
        %p604 = pneg %p267
        %p605 = pneg %p264
        %p606 = pneg %p288
        %p607 = pneg %p285
        %p608 = pneg %p309
        %p609 = pneg %p306
        %p610 = pneg %p335
        %p611 = pneg %p332
        %s612 = sand.u32 %s322, 1
        %s613 = scalar_lea.sflag [#allocation5], %s612
        %s614 = sand.u32 %s322, 1
        %s615 = smul.addr %s614, 16
        %s616 = scalar_lea.vmem [#allocation24], %s615
        %s617 = smul.u32 2, %s36
        %s618 = smul.u32 2, %s36
        %v620 = vld [vmem:[%s526] sm:$0xff]
        %v621 = vld [vmem:[%s526 + $0x8] sm:$0xff]
        %v622 = vpack.c.bf16 %v621, %v620
        %v623 = vld [vmem:[#allocation6] sm:$0xf]
        %v624 = vld [vmem:[#allocation6 + $0x4] sm:$0xf]
        %v625 = vld [vmem:[#allocation6 + $0x8] sm:$0xf]
        %v626 = vld [vmem:[#allocation6 + $0xc] sm:$0xf]
        %v627 = vld [vmem:[#allocation8] sm:$0x1]
        %v629 = vlaneseq
        %v630 = vshrl.u32 %v629, 7
        %v631 = vsub.s32 0, %v630
        %v632 = vrot.slane %v627, %v631
        %v638 = vunpack.c.l.b16 %v623
        %v639 = vunpack.c.l.b16 %v624
        %v640 = vunpack.c.l.b16 %v625
        %v641 = vunpack.c.l.b16 %v626
        %v642 = vpack.c.b16 %v639, %v638
        %v643 = vpack.c.b16 %v641, %v640
        %vm646 = vcmask 261120
        %v648 = vsel %vm646, %v622, 0
        %650 = vmatprep.subr.bf16.mxu0 0
        %651 = vmatpush1.bf16.msra.mxu0 %v642
        %652 = vmatprep.subr.bf16.mxu0 0
        %653 = vmatpush1.bf16.msra.mxu0 %v643
        %654 = vmatprep.subr.bf16.mxu0 0
        %655 = vmatpush1.bf16.msra.mxu0 0
        %656 = vmatprep.subr.bf16.mxu0 0
        %657 = vmatpush1.bf16.msra.mxu0 0
        %658 = vmatprep.subr.bf16.mxu0 0
        %659 = vmatpush1.bf16.msra.mxu0 0
        %660 = vmatprep.subr.bf16.mxu0 0
        %661 = vmatpush1.bf16.msra.mxu0 0
        %662 = vmatprep.subr.bf16.mxu0 0
        %663 = vmatpush1.bf16.msra.mxu0 0
        %664 = vmatprep.subr.bf16.mxu0 0
        %665 = vmatpush1.bf16.msra.mxu0 0
        %666 = vmatprep.subr.bf16.mxu0 0
        %667 = vmatpush1.bf16.msra.mxu0 0
        %668 = vmatprep.subr.bf16.mxu0 0
        %669 = vmatpush1.bf16.msra.mxu0 0
        %670 = vmatprep.subr.bf16.mxu0 0
        %671 = vmatpush1.bf16.msra.mxu0 0
        %672 = vmatprep.subr.bf16.mxu0 0
        %673 = vmatpush1.bf16.msra.mxu0 0
        %674 = vmatprep.subr.bf16.mxu0 0
        %675 = vmatpush1.bf16.msra.mxu0 0
        %676 = vmatprep.subr.bf16.mxu0 0
        %677 = vmatpush1.bf16.msra.mxu0 0
        %678 = vmatprep.subr.bf16.mxu0 0
        %679 = vmatpush1.bf16.msra.mxu0 0
        %680 = vmatprep.subr.bf16.mxu0 0
        %681 = vmatpush1.bf16.msra.mxu0 0
        %682 = vmatprep.mubr.bf16.mxu0 0
        %683 = vmatmul.mubr.bf16.gmra.mrb[0].mxu0 %v648
        %v684 = vpop.f32.mrb[0].mxu0
        %v685 = vadd.f32 %v632, %v684
        %v686 = vpop.f32.mrb[0].mxu0
        %v687 = vpop.f32.mrb[0].mxu0
        %v688 = vadd.f32 %v632, %v687
        %v689 = vpop.f32.mrb[0].mxu0
        %690 = vdwg.mxu0
        %v691 = vpack.c.bf16 %v688, %v685
        %v693 = vunpack.c.l.b16 %v691
        %v694 = vunpack.c.h.b16 %v691
        %v695 = vpack.c.b16 %v693, %v693
        %v696 = vpack.c.b16 %v694, %v694
        %697 = vrot.lane.b32.xlu0 %v695, 96
        %v698 = vpop.permute.xlu0 %697
        %vm699 = vcmask 64512
        %v701 = vsel %vm699, %v695, 0
        %v704 = vsel %vm699, %v698, 0
        %706 = vmatprep.subr.bf16.mxu0 0
        %707 = vmatpush1.bf16.xpose.msra.mxu0 %v704
        %708 = vmatprep.subr.bf16.mxu0 0
        %709 = vmatpush1.bf16.xpose.msra.mxu0 0
        %710 = vmatprep.subr.bf16.mxu0 0
        %711 = vmatpush1.bf16.xpose.msra.mxu0 0
        %712 = vmatprep.subr.bf16.mxu0 0
        %713 = vmatpush1.bf16.xpose.msra.mxu0 0
        %714 = vmatprep.subr.bf16.mxu0 0
        %715 = vmatpush1.bf16.xpose.msra.mxu0 0
        %716 = vmatprep.subr.bf16.mxu0 0
        %717 = vmatpush1.bf16.xpose.msra.mxu0 0
        %718 = vmatprep.subr.bf16.mxu0 0
        %719 = vmatpush1.bf16.xpose.msra.mxu0 0
        %720 = vmatprep.subr.bf16.mxu0 0
        %721 = vmatpush1.bf16.xpose.msra.mxu0 0
        %722 = vmatprep.subr.bf16.mxu0 0
        %723 = vmatpush1.bf16.xpose.msra.mxu0 0
        %724 = vmatprep.subr.bf16.mxu0 0
        %725 = vmatpush1.bf16.xpose.msra.mxu0 0
        %726 = vmatprep.subr.bf16.mxu0 0
        %727 = vmatpush1.bf16.xpose.msra.mxu0 0
        %728 = vmatprep.subr.bf16.mxu0 0
        %729 = vmatpush1.bf16.xpose.msra.mxu0 0
        %730 = vmatprep.subr.bf16.mxu0 0
        %731 = vmatpush1.bf16.xpose.msra.mxu0 0
        %732 = vmatprep.subr.bf16.mxu0 0
        %733 = vmatpush1.bf16.xpose.msra.mxu0 0
        %734 = vmatprep.subr.bf16.mxu0 0
        %735 = vmatpush1.bf16.xpose.msra.mxu0 0
        %736 = vmatprep.subr.bf16.mxu0 0
        %737 = vmatpush1.bf16.xpose.msra.mxu0 0
        %738 = vmatprep.mubr.bf16.mxu0 0
        %739 = vmatmul.mubr.bf16.gmra.mrb[0].mxu0 %v701
        %v740 = vpop.f32.mrb[0].mxu0
        %v741 = vadd.f32 0.0, %v740
        %v742 = vpop.f32.mrb[0].mxu0
        %v743 = vpop.f32.mrb[0].mxu0
        %v744 = vpop.f32.mrb[0].mxu0
        %745 = vdwg.mxu0
        %746 = vrot.lane.b32.xlu0 %v696, 96
        %v747 = vpop.permute.xlu0 %746
        %v749 = vsel %vm699, %v696, 0
        %v752 = vsel %vm699, %v747, 0
        %754 = vmatprep.subr.bf16.mxu0 0
        %755 = vmatpush1.bf16.xpose.msra.mxu0 %v752
        %756 = vmatprep.subr.bf16.mxu0 0
        %757 = vmatpush1.bf16.xpose.msra.mxu0 0
        %758 = vmatprep.subr.bf16.mxu0 0
        %759 = vmatpush1.bf16.xpose.msra.mxu0 0
        %760 = vmatprep.subr.bf16.mxu0 0
        %761 = vmatpush1.bf16.xpose.msra.mxu0 0
        %762 = vmatprep.subr.bf16.mxu0 0
        %763 = vmatpush1.bf16.xpose.msra.mxu0 0
        %764 = vmatprep.subr.bf16.mxu0 0
        %765 = vmatpush1.bf16.xpose.msra.mxu0 0
        %766 = vmatprep.subr.bf16.mxu0 0
        %767 = vmatpush1.bf16.xpose.msra.mxu0 0
        %768 = vmatprep.subr.bf16.mxu0 0
        %769 = vmatpush1.bf16.xpose.msra.mxu0 0
        %770 = vmatprep.subr.bf16.mxu0 0
        %771 = vmatpush1.bf16.xpose.msra.mxu0 0
        %772 = vmatprep.subr.bf16.mxu0 0
        %773 = vmatpush1.bf16.xpose.msra.mxu0 0
        %774 = vmatprep.subr.bf16.mxu0 0
        %775 = vmatpush1.bf16.xpose.msra.mxu0 0
        %776 = vmatprep.subr.bf16.mxu0 0
        %777 = vmatpush1.bf16.xpose.msra.mxu0 0
        %778 = vmatprep.subr.bf16.mxu0 0
        %779 = vmatpush1.bf16.xpose.msra.mxu0 0
        %780 = vmatprep.subr.bf16.mxu0 0
        %781 = vmatpush1.bf16.xpose.msra.mxu0 0
        %782 = vmatprep.subr.bf16.mxu0 0
        %783 = vmatpush1.bf16.xpose.msra.mxu0 0
        %784 = vmatprep.subr.bf16.mxu0 0
        %785 = vmatpush1.bf16.xpose.msra.mxu0 0
        %786 = vmatprep.mubr.bf16.mxu0 0
        %787 = vmatmul.mubr.bf16.gmra.mrb[0].mxu0 %v749
        %v788 = vpop.f32.mrb[0].mxu0
        %v789 = vadd.f32 0.0, %v788
        %v790 = vpop.f32.mrb[0].mxu0
        %v791 = vpop.f32.mrb[0].mxu0
        %v792 = vpop.f32.mrb[0].mxu0
        %793 = vdwg.mxu0
        %v794 = vsel %vm699, %v741, -inf
        %795 = vmax.xlane.f32.xlu0 %v794
        %v796 = vpop.xlane.xlu0 %795
        %v797 = vsel %vm699, %v789, -inf
        %798 = vmax.xlane.f32.xlu0 %v797
        %v799 = vpop.xlane.xlu0 %798
        %v800 = vsub.f32 %v741, %v796
        %v801 = vsub.f32 %v789, %v799
        %v802 = vmul.f32 %v800, 1.442695
        %v803 = vpow.pop %v802
        %v804 = vmul.f32 %v801, 1.442695
        %v805 = vpow.pop %v804
        %v806 = vsel %vm699, %v803, 0.0
        %807 = vadd.xlane.f32.xlu0 %v806
        %v808 = vpop.xlane.xlu0 %807
        %v809 = vsel %vm699, %v805, 0.0
        %810 = vadd.xlane.f32.xlu0 %v809
        %v811 = vpop.xlane.xlu0 %810
        %v812 = vrcp.pop %v808
        %v813 = vrcp.pop %v811
        %v814 = vmul.f32 %v803, %v812
        %v815 = vmul.f32 %v805, %v813
        %v816 = vpack.c.bf16 %v814, %v814
        %v817 = vpack.c.bf16 %v815, %v815
        %818 = vrot.lane.b32.xlu0 %v695, 64
        %v819 = vpop.permute.xlu0 %818
        %v821 = vsel %vm699, %v816, 0
        %vm823 = vcmask 1043456
        %v825 = vsel %vm823, %v819, 0
        %827 = vmatprep.subr.bf16.mxu0 0
        %828 = vmatpush1.bf16.msra.mxu0 %v825
        %829 = vmatprep.subr.bf16.mxu0 0
        %830 = vmatpush1.bf16.msra.mxu0 0
        %831 = vmatprep.subr.bf16.mxu0 0
        %832 = vmatpush1.bf16.msra.mxu0 0
        %833 = vmatprep.subr.bf16.mxu0 0
        %834 = vmatpush1.bf16.msra.mxu0 0
        %835 = vmatprep.subr.bf16.mxu0 0
        %836 = vmatpush1.bf16.msra.mxu0 0
        %837 = vmatprep.subr.bf16.mxu0 0
        %838 = vmatpush1.bf16.msra.mxu0 0
        %839 = vmatprep.subr.bf16.mxu0 0
        %840 = vmatpush1.bf16.msra.mxu0 0
        %841 = vmatprep.subr.bf16.mxu0 0
        %842 = vmatpush1.bf16.msra.mxu0 0
        %843 = vmatprep.subr.bf16.mxu0 0
        %844 = vmatpush1.bf16.msra.mxu0 0
        %845 = vmatprep.subr.bf16.mxu0 0
        %846 = vmatpush1.bf16.msra.mxu0 0
        %847 = vmatprep.subr.bf16.mxu0 0
        %848 = vmatpush1.bf16.msra.mxu0 0
        %849 = vmatprep.subr.bf16.mxu0 0
        %850 = vmatpush1.bf16.msra.mxu0 0
        %851 = vmatprep.subr.bf16.mxu0 0
        %852 = vmatpush1.bf16.msra.mxu0 0
        %853 = vmatprep.subr.bf16.mxu0 0
        %854 = vmatpush1.bf16.msra.mxu0 0
        %855 = vmatprep.subr.bf16.mxu0 0
        %856 = vmatpush1.bf16.msra.mxu0 0
        %857 = vmatprep.subr.bf16.mxu0 0
        %858 = vmatpush1.bf16.msra.mxu0 0
        %859 = vmatprep.mubr.bf16.mxu0 0
        %860 = vmatmul.mubr.bf16.gmra.mrb[0].mxu0 %v821
        %v861 = vpop.f32.mrb[0].mxu0
        %v862 = vadd.f32 0.0, %v861
        %v863 = vpop.f32.mrb[0].mxu0
        %v864 = vpop.f32.mrb[0].mxu0
        %v865 = vpop.f32.mrb[0].mxu0
        %866 = vdwg.mxu0
        %867 = vrot.lane.b32.xlu0 %v696, 64
        %v868 = vpop.permute.xlu0 %867
        %v870 = vsel %vm699, %v817, 0
        %v873 = vsel %vm823, %v868, 0
        %875 = vmatprep.subr.bf16.mxu0 0
        %876 = vmatpush1.bf16.msra.mxu0 %v873
        %877 = vmatprep.subr.bf16.mxu0 0
        %878 = vmatpush1.bf16.msra.mxu0 0
        %879 = vmatprep.subr.bf16.mxu0 0
        %880 = vmatpush1.bf16.msra.mxu0 0
        %881 = vmatprep.subr.bf16.mxu0 0
        %882 = vmatpush1.bf16.msra.mxu0 0
        %883 = vmatprep.subr.bf16.mxu0 0
        %884 = vmatpush1.bf16.msra.mxu0 0
        %885 = vmatprep.subr.bf16.mxu0 0
        %886 = vmatpush1.bf16.msra.mxu0 0
        %887 = vmatprep.subr.bf16.mxu0 0
        %888 = vmatpush1.bf16.msra.mxu0 0
        %889 = vmatprep.subr.bf16.mxu0 0
        %890 = vmatpush1.bf16.msra.mxu0 0
        %891 = vmatprep.subr.bf16.mxu0 0
        %892 = vmatpush1.bf16.msra.mxu0 0
        %893 = vmatprep.subr.bf16.mxu0 0
        %894 = vmatpush1.bf16.msra.mxu0 0
        %895 = vmatprep.subr.bf16.mxu0 0
        %896 = vmatpush1.bf16.msra.mxu0 0
        %897 = vmatprep.subr.bf16.mxu0 0
        %898 = vmatpush1.bf16.msra.mxu0 0
        %899 = vmatprep.subr.bf16.mxu0 0
        %900 = vmatpush1.bf16.msra.mxu0 0
        %901 = vmatprep.subr.bf16.mxu0 0
        %902 = vmatpush1.bf16.msra.mxu0 0
        %903 = vmatprep.subr.bf16.mxu0 0
        %904 = vmatpush1.bf16.msra.mxu0 0
        %905 = vmatprep.subr.bf16.mxu0 0
        %906 = vmatpush1.bf16.msra.mxu0 0
        %907 = vmatprep.mubr.bf16.mxu0 0
        %908 = vmatmul.mubr.bf16.gmra.mrb[0].mxu0 %v870
        %v909 = vpop.f32.mrb[0].mxu0
        %v910 = vadd.f32 0.0, %v909
        %v911 = vpop.f32.mrb[0].mxu0
        %v912 = vpop.f32.mrb[0].mxu0
        %v913 = vpop.f32.mrb[0].mxu0
        %914 = vdwg.mxu0
        %v915 = vpack.c.bf16 %v910, %v862
        %916 = vst.msk [vmem:[#allocation2] sm:$0xff] %vm699, %v915
        %917 = vrot.lane.b32.xlu0 %v695, 120
        %v918 = vpop.permute.xlu0 %917
        %919 = vrot.lane.b32.xlu0 %v695, 88
        %v920 = vpop.permute.xlu0 %919
        %v922 = vsel %vm699, %v918, 0
        %v925 = vsel %vm699, %v920, 0
        %927 = vmatprep.subr.bf16.mxu0 0
        %928 = vmatpush1.bf16.xpose.msra.mxu0 %v925
        %929 = vmatprep.subr.bf16.mxu0 0
        %930 = vmatpush1.bf16.xpose.msra.mxu0 0
        %931 = vmatprep.subr.bf16.mxu0 0
        %932 = vmatpush1.bf16.xpose.msra.mxu0 0
        %933 = vmatprep.subr.bf16.mxu0 0
        %934 = vmatpush1.bf16.xpose.msra.mxu0 0
        %935 = vmatprep.subr.bf16.mxu0 0
        %936 = vmatpush1.bf16.xpose.msra.mxu0 0
        %937 = vmatprep.subr.bf16.mxu0 0
        %938 = vmatpush1.bf16.xpose.msra.mxu0 0
        %939 = vmatprep.subr.bf16.mxu0 0
        %940 = vmatpush1.bf16.xpose.msra.mxu0 0
        %941 = vmatprep.subr.bf16.mxu0 0
        %942 = vmatpush1.bf16.xpose.msra.mxu0 0
        %943 = vmatprep.subr.bf16.mxu0 0
        %944 = vmatpush1.bf16.xpose.msra.mxu0 0
        %945 = vmatprep.subr.bf16.mxu0 0
        %946 = vmatpush1.bf16.xpose.msra.mxu0 0
        %947 = vmatprep.subr.bf16.mxu0 0
        %948 = vmatpush1.bf16.xpose.msra.mxu0 0
        %949 = vmatprep.subr.bf16.mxu0 0
        %950 = vmatpush1.bf16.xpose.msra.mxu0 0
        %951 = vmatprep.subr.bf16.mxu0 0
        %952 = vmatpush1.bf16.xpose.msra.mxu0 0
        %953 = vmatprep.subr.bf16.mxu0 0
        %954 = vmatpush1.bf16.xpose.msra.mxu0 0
        %955 = vmatprep.subr.bf16.mxu0 0
        %956 = vmatpush1.bf16.xpose.msra.mxu0 0
        %957 = vmatprep.subr.bf16.mxu0 0
        %958 = vmatpush1.bf16.xpose.msra.mxu0 0
        %959 = vmatprep.mubr.bf16.mxu0 0
        %960 = vmatmul.mubr.bf16.gmra.mrb[0].mxu0 %v922
        %v961 = vpop.f32.mrb[0].mxu0
        %v962 = vadd.f32 0.0, %v961
        %v963 = vpop.f32.mrb[0].mxu0
        %v964 = vpop.f32.mrb[0].mxu0
        %v965 = vpop.f32.mrb[0].mxu0
        %966 = vdwg.mxu0
        %967 = vrot.lane.b32.xlu0 %v696, 120
        %v968 = vpop.permute.xlu0 %967
        %969 = vrot.lane.b32.xlu0 %v696, 88
        %v970 = vpop.permute.xlu0 %969
        %v972 = vsel %vm699, %v968, 0
        %v975 = vsel %vm699, %v970, 0
        %977 = vmatprep.subr.bf16.mxu0 0
        %978 = vmatpush1.bf16.xpose.msra.mxu0 %v975
        %979 = vmatprep.subr.bf16.mxu0 0
        %980 = vmatpush1.bf16.xpose.msra.mxu0 0
        %981 = vmatprep.subr.bf16.mxu0 0
        %982 = vmatpush1.bf16.xpose.msra.mxu0 0
        %983 = vmatprep.subr.bf16.mxu0 0
        %984 = vmatpush1.bf16.xpose.msra.mxu0 0
        %985 = vmatprep.subr.bf16.mxu0 0
        %986 = vmatpush1.bf16.xpose.msra.mxu0 0
        %987 = vmatprep.subr.bf16.mxu0 0
        %988 = vmatpush1.bf16.xpose.msra.mxu0 0
        %989 = vmatprep.subr.bf16.mxu0 0
        %990 = vmatpush1.bf16.xpose.msra.mxu0 0
        %991 = vmatprep.subr.bf16.mxu0 0
        %992 = vmatpush1.bf16.xpose.msra.mxu0 0
        %993 = vmatprep.subr.bf16.mxu0 0
        %994 = vmatpush1.bf16.xpose.msra.mxu0 0
        %995 = vmatprep.subr.bf16.mxu0 0
        %996 = vmatpush1.bf16.xpose.msra.mxu0 0
        %997 = vmatprep.subr.bf16.mxu0 0
        %998 = vmatpush1.bf16.xpose.msra.mxu0 0
        %999 = vmatprep.subr.bf16.mxu0 0
        %1000 = vmatpush1.bf16.xpose.msra.mxu0 0
        %1001 = vmatprep.subr.bf16.mxu0 0
        %1002 = vmatpush1.bf16.xpose.msra.mxu0 0
        %1003 = vmatprep.subr.bf16.mxu0 0
        %1004 = vmatpush1.bf16.xpose.msra.mxu0 0
        %1005 = vmatprep.subr.bf16.mxu0 0
        %1006 = vmatpush1.bf16.xpose.msra.mxu0 0
        %1007 = vmatprep.subr.bf16.mxu0 0
        %1008 = vmatpush1.bf16.xpose.msra.mxu0 0
        %1009 = vmatprep.mubr.bf16.mxu0 0
        %1010 = vmatmul.mubr.bf16.gmra.mrb[0].mxu0 %v972
        %v1011 = vpop.f32.mrb[0].mxu0
        %v1012 = vadd.f32 0.0, %v1011
        %v1013 = vpop.f32.mrb[0].mxu0
        %v1014 = vpop.f32.mrb[0].mxu0
        %v1015 = vpop.f32.mrb[0].mxu0
        %1016 = vdwg.mxu0
        %v1017 = vsel %vm699, %v962, -inf
        %1018 = vmax.xlane.f32.xlu0 %v1017
        %v1019 = vpop.xlane.xlu0 %1018
        %v1020 = vsel %vm699, %v1012, -inf
        %1021 = vmax.xlane.f32.xlu0 %v1020
        %v1022 = vpop.xlane.xlu0 %1021
        %v1023 = vsub.f32 %v962, %v1019
        %v1024 = vsub.f32 %v1012, %v1022
        %v1025 = vmul.f32 %v1023, 1.442695
        %v1026 = vpow.pop %v1025
        %v1027 = vmul.f32 %v1024, 1.442695
        %v1028 = vpow.pop %v1027
        %v1029 = vsel %vm699, %v1026, 0.0
        %1030 = vadd.xlane.f32.xlu0 %v1029
        %v1031 = vpop.xlane.xlu0 %1030
        %v1032 = vsel %vm699, %v1028, 0.0
        %1033 = vadd.xlane.f32.xlu0 %v1032
        %v1034 = vpop.xlane.xlu0 %1033
        %v1035 = vrcp.pop %v1031
        %v1036 = vrcp.pop %v1034
        %v1037 = vmul.f32 %v1026, %v1035
        %v1038 = vmul.f32 %v1028, %v1036
        %v1039 = vpack.c.bf16 %v1037, %v1037
        %v1040 = vpack.c.bf16 %v1038, %v1038
        %1041 = vrot.lane.b32.xlu0 %v695, 56
        %v1042 = vpop.permute.xlu0 %1041
        %v1044 = vsel %vm699, %v1039, 0
        %v1047 = vsel %vm823, %v1042, 0
        %1049 = vmatprep.subr.bf16.mxu0 0
        %1050 = vmatpush1.bf16.msra.mxu0 %v1047
        %1051 = vmatprep.subr.bf16.mxu0 0
        %1052 = vmatpush1.bf16.msra.mxu0 0
        %1053 = vmatprep.subr.bf16.mxu0 0
        %1054 = vmatpush1.bf16.msra.mxu0 0
        %1055 = vmatprep.subr.bf16.mxu0 0
        %1056 = vmatpush1.bf16.msra.mxu0 0
        %1057 = vmatprep.subr.bf16.mxu0 0
        %1058 = vmatpush1.bf16.msra.mxu0 0
        %1059 = vmatprep.subr.bf16.mxu0 0
        %1060 = vmatpush1.bf16.msra.mxu0 0
        %1061 = vmatprep.subr.bf16.mxu0 0
        %1062 = vmatpush1.bf16.msra.mxu0 0
        %1063 = vmatprep.subr.bf16.mxu0 0
        %1064 = vmatpush1.bf16.msra.mxu0 0
        %1065 = vmatprep.subr.bf16.mxu0 0
        %1066 = vmatpush1.bf16.msra.mxu0 0
        %1067 = vmatprep.subr.bf16.mxu0 0
        %1068 = vmatpush1.bf16.msra.mxu0 0
        %1069 = vmatprep.subr.bf16.mxu0 0
        %1070 = vmatpush1.bf16.msra.mxu0 0
        %1071 = vmatprep.subr.bf16.mxu0 0
        %1072 = vmatpush1.bf16.msra.mxu0 0
        %1073 = vmatprep.subr.bf16.mxu0 0
        %1074 = vmatpush1.bf16.msra.mxu0 0
        %1075 = vmatprep.subr.bf16.mxu0 0
        %1076 = vmatpush1.bf16.msra.mxu0 0
        %1077 = vmatprep.subr.bf16.mxu0 0
        %1078 = vmatpush1.bf16.msra.mxu0 0
        %1079 = vmatprep.subr.bf16.mxu0 0
        %1080 = vmatpush1.bf16.msra.mxu0 0
        %1081 = vmatprep.mubr.bf16.mxu0 0
        %1082 = vmatmul.mubr.bf16.gmra.mrb[0].mxu0 %v1044
        %v1083 = vpop.f32.mrb[0].mxu0
        %v1084 = vadd.f32 0.0, %v1083
        %v1085 = vpop.f32.mrb[0].mxu0
        %v1086 = vpop.f32.mrb[0].mxu0
        %v1087 = vpop.f32.mrb[0].mxu0
        %1088 = vdwg.mxu0
        %1089 = vrot.lane.b32.xlu0 %v696, 56
        %v1090 = vpop.permute.xlu0 %1089
        %v1092 = vsel %vm699, %v1040, 0
        %v1095 = vsel %vm823, %v1090, 0
        %1097 = vmatprep.subr.bf16.mxu0 0
        %1098 = vmatpush1.bf16.msra.mxu0 %v1095
        %1099 = vmatprep.subr.bf16.mxu0 0
        %1100 = vmatpush1.bf16.msra.mxu0 0
        %1101 = vmatprep.subr.bf16.mxu0 0
        %1102 = vmatpush1.bf16.msra.mxu0 0
        %1103 = vmatprep.subr.bf16.mxu0 0
        %1104 = vmatpush1.bf16.msra.mxu0 0
        %1105 = vmatprep.subr.bf16.mxu0 0
        %1106 = vmatpush1.bf16.msra.mxu0 0
        %1107 = vmatprep.subr.bf16.mxu0 0
        %1108 = vmatpush1.bf16.msra.mxu0 0
        %1109 = vmatprep.subr.bf16.mxu0 0
        %1110 = vmatpush1.bf16.msra.mxu0 0
        %1111 = vmatprep.subr.bf16.mxu0 0
        %1112 = vmatpush1.bf16.msra.mxu0 0
        %1113 = vmatprep.subr.bf16.mxu0 0
        %1114 = vmatpush1.bf16.msra.mxu0 0
        %1115 = vmatprep.subr.bf16.mxu0 0
        %1116 = vmatpush1.bf16.msra.mxu0 0
        %1117 = vmatprep.subr.bf16.mxu0 0
        %1118 = vmatpush1.bf16.msra.mxu0 0
        %1119 = vmatprep.subr.bf16.mxu0 0
        %1120 = vmatpush1.bf16.msra.mxu0 0
        %1121 = vmatprep.subr.bf16.mxu0 0
        %1122 = vmatpush1.bf16.msra.mxu0 0
        %1123 = vmatprep.subr.bf16.mxu0 0
        %1124 = vmatpush1.bf16.msra.mxu0 0
        %1125 = vmatprep.subr.bf16.mxu0 0
        %1126 = vmatpush1.bf16.msra.mxu0 0
        %1127 = vmatprep.subr.bf16.mxu0 0
        %1128 = vmatpush1.bf16.msra.mxu0 0
        %1129 = vmatprep.mubr.bf16.mxu0 0
        %1130 = vmatmul.mubr.bf16.gmra.mrb[0].mxu0 %v1092
        %v1131 = vpop.f32.mrb[0].mxu0
        %v1132 = vadd.f32 0.0, %v1131
        %v1133 = vpop.f32.mrb[0].mxu0
        %v1134 = vpop.f32.mrb[0].mxu0
        %v1135 = vpop.f32.mrb[0].mxu0
        %1136 = vdwg.mxu0
        %v1137 = vpack.c.bf16 %v1132, %v1084
        %1139 = vrot.lane.b32.xlu0 %v1137, 8
        %v1140 = vpop.permute.xlu0 %1139
        %vm1142 = vcmask 130112
        %1143 = vst.msk [vmem:[#allocation2] sm:$0xff] %vm1142, %v1140
        %1144 = vrot.lane.b32.xlu0 %v695, 112
        %v1145 = vpop.permute.xlu0 %1144
        %1146 = vrot.lane.b32.xlu0 %v695, 80
        %v1147 = vpop.permute.xlu0 %1146
        %v1149 = vsel %vm699, %v1145, 0
        %v1152 = vsel %vm699, %v1147, 0
        %1154 = vmatprep.subr.bf16.mxu0 0
        %1155 = vmatpush1.bf16.xpose.msra.mxu0 %v1152
        %1156 = vmatprep.subr.bf16.mxu0 0
        %1157 = vmatpush1.bf16.xpose.msra.mxu0 0
        %1158 = vmatprep.subr.bf16.mxu0 0
        %1159 = vmatpush1.bf16.xpose.msra.mxu0 0
        %1160 = vmatprep.subr.bf16.mxu0 0
        %1161 = vmatpush1.bf16.xpose.msra.mxu0 0
        %1162 = vmatprep.subr.bf16.mxu0 0
        %1163 = vmatpush1.bf16.xpose.msra.mxu0 0
        %1164 = vmatprep.subr.bf16.mxu0 0
        %1165 = vmatpush1.bf16.xpose.msra.mxu0 0
        %1166 = vmatprep.subr.bf16.mxu0 0
        %1167 = vmatpush1.bf16.xpose.msra.mxu0 0
        %1168 = vmatprep.subr.bf16.mxu0 0
        %1169 = vmatpush1.bf16.xpose.msra.mxu0 0
        %1170 = vmatprep.subr.bf16.mxu0 0
        %1171 = vmatpush1.bf16.xpose.msra.mxu0 0
        %1172 = vmatprep.subr.bf16.mxu0 0
        %1173 = vmatpush1.bf16.xpose.msra.mxu0 0
        %1174 = vmatprep.subr.bf16.mxu0 0
        %1175 = vmatpush1.bf16.xpose.msra.mxu0 0
        %1176 = vmatprep.subr.bf16.mxu0 0
        %1177 = vmatpush1.bf16.xpose.msra.mxu0 0
        %1178 = vmatprep.subr.bf16.mxu0 0
        %1179 = vmatpush1.bf16.xpose.msra.mxu0 0
        %1180 = vmatprep.subr.bf16.mxu0 0
        %1181 = vmatpush1.bf16.xpose.msra.mxu0 0
        %1182 = vmatprep.subr.bf16.mxu0 0
        %1183 = vmatpush1.bf16.xpose.msra.mxu0 0
        %1184 = vmatprep.subr.bf16.mxu0 0
        %1185 = vmatpush1.bf16.xpose.msra.mxu0 0
        %1186 = vmatprep.mubr.bf16.mxu0 0
        %1187 = vmatmul.mubr.bf16.gmra.mrb[0].mxu0 %v1149
        %v1188 = vpop.f32.mrb[0].mxu0
        %v1189 = vadd.f32 0.0, %v1188
        %v1190 = vpop.f32.mrb[0].mxu0
        %v1191 = vpop.f32.mrb[0].mxu0
        %v1192 = vpop.f32.mrb[0].mxu0
        %1193 = vdwg.mxu0
        %1194 = vrot.lane.b32.xlu0 %v696, 112
        %v1195 = vpop.permute.xlu0 %1194
        %1196 = vrot.lane.b32.xlu0 %v696, 80
        %v1197 = vpop.permute.xlu0 %1196
        %v1199 = vsel %vm699, %v1195, 0
        %v1202 = vsel %vm699, %v1197, 0
        %1204 = vmatprep.subr.bf16.mxu0 0
        %1205 = vmatpush1.bf16.xpose.msra.mxu0 %v1202
        %1206 = vmatprep.subr.bf16.mxu0 0
        %1207 = vmatpush1.bf16.xpose.msra.mxu0 0
        %1208 = vmatprep.subr.bf16.mxu0 0
        %1209 = vmatpush1.bf16.xpose.msra.mxu0 0
        %1210 = vmatprep.subr.bf16.mxu0 0
        %1211 = vmatpush1.bf16.xpose.msra.mxu0 0
        %1212 = vmatprep.subr.bf16.mxu0 0
        %1213 = vmatpush1.bf16.xpose.msra.mxu0 0
        %1214 = vmatprep.subr.bf16.mxu0 0
        %1215 = vmatpush1.bf16.xpose.msra.mxu0 0
        %1216 = vmatprep.subr.bf16.mxu0 0
        %1217 = vmatpush1.bf16.xpose.msra.mxu0 0
        %1218 = vmatprep.subr.bf16.mxu0 0
        %1219 = vmatpush1.bf16.xpose.msra.mxu0 0
        %1220 = vmatprep.subr.bf16.mxu0 0
        %1221 = vmatpush1.bf16.xpose.msra.mxu0 0
        %1222 = vmatprep.subr.bf16.mxu0 0
        %1223 = vmatpush1.bf16.xpose.msra.mxu0 0
        %1224 = vmatprep.subr.bf16.mxu0 0
        %1225 = vmatpush1.bf16.xpose.msra.mxu0 0
        %1226 = vmatprep.subr.bf16.mxu0 0
        %1227 = vmatpush1.bf16.xpose.msra.mxu0 0
        %1228 = vmatprep.subr.bf16.mxu0 0
        %1229 = vmatpush1.bf16.xpose.msra.mxu0 0
        %1230 = vmatprep.subr.bf16.mxu0 0
        %1231 = vmatpush1.bf16.xpose.msra.mxu0 0
        %1232 = vmatprep.subr.bf16.mxu0 0
        %1233 = vmatpush1.bf16.xpose.msra.mxu0 0
        %1234 = vmatprep.subr.bf16.mxu0 0
        %1235 = vmatpush1.bf16.xpose.msra.mxu0 0
        %1236 = vmatprep.mubr.bf16.mxu0 0
        %1237 = vmatmul.mubr.bf16.gmra.mrb[0].mxu0 %v1199
        %v1238 = vpop.f32.mrb[0].mxu0
        %v1239 = vadd.f32 0.0, %v1238
        %v1240 = vpop.f32.mrb[0].mxu0
        %v1241 = vpop.f32.mrb[0].mxu0
        %v1242 = vpop.f32.mrb[0].mxu0
        %1243 = vdwg.mxu0
        %v1244 = vsel %vm699, %v1189, -inf
        %1245 = vmax.xlane.f32.xlu0 %v1244
        %v1246 = vpop.xlane.xlu0 %1245
        %v1247 = vsel %vm699, %v1239, -inf
        %1248 = vmax.xlane.f32.xlu0 %v1247
        %v1249 = vpop.xlane.xlu0 %1248
        %v1250 = vsub.f32 %v1189, %v1246
        %v1251 = vsub.f32 %v1239, %v1249
        %v1252 = vmul.f32 %v1250, 1.442695
        %v1253 = vpow.pop %v1252
        %v1254 = vmul.f32 %v1251, 1.442695
        %v1255 = vpow.pop %v1254
        %v1256 = vsel %vm699, %v1253, 0.0
        %1257 = vadd.xlane.f32.xlu0 %v1256
        %v1258 = vpop.xlane.xlu0 %1257
        %v1259 = vsel %vm699, %v1255, 0.0
        %1260 = vadd.xlane.f32.xlu0 %v1259
        %v1261 = vpop.xlane.xlu0 %1260
        %v1262 = vrcp.pop %v1258
        %v1263 = vrcp.pop %v1261
        %v1264 = vmul.f32 %v1253, %v1262
        %v1265 = vmul.f32 %v1255, %v1263
        %v1266 = vpack.c.bf16 %v1264, %v1264
        %v1267 = vpack.c.bf16 %v1265, %v1265
        %1268 = vrot.lane.b32.xlu0 %v695, 48
        %v1269 = vpop.permute.xlu0 %1268
        %v1271 = vsel %vm699, %v1266, 0
        %v1274 = vsel %vm823, %v1269, 0
        %1276 = vmatprep.subr.bf16.mxu0 0
        %1277 = vmatpush1.bf16.msra.mxu0 %v1274
        %1278 = vmatprep.subr.bf16.mxu0 0
        %1279 = vmatpush1.bf16.msra.mxu0 0
        %1280 = vmatprep.subr.bf16.mxu0 0
        %1281 = vmatpush1.bf16.msra.mxu0 0
        %1282 = vmatprep.subr.bf16.mxu0 0
        %1283 = vmatpush1.bf16.msra.mxu0 0
        %1284 = vmatprep.subr.bf16.mxu0 0
        %1285 = vmatpush1.bf16.msra.mxu0 0
        %1286 = vmatprep.subr.bf16.mxu0 0
        %1287 = vmatpush1.bf16.msra.mxu0 0
        %1288 = vmatprep.subr.bf16.mxu0 0
        %1289 = vmatpush1.bf16.msra.mxu0 0
        %1290 = vmatprep.subr.bf16.mxu0 0
        %1291 = vmatpush1.bf16.msra.mxu0 0
        %1292 = vmatprep.subr.bf16.mxu0 0
        %1293 = vmatpush1.bf16.msra.mxu0 0
        %1294 = vmatprep.subr.bf16.mxu0 0
        %1295 = vmatpush1.bf16.msra.mxu0 0
        %1296 = vmatprep.subr.bf16.mxu0 0
        %1297 = vmatpush1.bf16.msra.mxu0 0
        %1298 = vmatprep.subr.bf16.mxu0 0
        %1299 = vmatpush1.bf16.msra.mxu0 0
        %1300 = vmatprep.subr.bf16.mxu0 0
        %1301 = vmatpush1.bf16.msra.mxu0 0
        %1302 = vmatprep.subr.bf16.mxu0 0
        %1303 = vmatpush1.bf16.msra.mxu0 0
        %1304 = vmatprep.subr.bf16.mxu0 0
        %1305 = vmatpush1.bf16.msra.mxu0 0
        %1306 = vmatprep.subr.bf16.mxu0 0
        %1307 = vmatpush1.bf16.msra.mxu0 0
        %1308 = vmatprep.mubr.bf16.mxu0 0
        %1309 = vmatmul.mubr.bf16.gmra.mrb[0].mxu0 %v1271
        %v1310 = vpop.f32.mrb[0].mxu0
        %v1311 = vadd.f32 0.0, %v1310
        %v1312 = vpop.f32.mrb[0].mxu0
        %v1313 = vpop.f32.mrb[0].mxu0
        %v1314 = vpop.f32.mrb[0].mxu0
        %1315 = vdwg.mxu0
        %1316 = vrot.lane.b32.xlu0 %v696, 48
        %v1317 = vpop.permute.xlu0 %1316
        %v1319 = vsel %vm699, %v1267, 0
        %v1322 = vsel %vm823, %v1317, 0
        %1324 = vmatprep.subr.bf16.mxu0 0
        %1325 = vmatpush1.bf16.msra.mxu0 %v1322
        %1326 = vmatprep.subr.bf16.mxu0 0
        %1327 = vmatpush1.bf16.msra.mxu0 0
        %1328 = vmatprep.subr.bf16.mxu0 0
        %1329 = vmatpush1.bf16.msra.mxu0 0
        %1330 = vmatprep.subr.bf16.mxu0 0
        %1331 = vmatpush1.bf16.msra.mxu0 0
        %1332 = vmatprep.subr.bf16.mxu0 0
        %1333 = vmatpush1.bf16.msra.mxu0 0
        %1334 = vmatprep.subr.bf16.mxu0 0
        %1335 = vmatpush1.bf16.msra.mxu0 0
        %1336 = vmatprep.subr.bf16.mxu0 0
        %1337 = vmatpush1.bf16.msra.mxu0 0
        %1338 = vmatprep.subr.bf16.mxu0 0
        %1339 = vmatpush1.bf16.msra.mxu0 0
        %1340 = vmatprep.subr.bf16.mxu0 0
        %1341 = vmatpush1.bf16.msra.mxu0 0
        %1342 = vmatprep.subr.bf16.mxu0 0
        %1343 = vmatpush1.bf16.msra.mxu0 0
        %1344 = vmatprep.subr.bf16.mxu0 0
        %1345 = vmatpush1.bf16.msra.mxu0 0
        %1346 = vmatprep.subr.bf16.mxu0 0
        %1347 = vmatpush1.bf16.msra.mxu0 0
        %1348 = vmatprep.subr.bf16.mxu0 0
        %1349 = vmatpush1.bf16.msra.mxu0 0
        %1350 = vmatprep.subr.bf16.mxu0 0
        %1351 = vmatpush1.bf16.msra.mxu0 0
        %1352 = vmatprep.subr.bf16.mxu0 0
        %1353 = vmatpush1.bf16.msra.mxu0 0
        %1354 = vmatprep.subr.bf16.mxu0 0
        %1355 = vmatpush1.bf16.msra.mxu0 0
        %1356 = vmatprep.mubr.bf16.mxu0 0
        %1357 = vmatmul.mubr.bf16.gmra.mrb[0].mxu0 %v1319
        %v1358 = vpop.f32.mrb[0].mxu0
        %v1359 = vadd.f32 0.0, %v1358
        %v1360 = vpop.f32.mrb[0].mxu0
        %v1361 = vpop.f32.mrb[0].mxu0
        %v1362 = vpop.f32.mrb[0].mxu0
        %1363 = vdwg.mxu0
        %v1364 = vpack.c.bf16 %v1359, %v1311
        %1366 = vrot.lane.b32.xlu0 %v1364, 16
        %v1367 = vpop.permute.xlu0 %1366
        %vm1369 = vcmask 195712
        %1370 = vst.msk [vmem:[#allocation2] sm:$0xff] %vm1369, %v1367
        %1371 = vrot.lane.b32.xlu0 %v695, 104
        %v1372 = vpop.permute.xlu0 %1371
        %1373 = vrot.lane.b32.xlu0 %v695, 72
        %v1374 = vpop.permute.xlu0 %1373
        %v1376 = vsel %vm699, %v1372, 0
        %v1379 = vsel %vm699, %v1374, 0
        %1381 = vmatprep.subr.bf16.mxu0 0
        %1382 = vmatpush1.bf16.xpose.msra.mxu0 %v1379
        %1383 = vmatprep.subr.bf16.mxu0 0
        %1384 = vmatpush1.bf16.xpose.msra.mxu0 0
        %1385 = vmatprep.subr.bf16.mxu0 0
        %1386 = vmatpush1.bf16.xpose.msra.mxu0 0
        %1387 = vmatprep.subr.bf16.mxu0 0
        %1388 = vmatpush1.bf16.xpose.msra.mxu0 0
        %1389 = vmatprep.subr.bf16.mxu0 0
        %1390 = vmatpush1.bf16.xpose.msra.mxu0 0
        %1391 = vmatprep.subr.bf16.mxu0 0
        %1392 = vmatpush1.bf16.xpose.msra.mxu0 0
        %1393 = vmatprep.subr.bf16.mxu0 0
        %1394 = vmatpush1.bf16.xpose.msra.mxu0 0
        %1395 = vmatprep.subr.bf16.mxu0 0
        %1396 = vmatpush1.bf16.xpose.msra.mxu0 0
        %1397 = vmatprep.subr.bf16.mxu0 0
        %1398 = vmatpush1.bf16.xpose.msra.mxu0 0
        %1399 = vmatprep.subr.bf16.mxu0 0
        %1400 = vmatpush1.bf16.xpose.msra.mxu0 0
        %1401 = vmatprep.subr.bf16.mxu0 0
        %1402 = vmatpush1.bf16.xpose.msra.mxu0 0
        %1403 = vmatprep.subr.bf16.mxu0 0
        %1404 = vmatpush1.bf16.xpose.msra.mxu0 0
        %1405 = vmatprep.subr.bf16.mxu0 0
        %1406 = vmatpush1.bf16.xpose.msra.mxu0 0
        %1407 = vmatprep.subr.bf16.mxu0 0
        %1408 = vmatpush1.bf16.xpose.msra.mxu0 0
        %1409 = vmatprep.subr.bf16.mxu0 0
        %1410 = vmatpush1.bf16.xpose.msra.mxu0 0
        %1411 = vmatprep.subr.bf16.mxu0 0
        %1412 = vmatpush1.bf16.xpose.msra.mxu0 0
        %1413 = vmatprep.mubr.bf16.mxu0 0
        %1414 = vmatmul.mubr.bf16.gmra.mrb[0].mxu0 %v1376
        %v1415 = vpop.f32.mrb[0].mxu0
        %v1416 = vadd.f32 0.0, %v1415
        %v1417 = vpop.f32.mrb[0].mxu0
        %v1418 = vpop.f32.mrb[0].mxu0
        %v1419 = vpop.f32.mrb[0].mxu0
        %1420 = vdwg.mxu0
        %1421 = vrot.lane.b32.xlu0 %v696, 104
        %v1422 = vpop.permute.xlu0 %1421
        %1423 = vrot.lane.b32.xlu0 %v696, 72
        %v1424 = vpop.permute.xlu0 %1423
        %v1426 = vsel %vm699, %v1422, 0
        %v1429 = vsel %vm699, %v1424, 0
        %1431 = vmatprep.subr.bf16.mxu0 0
        %1432 = vmatpush1.bf16.xpose.msra.mxu0 %v1429
        %1433 = vmatprep.subr.bf16.mxu0 0
        %1434 = vmatpush1.bf16.xpose.msra.mxu0 0
        %1435 = vmatprep.subr.bf16.mxu0 0
        %1436 = vmatpush1.bf16.xpose.msra.mxu0 0
        %1437 = vmatprep.subr.bf16.mxu0 0
        %1438 = vmatpush1.bf16.xpose.msra.mxu0 0
        %1439 = vmatprep.subr.bf16.mxu0 0
        %1440 = vmatpush1.bf16.xpose.msra.mxu0 0
        %1441 = vmatprep.subr.bf16.mxu0 0
        %1442 = vmatpush1.bf16.xpose.msra.mxu0 0
        %1443 = vmatprep.subr.bf16.mxu0 0
        %1444 = vmatpush1.bf16.xpose.msra.mxu0 0
        %1445 = vmatprep.subr.bf16.mxu0 0
        %1446 = vmatpush1.bf16.xpose.msra.mxu0 0
        %1447 = vmatprep.subr.bf16.mxu0 0
        %1448 = vmatpush1.bf16.xpose.msra.mxu0 0
        %1449 = vmatprep.subr.bf16.mxu0 0
        %1450 = vmatpush1.bf16.xpose.msra.mxu0 0
        %1451 = vmatprep.subr.bf16.mxu0 0
        %1452 = vmatpush1.bf16.xpose.msra.mxu0 0
        %1453 = vmatprep.subr.bf16.mxu0 0
        %1454 = vmatpush1.bf16.xpose.msra.mxu0 0
        %1455 = vmatprep.subr.bf16.mxu0 0
        %1456 = vmatpush1.bf16.xpose.msra.mxu0 0
        %1457 = vmatprep.subr.bf16.mxu0 0
        %1458 = vmatpush1.bf16.xpose.msra.mxu0 0
        %1459 = vmatprep.subr.bf16.mxu0 0
        %1460 = vmatpush1.bf16.xpose.msra.mxu0 0
        %1461 = vmatprep.subr.bf16.mxu0 0
        %1462 = vmatpush1.bf16.xpose.msra.mxu0 0
        %1463 = vmatprep.mubr.bf16.mxu0 0
        %1464 = vmatmul.mubr.bf16.gmra.mrb[0].mxu0 %v1426
        %v1465 = vpop.f32.mrb[0].mxu0
        %v1466 = vadd.f32 0.0, %v1465
        %v1467 = vpop.f32.mrb[0].mxu0
        %v1468 = vpop.f32.mrb[0].mxu0
        %v1469 = vpop.f32.mrb[0].mxu0
        %1470 = vdwg.mxu0
        %v1471 = vsel %vm699, %v1416, -inf
        %1472 = vmax.xlane.f32.xlu0 %v1471
        %v1473 = vpop.xlane.xlu0 %1472
        %v1474 = vsel %vm699, %v1466, -inf
        %1475 = vmax.xlane.f32.xlu0 %v1474
        %v1476 = vpop.xlane.xlu0 %1475
        %v1477 = vsub.f32 %v1416, %v1473
        %v1478 = vsub.f32 %v1466, %v1476
        %v1479 = vmul.f32 %v1477, 1.442695
        %v1480 = vpow.pop %v1479
        %v1481 = vmul.f32 %v1478, 1.442695
        %v1482 = vpow.pop %v1481
        %v1483 = vsel %vm699, %v1480, 0.0
        %1484 = vadd.xlane.f32.xlu0 %v1483
        %v1485 = vpop.xlane.xlu0 %1484
        %v1486 = vsel %vm699, %v1482, 0.0
        %1487 = vadd.xlane.f32.xlu0 %v1486
        %v1488 = vpop.xlane.xlu0 %1487
        %v1489 = vrcp.pop %v1485
        %v1490 = vrcp.pop %v1488
        %v1491 = vmul.f32 %v1480, %v1489
        %v1492 = vmul.f32 %v1482, %v1490
        %v1493 = vpack.c.bf16 %v1491, %v1491
        %v1494 = vpack.c.bf16 %v1492, %v1492
        %1495 = vrot.lane.b32.xlu0 %v695, 40
        %v1496 = vpop.permute.xlu0 %1495
        %v1498 = vsel %vm699, %v1493, 0
        %v1501 = vsel %vm823, %v1496, 0
        %1503 = vmatprep.subr.bf16.mxu0 0
        %1504 = vmatpush1.bf16.msra.mxu0 %v1501
        %1505 = vmatprep.subr.bf16.mxu0 0
        %1506 = vmatpush1.bf16.msra.mxu0 0
        %1507 = vmatprep.subr.bf16.mxu0 0
        %1508 = vmatpush1.bf16.msra.mxu0 0
        %1509 = vmatprep.subr.bf16.mxu0 0
        %1510 = vmatpush1.bf16.msra.mxu0 0
        %1511 = vmatprep.subr.bf16.mxu0 0
        %1512 = vmatpush1.bf16.msra.mxu0 0
        %1513 = vmatprep.subr.bf16.mxu0 0
        %1514 = vmatpush1.bf16.msra.mxu0 0
        %1515 = vmatprep.subr.bf16.mxu0 0
        %1516 = vmatpush1.bf16.msra.mxu0 0
        %1517 = vmatprep.subr.bf16.mxu0 0
        %1518 = vmatpush1.bf16.msra.mxu0 0
        %1519 = vmatprep.subr.bf16.mxu0 0
        %1520 = vmatpush1.bf16.msra.mxu0 0
        %1521 = vmatprep.subr.bf16.mxu0 0
        %1522 = vmatpush1.bf16.msra.mxu0 0
        %1523 = vmatprep.subr.bf16.mxu0 0
        %1524 = vmatpush1.bf16.msra.mxu0 0
        %1525 = vmatprep.subr.bf16.mxu0 0
        %1526 = vmatpush1.bf16.msra.mxu0 0
        %1527 = vmatprep.subr.bf16.mxu0 0
        %1528 = vmatpush1.bf16.msra.mxu0 0
        %1529 = vmatprep.subr.bf16.mxu0 0
        %1530 = vmatpush1.bf16.msra.mxu0 0
        %1531 = vmatprep.subr.bf16.mxu0 0
        %1532 = vmatpush1.bf16.msra.mxu0 0
        %1533 = vmatprep.subr.bf16.mxu0 0
        %1534 = vmatpush1.bf16.msra.mxu0 0
        %1535 = vmatprep.mubr.bf16.mxu0 0
        %1536 = vmatmul.mubr.bf16.gmra.mrb[0].mxu0 %v1498
        %v1537 = vpop.f32.mrb[0].mxu0
        %v1538 = vadd.f32 0.0, %v1537
        %v1539 = vpop.f32.mrb[0].mxu0
        %v1540 = vpop.f32.mrb[0].mxu0
        %v1541 = vpop.f32.mrb[0].mxu0
        %1542 = vdwg.mxu0
        %1543 = vrot.lane.b32.xlu0 %v696, 40
        %v1544 = vpop.permute.xlu0 %1543
        %v1546 = vsel %vm699, %v1494, 0
        %v1549 = vsel %vm823, %v1544, 0
        %1551 = vmatprep.subr.bf16.mxu0 0
        %1552 = vmatpush1.bf16.msra.mxu0 %v1549
        %1553 = vmatprep.subr.bf16.mxu0 0
        %1554 = vmatpush1.bf16.msra.mxu0 0
        %1555 = vmatprep.subr.bf16.mxu0 0
        %1556 = vmatpush1.bf16.msra.mxu0 0
        %1557 = vmatprep.subr.bf16.mxu0 0
        %1558 = vmatpush1.bf16.msra.mxu0 0
        %1559 = vmatprep.subr.bf16.mxu0 0
        %1560 = vmatpush1.bf16.msra.mxu0 0
        %1561 = vmatprep.subr.bf16.mxu0 0
        %1562 = vmatpush1.bf16.msra.mxu0 0
        %1563 = vmatprep.subr.bf16.mxu0 0
        %1564 = vmatpush1.bf16.msra.mxu0 0
        %1565 = vmatprep.subr.bf16.mxu0 0
        %1566 = vmatpush1.bf16.msra.mxu0 0
        %1567 = vmatprep.subr.bf16.mxu0 0
        %1568 = vmatpush1.bf16.msra.mxu0 0
        %1569 = vmatprep.subr.bf16.mxu0 0
        %1570 = vmatpush1.bf16.msra.mxu0 0
        %1571 = vmatprep.subr.bf16.mxu0 0
        %1572 = vmatpush1.bf16.msra.mxu0 0
        %1573 = vmatprep.subr.bf16.mxu0 0
        %1574 = vmatpush1.bf16.msra.mxu0 0
        %1575 = vmatprep.subr.bf16.mxu0 0
        %1576 = vmatpush1.bf16.msra.mxu0 0
        %1577 = vmatprep.subr.bf16.mxu0 0
        %1578 = vmatpush1.bf16.msra.mxu0 0
        %1579 = vmatprep.subr.bf16.mxu0 0
        %1580 = vmatpush1.bf16.msra.mxu0 0
        %1581 = vmatprep.subr.bf16.mxu0 0
        %1582 = vmatpush1.bf16.msra.mxu0 0
        %1583 = vmatprep.mubr.bf16.mxu0 0
        %1584 = vmatmul.mubr.bf16.gmra.mrb[0].mxu0 %v1546
        %v1585 = vpop.f32.mrb[0].mxu0
        %v1586 = vadd.f32 0.0, %v1585
        %v1587 = vpop.f32.mrb[0].mxu0
        %v1588 = vpop.f32.mrb[0].mxu0
        %v1589 = vpop.f32.mrb[0].mxu0
        %1590 = vdwg.mxu0
        %v1591 = vpack.c.bf16 %v1586, %v1538
        %1593 = vrot.lane.b32.xlu0 %v1591, 24
        %v1594 = vpop.permute.xlu0 %1593
        %vm1596 = vcmask 261312
        %1597 = vst.msk [vmem:[#allocation2] sm:$0xff] %vm1596, %v1594
        %v1598 = vld [vmem:[#allocation2] sm:$0xff]
        %v1599 = vld [vmem:[#allocation9] sm:$0xf]
        %v1600 = vld [vmem:[#allocation9 + $0x4] sm:$0xf]
        %v1601 = vld [vmem:[#allocation9 + $0x8] sm:$0xf]
        %v1602 = vld [vmem:[#allocation9 + $0xc] sm:$0xf]
        %v1603 = vld [vmem:[#allocation11] sm:$0x1]
        %v1605 = vlaneseq
        %v1606 = vshrl.u32 %v1605, 7
        %v1607 = vsub.s32 0, %v1606
        %v1608 = vrot.slane %v1603, %v1607
        %v1614 = vunpack.c.l.b16 %v1599
        %v1615 = vunpack.c.l.b16 %v1600
        %v1616 = vunpack.c.l.b16 %v1601
        %v1617 = vunpack.c.l.b16 %v1602
        %v1618 = vpack.c.b16 %v1615, %v1614
        %v1619 = vpack.c.b16 %v1617, %v1616
        %v1623 = vsel %vm646, %v1598, 0
        %1625 = vmatprep.subr.bf16.mxu0 0
        %1626 = vmatpush1.bf16.msra.mxu0 %v1618
        %1627 = vmatprep.subr.bf16.mxu0 0
        %1628 = vmatpush1.bf16.msra.mxu0 %v1619
        %1629 = vmatprep.subr.bf16.mxu0 0
        %1630 = vmatpush1.bf16.msra.mxu0 0
        %1631 = vmatprep.subr.bf16.mxu0 0
        %1632 = vmatpush1.bf16.msra.mxu0 0
        %1633 = vmatprep.subr.bf16.mxu0 0
        %1634 = vmatpush1.bf16.msra.mxu0 0
        %1635 = vmatprep.subr.bf16.mxu0 0
        %1636 = vmatpush1.bf16.msra.mxu0 0
        %1637 = vmatprep.subr.bf16.mxu0 0
        %1638 = vmatpush1.bf16.msra.mxu0 0
        %1639 = vmatprep.subr.bf16.mxu0 0
        %1640 = vmatpush1.bf16.msra.mxu0 0
        %1641 = vmatprep.subr.bf16.mxu0 0
        %1642 = vmatpush1.bf16.msra.mxu0 0
        %1643 = vmatprep.subr.bf16.mxu0 0
        %1644 = vmatpush1.bf16.msra.mxu0 0
        %1645 = vmatprep.subr.bf16.mxu0 0
        %1646 = vmatpush1.bf16.msra.mxu0 0
        %1647 = vmatprep.subr.bf16.mxu0 0
        %1648 = vmatpush1.bf16.msra.mxu0 0
        %1649 = vmatprep.subr.bf16.mxu0 0
        %1650 = vmatpush1.bf16.msra.mxu0 0
        %1651 = vmatprep.subr.bf16.mxu0 0
        %1652 = vmatpush1.bf16.msra.mxu0 0
        %1653 = vmatprep.subr.bf16.mxu0 0
        %1654 = vmatpush1.bf16.msra.mxu0 0
        %1655 = vmatprep.subr.bf16.mxu0 0
        %1656 = vmatpush1.bf16.msra.mxu0 0
        %1657 = vmatprep.mubr.bf16.mxu0 0
        %1658 = vmatmul.mubr.bf16.gmra.mrb[0].mxu0 %v1623
        %v1659 = vpop.f32.mrb[0].mxu0
        %v1660 = vadd.f32 %v1608, %v1659
        %v1661 = vpop.f32.mrb[0].mxu0
        %v1662 = vpop.f32.mrb[0].mxu0
        %v1663 = vadd.f32 %v1608, %v1662
        %v1664 = vpop.f32.mrb[0].mxu0
        %1665 = vdwg.mxu0
        %v1666 = vadd.f32 %v620, %v1660
        %v1667 = vadd.f32 %v621, %v1663
        %v1668 = vld [vmem:[#allocation12] sm:$0x1]
        %v1669 = vld [vmem:[#allocation14] sm:$0x1]
        %v1670 = vsel %vm646, %v1666, 0.0
        %1671 = vadd.xlane.f32.xlu0 %v1670
        %v1672 = vpop.xlane.xlu0 %1671
        %v1673 = vsel %vm646, %v1667, 0.0
        %1674 = vadd.xlane.f32.xlu0 %v1673
        %v1675 = vpop.xlane.xlu0 %1674
        %v1676 = vrcp.pop 32.0
        %v1677 = vmul.f32 %v1672, %v1676
        %v1678 = vmul.f32 %v1675, %v1676
        %v1679 = vsub.f32 %v1666, %v1677
        %v1680 = vsub.f32 %v1667, %v1678
        %v1681 = vmul.f32 %v1679, %v1679
        %v1682 = vmul.f32 %v1680, %v1680
        %v1683 = vsel %vm646, %v1681, 0.0
        %1684 = vadd.xlane.f32.xlu0 %v1683
        %v1685 = vpop.xlane.xlu0 %1684
        %v1686 = vsel %vm646, %v1682, 0.0
        %1687 = vadd.xlane.f32.xlu0 %v1686
        %v1688 = vpop.xlane.xlu0 %1687
        %v1689 = vmul.f32 %v1685, %v1676
        %v1690 = vmul.f32 %v1688, %v1676
        %v1691 = vadd.f32 %v1689, 1e-05
        %v1692 = vadd.f32 %v1690, 1e-05
        %v1693 = vrsqrt.pop %v1691
        %v1694 = vrsqrt.pop %v1692
        %v1695 = vmul.f32 %v1679, %v1693
        %v1696 = vmul.f32 %v1680, %v1694
        %v1698 = vlaneseq
        %v1699 = vshrl.u32 %v1698, 7
        %v1700 = vsub.s32 0, %v1699
        %v1701 = vrot.slane %v1668, %v1700
        %v1703 = vmul.f32 %v1695, %v1701
        %v1704 = vmul.f32 %v1696, %v1701
        %v1706 = vlaneseq
        %v1707 = vshrl.u32 %v1706, 7
        %v1708 = vsub.s32 0, %v1707
        %v1709 = vrot.slane %v1669, %v1708
        %v1711 = vadd.f32 %v1703, %v1709
        %v1712 = vadd.f32 %v1704, %v1709
        %v1713 = vpack.c.bf16 %v1712, %v1711
        %v1714 = vld [vmem:[#allocation15] sm:$0xf]
        %v1715 = vld [vmem:[#allocation15 + $0x4] sm:$0xf]
        %v1716 = vld [vmem:[#allocation15 + $0x8] sm:$0xf]
        %v1717 = vld [vmem:[#allocation15 + $0xc] sm:$0xf]
        %v1718 = vld [vmem:[#allocation17] sm:$0x1]
        %v1720 = vlaneseq
        %v1721 = vshrl.u32 %v1720, 7
        %v1722 = vsub.s32 0, %v1721
        %v1723 = vrot.slane %v1718, %v1722
        %v1729 = vunpack.c.l.b16 %v1714
        %v1730 = vunpack.c.l.b16 %v1715
        %v1731 = vunpack.c.l.b16 %v1716
        %v1732 = vunpack.c.l.b16 %v1717
        %v1733 = vpack.c.b16 %v1730, %v1729
        %v1734 = vpack.c.b16 %v1732, %v1731
        %v1738 = vsel %vm646, %v1713, 0
        %1740 = vmatprep.subr.bf16.mxu0 0
        %1741 = vmatpush1.bf16.msra.mxu0 %v1733
        %1742 = vmatprep.subr.bf16.mxu0 0
        %1743 = vmatpush1.bf16.msra.mxu0 %v1734
        %1744 = vmatprep.subr.bf16.mxu0 0
        %1745 = vmatpush1.bf16.msra.mxu0 0
        %1746 = vmatprep.subr.bf16.mxu0 0
        %1747 = vmatpush1.bf16.msra.mxu0 0
        %1748 = vmatprep.subr.bf16.mxu0 0
        %1749 = vmatpush1.bf16.msra.mxu0 0
        %1750 = vmatprep.subr.bf16.mxu0 0
        %1751 = vmatpush1.bf16.msra.mxu0 0
        %1752 = vmatprep.subr.bf16.mxu0 0
        %1753 = vmatpush1.bf16.msra.mxu0 0
        %1754 = vmatprep.subr.bf16.mxu0 0
        %1755 = vmatpush1.bf16.msra.mxu0 0
        %1756 = vmatprep.subr.bf16.mxu0 0
        %1757 = vmatpush1.bf16.msra.mxu0 0
        %1758 = vmatprep.subr.bf16.mxu0 0
        %1759 = vmatpush1.bf16.msra.mxu0 0
        %1760 = vmatprep.subr.bf16.mxu0 0
        %1761 = vmatpush1.bf16.msra.mxu0 0
        %1762 = vmatprep.subr.bf16.mxu0 0
        %1763 = vmatpush1.bf16.msra.mxu0 0
        %1764 = vmatprep.subr.bf16.mxu0 0
        %1765 = vmatpush1.bf16.msra.mxu0 0
        %1766 = vmatprep.subr.bf16.mxu0 0
        %1767 = vmatpush1.bf16.msra.mxu0 0
        %1768 = vmatprep.subr.bf16.mxu0 0
        %1769 = vmatpush1.bf16.msra.mxu0 0
        %1770 = vmatprep.subr.bf16.mxu0 0
        %1771 = vmatpush1.bf16.msra.mxu0 0
        %1772 = vmatprep.mubr.bf16.mxu0 0
        %1773 = vmatmul.mubr.bf16.gmra.mrb[0].mxu0 %v1738
        %v1774 = vpop.f32.mrb[0].mxu0
        %v1775 = vadd.f32 %v1723, %v1774
        %v1776 = vpop.f32.mrb[0].mxu0
        %v1777 = vpop.f32.mrb[0].mxu0
        %v1778 = vadd.f32 %v1723, %v1777
        %v1779 = vpop.f32.mrb[0].mxu0
        %1780 = vdwg.mxu0
        %v1781 = vmul.f32 %v1775, 0.5
        %v1782 = vmul.f32 %v1778, 0.5
        %v1783 = vrcp.pop 1.4142135
        %v1784 = vmul.f32 %v1775, %v1783
        %v1785 = vmul.f32 %v1778, %v1783
        %v1786 = verf.f32.pop %v1784
        %v1787 = verf.f32.pop %v1785
        %v1788 = vadd.f32 %v1786, 1.0
        %v1789 = vadd.f32 %v1787, 1.0
        %v1790 = vmul.f32 %v1781, %v1788
        %v1791 = vmul.f32 %v1782, %v1789
        %v1792 = vpack.c.bf16 %v1791, %v1790
        %v1793 = vld [vmem:[#allocation18] sm:$0xf]
        %v1794 = vld [vmem:[#allocation18 + $0x4] sm:$0xf]
        %v1795 = vld [vmem:[#allocation18 + $0x8] sm:$0xf]
        %v1796 = vld [vmem:[#allocation18 + $0xc] sm:$0xf]
        %v1797 = vld [vmem:[#allocation18 + $0x10] sm:$0xf]
        %v1798 = vld [vmem:[#allocation18 + $0x14] sm:$0xf]
        %v1799 = vld [vmem:[#allocation18 + $0x18] sm:$0xf]
        %v1800 = vld [vmem:[#allocation18 + $0x1c] sm:$0xf]
        %v1801 = vld [vmem:[#allocation20] sm:$0x1]
        %v1803 = vlaneseq
        %v1804 = vshrl.u32 %v1803, 7
        %v1805 = vsub.s32 0, %v1804
        %v1806 = vrot.slane %v1801, %v1805
        %v1816 = vunpack.c.l.b16 %v1793
        %v1817 = vunpack.c.l.b16 %v1794
        %v1818 = vunpack.c.l.b16 %v1795
        %v1819 = vunpack.c.l.b16 %v1796
        %v1820 = vunpack.c.l.b16 %v1797
        %v1821 = vunpack.c.l.b16 %v1798
        %v1822 = vunpack.c.l.b16 %v1799
        %v1823 = vunpack.c.l.b16 %v1800
        %v1824 = vpack.c.b16 %v1817, %v1816
        %v1825 = vpack.c.b16 %v1819, %v1818
        %v1826 = vpack.c.b16 %v1821, %v1820
        %v1827 = vpack.c.b16 %v1823, %v1822
        %vm1832 = vcmask 523264
        %v1834 = vsel %vm1832, %v1792, 0
        %1836 = vmatprep.subr.bf16.mxu0 0
        %1837 = vmatpush1.bf16.msra.mxu0 %v1824
        %1838 = vmatprep.subr.bf16.mxu0 0
        %1839 = vmatpush1.bf16.msra.mxu0 %v1825
        %1840 = vmatprep.subr.bf16.mxu0 0
        %1841 = vmatpush1.bf16.msra.mxu0 %v1826
        %1842 = vmatprep.subr.bf16.mxu0 0
        %1843 = vmatpush1.bf16.msra.mxu0 %v1827
        %1844 = vmatprep.subr.bf16.mxu0 0
        %1845 = vmatpush1.bf16.msra.mxu0 0
        %1846 = vmatprep.subr.bf16.mxu0 0
        %1847 = vmatpush1.bf16.msra.mxu0 0
        %1848 = vmatprep.subr.bf16.mxu0 0
        %1849 = vmatpush1.bf16.msra.mxu0 0
        %1850 = vmatprep.subr.bf16.mxu0 0
        %1851 = vmatpush1.bf16.msra.mxu0 0
        %1852 = vmatprep.subr.bf16.mxu0 0
        %1853 = vmatpush1.bf16.msra.mxu0 0
        %1854 = vmatprep.subr.bf16.mxu0 0
        %1855 = vmatpush1.bf16.msra.mxu0 0
        %1856 = vmatprep.subr.bf16.mxu0 0
        %1857 = vmatpush1.bf16.msra.mxu0 0
        %1858 = vmatprep.subr.bf16.mxu0 0
        %1859 = vmatpush1.bf16.msra.mxu0 0
        %1860 = vmatprep.subr.bf16.mxu0 0
        %1861 = vmatpush1.bf16.msra.mxu0 0
        %1862 = vmatprep.subr.bf16.mxu0 0
        %1863 = vmatpush1.bf16.msra.mxu0 0
        %1864 = vmatprep.subr.bf16.mxu0 0
        %1865 = vmatpush1.bf16.msra.mxu0 0
        %1866 = vmatprep.subr.bf16.mxu0 0
        %1867 = vmatpush1.bf16.msra.mxu0 0
        %1868 = vmatprep.mubr.bf16.mxu0 0
        %1869 = vmatmul.mubr.bf16.gmra.mrb[0].mxu0 %v1834
        %v1870 = vpop.f32.mrb[0].mxu0
        %v1871 = vadd.f32 %v1806, %v1870
        %v1872 = vpop.f32.mrb[0].mxu0
        %v1873 = vpop.f32.mrb[0].mxu0
        %v1874 = vadd.f32 %v1806, %v1873
        %v1875 = vpop.f32.mrb[0].mxu0
        %1876 = vdwg.mxu0
        %v1877 = vadd.f32 %v1711, %v1871
        %v1878 = vadd.f32 %v1712, %v1874
        %v1879 = vld [vmem:[#allocation21] sm:$0x1]
        %v1880 = vld [vmem:[#allocation23] sm:$0x1]
        %v1881 = vsel %vm646, %v1877, 0.0
        %1882 = vadd.xlane.f32.xlu0 %v1881
        %v1883 = vpop.xlane.xlu0 %1882
        %v1884 = vsel %vm646, %v1878, 0.0
        %1885 = vadd.xlane.f32.xlu0 %v1884
        %v1886 = vpop.xlane.xlu0 %1885
        %v1887 = vmul.f32 %v1883, %v1676
        %v1888 = vmul.f32 %v1886, %v1676
        %v1889 = vsub.f32 %v1877, %v1887
        %v1890 = vsub.f32 %v1878, %v1888
        %v1891 = vmul.f32 %v1889, %v1889
        %v1892 = vmul.f32 %v1890, %v1890
        %v1893 = vsel %vm646, %v1891, 0.0
        %1894 = vadd.xlane.f32.xlu0 %v1893
        %v1895 = vpop.xlane.xlu0 %1894
        %v1896 = vsel %vm646, %v1892, 0.0
        %1897 = vadd.xlane.f32.xlu0 %v1896
        %v1898 = vpop.xlane.xlu0 %1897
        %v1899 = vmul.f32 %v1895, %v1676
        %v1900 = vmul.f32 %v1898, %v1676
        %v1901 = vadd.f32 %v1899, 1e-05
        %v1902 = vadd.f32 %v1900, 1e-05
        %v1903 = vrsqrt.pop %v1901
        %v1904 = vrsqrt.pop %v1902
        %v1905 = vmul.f32 %v1889, %v1903
        %v1906 = vmul.f32 %v1890, %v1904
        %v1908 = vlaneseq
        %v1909 = vshrl.u32 %v1908, 7
        %v1910 = vsub.s32 0, %v1909
        %v1911 = vrot.slane %v1879, %v1910
        %v1913 = vmul.f32 %v1905, %v1911
        %v1914 = vmul.f32 %v1906, %v1911
        %v1916 = vlaneseq
        %v1917 = vshrl.u32 %v1916, 7
        %v1918 = vsub.s32 0, %v1917
        %v1919 = vrot.slane %v1880, %v1918
        %v1921 = vadd.f32 %v1913, %v1919
        %v1922 = vadd.f32 %v1914, %v1919
        %1923 = vst.msk [vmem:[%s616] sm:$0xff] %vm646, %v1921
        %1924 = vst.msk [vmem:[%s616 + $0x8] sm:$0xff] %vm646, %v1922
        %s1925 = sand.u32 %s322, 1
        %s1926 = scalar_lea.sflag [#allocation5], %s1925
        %s1927 = sand.u32 %s322, 1
        %s1928 = smul.addr %s1927, 16
        %s1929 = scalar_lea.vmem [#allocation24], %s1928
        // Predicated region
        $region125: #{tpu_custom_call.1} parent=71 // pred_check
          %p1930 = pneg %p332
        $region126: #{tpu_custom_call.1} parent=71 // pred_check_branch
          %1932 = sbr.rel (%p1930) target = $region128
        $region127: #{tpu_custom_call.1} parent=71 // pred_region
          %s1933 = smul.u32 2, %s36
          %s1935 = ssub.s32 256, 256
          %1936 = vsyncadd %s1926, %s1935
          %s1937 = smul.addr %s1933, 128
          %s1938 = scalar_lea.hbm %s13, %s1937
          %s1939 = sshll.u32 %s1929, 4
          %s1940 = int_to_ptr.vmem [resolvable:$true] %s1939
          %1945 = dma.vmem_to_hbm [thread:$0]  %s1940, 256, %s1938, %s1926, 128, 128, 8
        $region128: #{tpu_custom_call.1} parent=71 // pred_fallthru
          _
      $region72: #{tpu_custom_call.1} parent=5 // pred_fallthru
        _
      %p1946 = scmp.le.s32.totalorder 2, %s31
      // Predicated region
      $region129: #{tpu_custom_call.1} parent=5 // pred_check
        %p1947 = pneg %p1946
      $region130: #{tpu_custom_call.1} parent=5 // pred_check_branch
        %1949 = sbr.rel (%p1947) target = $region132
      $region131: #{tpu_custom_call.1} parent=5 // pred_region
        %s1950 = ssub.s32 %s31, 2
        // Predicated region
        $region133: #{tpu_custom_call.1} parent=131 // pred_check
          %p1951 = pneg %p338
        $region134: #{tpu_custom_call.1} parent=131 // pred_check_branch
          %1953 = sbr.rel (%p1951) target = $region136
        $region135: #{tpu_custom_call.1} parent=131 // pred_region
          %s1954 = sand.u32 %s323, 1
          %s1955 = scalar_lea.sflag [#allocation5], %s1954
          %s1956 = sand.u32 %s323, 1
          %s1957 = smul.addr %s1956, 16
          %s1958 = scalar_lea.vmem [#allocation24], %s1957
          %1959 = dma.done %s1955, 256
        $region136: #{tpu_custom_call.1} parent=131 // pred_fallthru
          _
      $region132: #{tpu_custom_call.1} parent=5 // pred_fallthru
        _
    $region6: #{tpu_custom_call.1} parent=1 // loop_footer
      %s35 = sadd.s32 1, %s31
    $region7: #{tpu_custom_call.1} parent=1 // loop_footer_branch
      %30 = sbr.rel target = $region3
    $region8: #{tpu_custom_call.1} parent=1 // loop_exit
      _
    %1960 = vsyncpa [#allocation4], 1
    %s1961 = scalar_lea.sflag [#allocation4], 1
    %1962 = vsyncpa %s1961, 1
    %1963 = vsyncpa [#allocation7], 1
    %1964 = vsyncpa [#allocation10], 1
    %1965 = vsyncpa [#allocation13], 1
    %1966 = vsyncpa [#allocation16], 1
    %1967 = vsyncpa [#allocation19], 1
    %1968 = vsyncpa [#allocation22], 1
    %1969 = vsyncpa [#allocation5], 1
    %s1970 = scalar_lea.sflag [#allocation5], 1
    %1971 = vsyncpa %s1970, 1

</llo_original>
